<compile_context>
chip_gen: v7x
topology: tpu7x:2x2x1
jax: 0.10.0
libtpu: 0.0.40
codegen_flags: <defaults>
</compile_context>

<pallas_src>
import math
import functools

import jax
import jax.numpy as jnp
from jax.experimental import pallas as pl
from jax.experimental.pallas import tpu as pltpu


def _round_up(n, m):
    return ((n + m - 1) // m) * m


def _encoder_kernel(num_heads, q_dim, k_dim, v_dim, d_model, eps,
                    x_ref,
                    wq_ref, bq_ref, wk_ref, bk_ref, wv_ref, bv_ref,
                    wo_ref, bo_ref, ln1g_ref, ln1b_ref,
                    w1_ref, b1_ref, w2_ref, b2_ref, ln2g_ref, ln2b_ref,
                    o_ref):
    H = num_heads
    x = x_ref[0]                                   # (S, Dp) f32; cols >= d_model are zero
    S, Dp = x.shape
    xb = x.astype(jnp.bfloat16)

    # --- multi-head self-attention (q = k = v = x) ---
    # NOTE: 1/sqrt(q_dim) is already folded into wq/bq (prepare_params).
    q = jnp.dot(xb, wq_ref[...], preferred_element_type=jnp.float32) + bq_ref[...]
    k = jnp.dot(xb, wk_ref[...], preferred_element_type=jnp.float32) + bk_ref[...]
    v = jnp.dot(xb, wv_ref[...], preferred_element_type=jnp.float32) + bv_ref[...]

    q3 = q.reshape(S, H, q_dim).astype(jnp.bfloat16)
    k3 = k.reshape(S, H, k_dim).astype(jnp.bfloat16)
    v3 = v.reshape(S, H, v_dim).astype(jnp.bfloat16)

    # Single batched-over-heads contraction (no per-head loop / concat / kh.T).
    s = jnp.einsum('qhd,khd->hqk', q3, k3,
                   preferred_element_type=jnp.float32)          # (H, S, S) f32
    s = s - jnp.max(s, axis=-1, keepdims=True)
    p = jnp.exp(s)
    p = p * pl.reciprocal(jnp.sum(p, axis=-1, keepdims=True), approx=True)

    ctx = jnp.einsum('hqk,khd->qhd', p.astype(jnp.bfloat16), v3,
                     preferred_element_type=jnp.float32)        # (S, H, dv)
    attn = ctx.reshape(S, H * v_dim).astype(jnp.bfloat16)
    attn = jnp.dot(attn, wo_ref[...],
                   preferred_element_type=jnp.float32) + bo_ref[...]   # (S, Dp)

    # feature mask: true model dim vs. lane padding
    inv_d = 1.0 / float(d_model)
    fmask = (jax.lax.broadcasted_iota(jnp.int32, (1, Dp), 1) < d_model
             ).astype(jnp.float32)

    # --- residual + LayerNorm 1 (f32, masked stats over true d_model) ---
    y = x + attn
    mu = jnp.sum(y, axis=-1, keepdims=True) * inv_d
    c = (y - mu) * fmask
    var = jnp.sum(c * c, axis=-1, keepdims=True) * inv_d
    y = c * jax.lax.rsqrt(var + eps) * ln1g_ref[...] + ln1b_ref[...]

    # --- feed forward (bf16 operands, f32 accumulation) ---
    h1 = jnp.dot(y.astype(jnp.bfloat16), w1_ref[...],
                 preferred_element_type=jnp.float32) + b1_ref[...]
    h1 = jnp.maximum(h1, 0.0)
    ff = jnp.dot(h1.astype(jnp.bfloat16), w2_ref[...],
                 preferred_element_type=jnp.float32) + b2_ref[...]

    # --- residual + LayerNorm 2 ---
    z = y + ff
    mu2 = jnp.sum(z, axis=-1, keepdims=True) * inv_d
    c2 = (z - mu2) * fmask
    var2 = jnp.sum(c2 * c2, axis=-1, keepdims=True) * inv_d
    z = c2 * jax.lax.rsqrt(var2 + eps) * ln2g_ref[...] + ln2b_ref[...]

    o_ref[0] = z.astype(o_ref.dtype)


def prepare_params(params, *, num_heads, q_dim, k_dim, v_dim):
    """One-time parameter transform (NOT per-call):
       * pad feature / FFN dims up to multiples of 128 (lane-dense kernel),
       * fold 1/sqrt(q_dim) into the query projection,
       * cast matmul weights to bf16 (biases / LN params stay f32)."""
    assert q_dim == k_dim, "attention contraction requires query_dim == key_dim"
    D = params["wq"].shape[0]
    F = params["w1"].shape[1]
    O = params["w2"].shape[1]
    assert O == D, "residual connection requires output_dim == input_dim"

    Dp = _round_up(D, 128)
    Fp = _round_up(F, 128)
    inv_scale = 1.0 / math.sqrt(float(q_dim))

    def pad2(a, rows, cols):
        return jnp.pad(a, ((0, rows - a.shape[0]), (0, cols - a.shape[1])))

    bf16 = jnp.bfloat16
    H = num_heads
    weights = (
        pad2(params["wq"] * inv_scale, Dp, H * q_dim).astype(bf16),   # wq
        (params["bq"] * inv_scale),                                   # bq (f32)
        pad2(params["wk"], Dp, H * k_dim).astype(bf16),               # wk
        params["bk"],                                                 # bk
        pad2(params["wv"], Dp, H * v_dim).astype(bf16),               # wv
        params["bv"],                                                 # bv
        pad2(params["wo"], H * v_dim, Dp).astype(bf16),               # wo
        pad2(params["bo"], 1, Dp),                                    # bo
        pad2(params["ln1_g"], 1, Dp),                                 # ln1 gamma
        pad2(params["ln1_b"], 1, Dp),                                 # ln1 beta
        pad2(params["w1"], Dp, Fp).astype(bf16),                      # w1
        pad2(params["b1"], 1, Fp),                                    # b1
        pad2(params["w2"], Fp, Dp).astype(bf16),                      # w2
        pad2(params["b2"], 1, Dp),                                    # b2
        pad2(params["ln2_g"], 1, Dp),                                 # ln2 gamma
        pad2(params["ln2_b"], 1, Dp),                                 # ln2 beta
    )
    return dict(weights=weights, d_model=D, d_pad=Dp, out_dim=O, ffn_pad=Fp)


def transformer_encoder_layer(x, prepared, *, num_heads, q_dim, k_dim, v_dim,
                              eps=1e-5):
    """x: (B, S, D) float32.  prepared: output of prepare_params."""
    B, S, D = x.shape
    assert D == prepared["d_model"]
    Dp = prepared["d_pad"]
    out_dim = prepared["out_dim"]
    weights = prepared["weights"]

    x_p = x if Dp == D else jnp.pad(x, ((0, 0), (0, 0), (0, Dp - D)))

    in_specs = [pl.BlockSpec((1, S, Dp), lambda b: (b, 0, 0))]
    for w in weights:
        in_specs.append(pl.BlockSpec(w.shape, lambda b: (0, 0)))

    kernel = functools.partial(_encoder_kernel, num_heads, q_dim, k_dim, v_dim,
                               D, eps)

    out_p = pl.pallas_call(
        kernel,
        out_shape=jax.ShapeDtypeStruct((B, S, Dp), x.dtype),
        grid_spec=pltpu.PrefetchScalarGridSpec(
            num_scalar_prefetch=0,
            grid=(B,),
            in_specs=in_specs,
            out_specs=pl.BlockSpec((1, S, Dp), lambda b: (b, 0, 0)),
        ),
        compiler_params=pltpu.CompilerParams(
            dimension_semantics=("parallel",),
            vmem_limit_bytes=32 * 1024 * 1024),
    )(x_p, *weights)

    return out_p[..., :out_dim]


def init_params(key, input_dim, output_dim, num_heads, q_dim, k_dim, v_dim,
                feedforward_dim):
    """Deterministic synthetic f32 weights matching the PyTorch module's shapes.
    Per-head Linear layers are fused: wq is (D, H*dq) etc.; biases are (1, dim)."""
    ks = jax.random.split(key, 6)
    H = num_heads
    D = input_dim

    def lin(k, fan_in, fan_out):
        bound = 1.0 / math.sqrt(fan_in)
        kw, kb = jax.random.split(k)
        w = jax.random.uniform(kw, (fan_in, fan_out), jnp.float32, -bound, bound)
        b = jax.random.uniform(kb, (1, fan_out), jnp.float32, -bound, bound)
        return w, b

    wq, bq = lin(ks[0], D, H * q_dim)
    wk, bk = lin(ks[1], D, H * k_dim)
    wv, bv = lin(ks[2], D, H * v_dim)
    wo, bo = lin(ks[3], H * v_dim, D)
    w1, b1 = lin(ks[4], D, feedforward_dim)
    w2, b2 = lin(ks[5], feedforward_dim, output_dim)

    return dict(
        wq=wq, bq=bq, wk=wk, bk=bk, wv=wv, bv=bv, wo=wo, bo=bo,
        ln1_g=jnp.ones((1, D), jnp.float32),
        ln1_b=jnp.zeros((1, D), jnp.float32),
        w1=w1, b1=b1, w2=w2, b2=b2,
        ln2_g=jnp.ones((1, output_dim), jnp.float32),
        ln2_b=jnp.zeros((1, output_dim), jnp.float32),
    )


def reference_forward(x, params, *, num_heads, q_dim, k_dim, v_dim, eps=1e-5):
    """Pure-JAX f32 reference (eval-mode PyTorch semantics)."""
    def ln(t, g, b):
        mu = jnp.mean(t, axis=-1, keepdims=True)
        var = jnp.mean((t - mu) ** 2, axis=-1, keepdims=True)
        return (t - mu) * jax.lax.rsqrt(var + eps) * g + b

    B, S, _ = x.shape
    H = num_heads
    q = x @ params["wq"] + params["bq"]
    k = x @ params["wk"] + params["bk"]
    v = x @ params["wv"] + params["bv"]
    q = q.reshape(B, S, H, q_dim)
    k = k.reshape(B, S, H, k_dim)
    v = v.reshape(B, S, H, v_dim)
    s = jnp.einsum('bqhd,bkhd->bhqk', q, k) / math.sqrt(float(q_dim))
    p = jax.nn.softmax(s, axis=-1)
    ctx = jnp.einsum('bhqk,bkhd->bqhd', p, v).reshape(B, S, H * v_dim)
    attn = ctx @ params["wo"] + params["bo"]
    y = ln(x + attn, params["ln1_g"], params["ln1_b"])
    h1 = jnp.maximum(y @ params["w1"] + params["b1"], 0.0)
    ff = h1 @ params["w2"] + params["b2"]
    return ln(y + ff, params["ln2_g"], params["ln2_b"])


if __name__ == "__main__":
    # Small shapes consistent with the module: batch=2, seq=8, hidden=32,
    # 4 heads (head dim = 32 // 4 = 8), feedforward_dim=64, output_dim=32.
    B, S = 2, 8
    input_dim = output_dim = 32
    num_heads = 4
    head_dim = max(input_dim // num_heads, 1)
    q_dim = k_dim = v_dim = head_dim
    feedforward_dim = 64

    key = jax.random.PRNGKey(0)
    kx, kp = jax.random.split(key)
    x = jax.random.normal(kx, (B, S, input_dim), jnp.float32)
    params = init_params(kp, input_dim, output_dim, num_heads,
                         q_dim, k_dim, v_dim, feedforward_dim)
    prepared = prepare_params(params, num_heads=num_heads,
                              q_dim=q_dim, k_dim=k_dim, v_dim=v_dim)

    out = transformer_encoder_layer(x, prepared, num_heads=num_heads,
                                    q_dim=q_dim, k_dim=k_dim, v_dim=v_dim)
    out = jax.block_until_ready(out)
    assert out.shape == (B, S, output_dim)

    ref = reference_forward(x, params, num_heads=num_heads,
                            q_dim=q_dim, k_dim=k_dim, v_dim=v_dim)
    max_err = float(jnp.max(jnp.abs(out - ref)))
    assert max_err < 1e-1, f"kernel/reference mismatch: max abs err {max_err}"
    print("KERNEL_OK")
</pallas_src>

<mosaic_0001>
module attributes {stable_mosaic.version = 11 : i64} {
  func.func @_encoder_kernel(%arg0: i32, %arg1: memref<1x8x128xf32, #tpu.memory_space<vmem>>, %arg2: memref<128x32xbf16, #tpu.memory_space<vmem>>, %arg3: memref<1x32xf32, #tpu.memory_space<vmem>>, %arg4: memref<128x32xbf16, #tpu.memory_space<vmem>>, %arg5: memref<1x32xf32, #tpu.memory_space<vmem>>, %arg6: memref<128x32xbf16, #tpu.memory_space<vmem>>, %arg7: memref<1x32xf32, #tpu.memory_space<vmem>>, %arg8: memref<32x128xbf16, #tpu.memory_space<vmem>>, %arg9: memref<1x128xf32, #tpu.memory_space<vmem>>, %arg10: memref<1x128xf32, #tpu.memory_space<vmem>>, %arg11: memref<1x128xf32, #tpu.memory_space<vmem>>, %arg12: memref<128x128xbf16, #tpu.memory_space<vmem>>, %arg13: memref<1x128xf32, #tpu.memory_space<vmem>>, %arg14: memref<128x128xbf16, #tpu.memory_space<vmem>>, %arg15: memref<1x128xf32, #tpu.memory_space<vmem>>, %arg16: memref<1x128xf32, #tpu.memory_space<vmem>>, %arg17: memref<1x128xf32, #tpu.memory_space<vmem>>, %arg18: memref<1x8x128xf32, #tpu.memory_space<vmem>>) attributes {dimension_semantics = [#tpu.dimension_semantics<parallel>], iteration_bounds = array<i64: 2>, scalar_prefetch = 0 : i64, scratch_operands = 0 : i64, tpu.core_type = #tpu.core_type<tc>, window_params = [{transform_indices = @transform_0, window_bounds = array<i64: 1, 8, 128>}, {pipeline_mode = #tpu.pipeline_mode<synchronous>, transform_indices = @transform_1, window_bounds = array<i64: 128, 32>}, {pipeline_mode = #tpu.pipeline_mode<synchronous>, transform_indices = @transform_2, window_bounds = array<i64: 1, 32>}, {pipeline_mode = #tpu.pipeline_mode<synchronous>, transform_indices = @transform_3, window_bounds = array<i64: 128, 32>}, {pipeline_mode = #tpu.pipeline_mode<synchronous>, transform_indices = @transform_4, window_bounds = array<i64: 1, 32>}, {pipeline_mode = #tpu.pipeline_mode<synchronous>, transform_indices = @transform_5, window_bounds = array<i64: 128, 32>}, {pipeline_mode = #tpu.pipeline_mode<synchronous>, transform_indices = @transform_6, window_bounds = array<i64: 1, 32>}, {pipeline_mode = #tpu.pipeline_mode<synchronous>, transform_indices = @transform_7, window_bounds = array<i64: 32, 128>}, {pipeline_mode = #tpu.pipeline_mode<synchronous>, transform_indices = @transform_8, window_bounds = array<i64: 1, 128>}, {pipeline_mode = #tpu.pipeline_mode<synchronous>, transform_indices = @transform_9, window_bounds = array<i64: 1, 128>}, {pipeline_mode = #tpu.pipeline_mode<synchronous>, transform_indices = @transform_10, window_bounds = array<i64: 1, 128>}, {pipeline_mode = #tpu.pipeline_mode<synchronous>, transform_indices = @transform_11, window_bounds = array<i64: 128, 128>}, {pipeline_mode = #tpu.pipeline_mode<synchronous>, transform_indices = @transform_12, window_bounds = array<i64: 1, 128>}, {pipeline_mode = #tpu.pipeline_mode<synchronous>, transform_indices = @transform_13, window_bounds = array<i64: 128, 128>}, {pipeline_mode = #tpu.pipeline_mode<synchronous>, transform_indices = @transform_14, window_bounds = array<i64: 1, 128>}, {pipeline_mode = #tpu.pipeline_mode<synchronous>, transform_indices = @transform_15, window_bounds = array<i64: 1, 128>}, {pipeline_mode = #tpu.pipeline_mode<synchronous>, transform_indices = @transform_16, window_bounds = array<i64: 1, 128>}, {transform_indices = @transform_17, window_bounds = array<i64: 1, 8, 128>}]} {
    %c0 = arith.constant 0 : index
    %c0_0 = arith.constant 0 : index
    %c0_1 = arith.constant 0 : index
    %0 = vector.load %arg1[%c0, %c0_0, %c0_1] : memref<1x8x128xf32, #tpu.memory_space<vmem>>, vector<1x8x128xf32>
    %1 = vector.shape_cast %0 : vector<1x8x128xf32> to vector<8x128xf32>
    %2 = arith.truncf %1 : vector<8x128xf32> to vector<8x128xbf16>
    %c0_2 = arith.constant 0 : index
    %c0_3 = arith.constant 0 : index
    %3 = vector.load %arg2[%c0_2, %c0_3] : memref<128x32xbf16, #tpu.memory_space<vmem>>, vector<128x32xbf16>
    %cst = arith.constant dense<0.000000e+00> : vector<8x32xf32>
    %4 = tpu.matmul %2, %3, %cst {dimension_numbers = #tpu.dot_dimension_numbers<[1], [0], [0], [1], [0, 0, 1, 1], [], []>} : vector<8x128xbf16>, vector<128x32xbf16>, vector<8x32xf32> -> vector<8x32xf32>
    %c0_4 = arith.constant 0 : index
    %c0_5 = arith.constant 0 : index
    %5 = vector.load %arg3[%c0_4, %c0_5] : memref<1x32xf32, #tpu.memory_space<vmem>>, vector<1x32xf32>
    %6 = vector.broadcast %5 : vector<1x32xf32> to vector<8x32xf32>
    %7 = arith.addf %4, %6 : vector<8x32xf32>
    %c0_6 = arith.constant 0 : index
    %c0_7 = arith.constant 0 : index
    %8 = vector.load %arg4[%c0_6, %c0_7] : memref<128x32xbf16, #tpu.memory_space<vmem>>, vector<128x32xbf16>
    %cst_8 = arith.constant dense<0.000000e+00> : vector<8x32xf32>
    %9 = tpu.matmul %2, %8, %cst_8 {dimension_numbers = #tpu.dot_dimension_numbers<[1], [0], [0], [1], [0, 0, 1, 1], [], []>} : vector<8x128xbf16>, vector<128x32xbf16>, vector<8x32xf32> -> vector<8x32xf32>
    %c0_9 = arith.constant 0 : index
    %c0_10 = arith.constant 0 : index
    %10 = vector.load %arg5[%c0_9, %c0_10] : memref<1x32xf32, #tpu.memory_space<vmem>>, vector<1x32xf32>
    %11 = vector.broadcast %10 : vector<1x32xf32> to vector<8x32xf32>
    %12 = arith.addf %9, %11 : vector<8x32xf32>
    %c0_11 = arith.constant 0 : index
    %c0_12 = arith.constant 0 : index
    %13 = vector.load %arg6[%c0_11, %c0_12] : memref<128x32xbf16, #tpu.memory_space<vmem>>, vector<128x32xbf16>
    %cst_13 = arith.constant dense<0.000000e+00> : vector<8x32xf32>
    %14 = tpu.matmul %2, %13, %cst_13 {dimension_numbers = #tpu.dot_dimension_numbers<[1], [0], [0], [1], [0, 0, 1, 1], [], []>} : vector<8x128xbf16>, vector<128x32xbf16>, vector<8x32xf32> -> vector<8x32xf32>
    %c0_14 = arith.constant 0 : index
    %c0_15 = arith.constant 0 : index
    %15 = vector.load %arg7[%c0_14, %c0_15] : memref<1x32xf32, #tpu.memory_space<vmem>>, vector<1x32xf32>
    %16 = vector.broadcast %15 : vector<1x32xf32> to vector<8x32xf32>
    %17 = arith.addf %14, %16 : vector<8x32xf32>
    %18 = vector.shape_cast %7 : vector<8x32xf32> to vector<8x4x8xf32>
    %19 = arith.truncf %18 : vector<8x4x8xf32> to vector<8x4x8xbf16>
    %20 = vector.shape_cast %12 : vector<8x32xf32> to vector<8x4x8xf32>
    %21 = arith.truncf %20 : vector<8x4x8xf32> to vector<8x4x8xbf16>
    %22 = vector.shape_cast %17 : vector<8x32xf32> to vector<8x4x8xf32>
    %23 = arith.truncf %22 : vector<8x4x8xf32> to vector<8x4x8xbf16>
    "tpu.trace_start"() <{level = 10 : i32, message = "qhd,khd->hqk"}> : () -> ()
    %cst_16 = arith.constant dense<0.000000e+00> : vector<4x8x8xf32>
    %24 = tpu.matmul %19, %21, %cst_16 {dimension_numbers = #tpu.dot_dimension_numbers<[2], [2], [0], [0], [0, 1, 0, 0, 1, 0], [1], [1]>} : vector<8x4x8xbf16>, vector<8x4x8xbf16>, vector<4x8x8xf32> -> vector<4x8x8xf32>
    "tpu.trace_stop"() : () -> ()
    %cst_17 = arith.constant dense<0xFF800000> : vector<4x8xf32>
    %25 = vector.multi_reduction <maximumf>, %24, %cst_17 [2] : vector<4x8x8xf32> to vector<4x8xf32>
    %26 = vector.shape_cast %25 : vector<4x8xf32> to vector<4x8x1xf32>
    %27 = vector.broadcast %26 : vector<4x8x1xf32> to vector<4x8x8xf32>
    %28 = arith.subf %24, %27 : vector<4x8x8xf32>
    %29 = math.exp %28 : vector<4x8x8xf32>
    %cst_18 = arith.constant dense<0.000000e+00> : vector<4x8xf32>
    %30 = vector.multi_reduction <add>, %29, %cst_18 [2] : vector<4x8x8xf32> to vector<4x8xf32>
    %31 = vector.shape_cast %30 : vector<4x8xf32> to vector<4x8x1xf32>
    %32 = tpu.reciprocal %31 {approx = true} : vector<4x8x1xf32> -> vector<4x8x1xf32>
    %33 = vector.broadcast %32 : vector<4x8x1xf32> to vector<4x8x8xf32>
    %34 = arith.mulf %29, %33 : vector<4x8x8xf32>
    %35 = arith.truncf %34 : vector<4x8x8xf32> to vector<4x8x8xbf16>
    "tpu.trace_start"() <{level = 10 : i32, message = "hqk,khd->qhd"}> : () -> ()
    %cst_19 = arith.constant dense<0.000000e+00> : vector<4x8x8xf32>
    %36 = tpu.matmul %23, %35, %cst_19 {dimension_numbers = #tpu.dot_dimension_numbers<[0], [2], [2], [1], [0, 1, 0, 2, 1, 1], [1], [0]>} : vector<8x4x8xbf16>, vector<4x8x8xbf16>, vector<4x8x8xf32> -> vector<4x8x8xf32>
    %37 = tpu.transpose %36, [2, 0, 1] : vector<4x8x8xf32> -> vector<8x4x8xf32>
    "tpu.trace_stop"() : () -> ()
    %38 = vector.shape_cast %37 : vector<8x4x8xf32> to vector<8x32xf32>
    %39 = arith.truncf %38 : vector<8x32xf32> to vector<8x32xbf16>
    %c0_20 = arith.constant 0 : index
    %c0_21 = arith.constant 0 : index
    %40 = vector.load %arg8[%c0_20, %c0_21] : memref<32x128xbf16, #tpu.memory_space<vmem>>, vector<32x128xbf16>
    %cst_22 = arith.constant dense<0.000000e+00> : vector<8x128xf32>
    %41 = tpu.matmul %39, %40, %cst_22 {dimension_numbers = #tpu.dot_dimension_numbers<[1], [0], [0], [1], [0, 0, 1, 1], [], []>} : vector<8x32xbf16>, vector<32x128xbf16>, vector<8x128xf32> -> vector<8x128xf32>
    %c0_23 = arith.constant 0 : index
    %c0_24 = arith.constant 0 : index
    %42 = vector.load %arg9[%c0_23, %c0_24] : memref<1x128xf32, #tpu.memory_space<vmem>>, vector<1x128xf32>
    %43 = vector.broadcast %42 : vector<1x128xf32> to vector<8x128xf32>
    %44 = arith.addf %41, %43 : vector<8x128xf32>
    %45 = tpu.iota {dimensions = array<i32: 1>} : vector<1x128xi32>
    %c32_i32 = arith.constant 32 : i32
    %46 = vector.broadcast %c32_i32 : i32 to vector<1x128xi32>
    %47 = arith.cmpi slt, %45, %46 : vector<1x128xi32>
    %48 = arith.extui %47 : vector<1x128xi1> to vector<1x128xi32>
    %49 = arith.sitofp %48 : vector<1x128xi32> to vector<1x128xf32>
    %50 = arith.addf %1, %44 : vector<8x128xf32>
    %cst_25 = arith.constant dense<0.000000e+00> : vector<8xf32>
    %51 = vector.multi_reduction <add>, %50, %cst_25 [1] : vector<8x128xf32> to vector<8xf32>
    %52 = vector.shape_cast %51 : vector<8xf32> to vector<8x1xf32>
    %cst_26 = arith.constant 3.125000e-02 : f32
    %53 = vector.broadcast %cst_26 : f32 to vector<8x1xf32>
    %54 = arith.mulf %52, %53 : vector<8x1xf32>
    %55 = vector.broadcast %54 : vector<8x1xf32> to vector<8x128xf32>
    %56 = arith.subf %50, %55 : vector<8x128xf32>
    %57 = vector.broadcast %49 : vector<1x128xf32> to vector<8x128xf32>
    %58 = arith.mulf %56, %57 : vector<8x128xf32>
    %59 = arith.mulf %58, %58 : vector<8x128xf32>
    %cst_27 = arith.constant dense<0.000000e+00> : vector<8xf32>
    %60 = vector.multi_reduction <add>, %59, %cst_27 [1] : vector<8x128xf32> to vector<8xf32>
    %61 = vector.shape_cast %60 : vector<8xf32> to vector<8x1xf32>
    %cst_28 = arith.constant 3.125000e-02 : f32
    %62 = vector.broadcast %cst_28 : f32 to vector<8x1xf32>
    %63 = arith.mulf %61, %62 : vector<8x1xf32>
    %cst_29 = arith.constant 9.99999974E-6 : f32
    %64 = vector.broadcast %cst_29 : f32 to vector<8x1xf32>
    %65 = arith.addf %63, %64 : vector<8x1xf32>
    %66 = math.rsqrt %65 : vector<8x1xf32>
    %67 = vector.broadcast %66 : vector<8x1xf32> to vector<8x128xf32>
    %68 = arith.mulf %58, %67 : vector<8x128xf32>
    %c0_30 = arith.constant 0 : index
    %c0_31 = arith.constant 0 : index
    %69 = vector.load %arg10[%c0_30, %c0_31] : memref<1x128xf32, #tpu.memory_space<vmem>>, vector<1x128xf32>
    %70 = vector.broadcast %69 : vector<1x128xf32> to vector<8x128xf32>
    %71 = arith.mulf %68, %70 : vector<8x128xf32>
    %c0_32 = arith.constant 0 : index
    %c0_33 = arith.constant 0 : index
    %72 = vector.load %arg11[%c0_32, %c0_33] : memref<1x128xf32, #tpu.memory_space<vmem>>, vector<1x128xf32>
    %73 = vector.broadcast %72 : vector<1x128xf32> to vector<8x128xf32>
    %74 = arith.addf %71, %73 : vector<8x128xf32>
    %75 = arith.truncf %74 : vector<8x128xf32> to vector<8x128xbf16>
    %c0_34 = arith.constant 0 : index
    %c0_35 = arith.constant 0 : index
    %76 = vector.load %arg12[%c0_34, %c0_35] : memref<128x128xbf16, #tpu.memory_space<vmem>>, vector<128x128xbf16>
    %cst_36 = arith.constant dense<0.000000e+00> : vector<8x128xf32>
    %77 = tpu.matmul %75, %76, %cst_36 {dimension_numbers = #tpu.dot_dimension_numbers<[1], [0], [0], [1], [0, 0, 1, 1], [], []>} : vector<8x128xbf16>, vector<128x128xbf16>, vector<8x128xf32> -> vector<8x128xf32>
    %c0_37 = arith.constant 0 : index
    %c0_38 = arith.constant 0 : index
    %78 = vector.load %arg13[%c0_37, %c0_38] : memref<1x128xf32, #tpu.memory_space<vmem>>, vector<1x128xf32>
    %79 = vector.broadcast %78 : vector<1x128xf32> to vector<8x128xf32>
    %80 = arith.addf %77, %79 : vector<8x128xf32>
    %cst_39 = arith.constant 0.000000e+00 : f32
    %81 = vector.broadcast %cst_39 : f32 to vector<8x128xf32>
    %82 = arith.maximumf %80, %81 : vector<8x128xf32>
    %83 = arith.truncf %82 : vector<8x128xf32> to vector<8x128xbf16>
    %c0_40 = arith.constant 0 : index
    %c0_41 = arith.constant 0 : index
    %84 = vector.load %arg14[%c0_40, %c0_41] : memref<128x128xbf16, #tpu.memory_space<vmem>>, vector<128x128xbf16>
    %cst_42 = arith.constant dense<0.000000e+00> : vector<8x128xf32>
    %85 = tpu.matmul %83, %84, %cst_42 {dimension_numbers = #tpu.dot_dimension_numbers<[1], [0], [0], [1], [0, 0, 1, 1], [], []>} : vector<8x128xbf16>, vector<128x128xbf16>, vector<8x128xf32> -> vector<8x128xf32>
    %c0_43 = arith.constant 0 : index
    %c0_44 = arith.constant 0 : index
    %86 = vector.load %arg15[%c0_43, %c0_44] : memref<1x128xf32, #tpu.memory_space<vmem>>, vector<1x128xf32>
    %87 = vector.broadcast %86 : vector<1x128xf32> to vector<8x128xf32>
    %88 = arith.addf %85, %87 : vector<8x128xf32>
    %89 = arith.addf %74, %88 : vector<8x128xf32>
    %cst_45 = arith.constant dense<0.000000e+00> : vector<8xf32>
    %90 = vector.multi_reduction <add>, %89, %cst_45 [1] : vector<8x128xf32> to vector<8xf32>
    %91 = vector.shape_cast %90 : vector<8xf32> to vector<8x1xf32>
    %cst_46 = arith.constant 3.125000e-02 : f32
    %92 = vector.broadcast %cst_46 : f32 to vector<8x1xf32>
    %93 = arith.mulf %91, %92 : vector<8x1xf32>
    %94 = vector.broadcast %93 : vector<8x1xf32> to vector<8x128xf32>
    %95 = arith.subf %89, %94 : vector<8x128xf32>
    %96 = vector.broadcast %49 : vector<1x128xf32> to vector<8x128xf32>
    %97 = arith.mulf %95, %96 : vector<8x128xf32>
    %98 = arith.mulf %97, %97 : vector<8x128xf32>
    %cst_47 = arith.constant dense<0.000000e+00> : vector<8xf32>
    %99 = vector.multi_reduction <add>, %98, %cst_47 [1] : vector<8x128xf32> to vector<8xf32>
    %100 = vector.shape_cast %99 : vector<8xf32> to vector<8x1xf32>
    %cst_48 = arith.constant 3.125000e-02 : f32
    %101 = vector.broadcast %cst_48 : f32 to vector<8x1xf32>
    %102 = arith.mulf %100, %101 : vector<8x1xf32>
    %cst_49 = arith.constant 9.99999974E-6 : f32
    %103 = vector.broadcast %cst_49 : f32 to vector<8x1xf32>
    %104 = arith.addf %102, %103 : vector<8x1xf32>
    %105 = math.rsqrt %104 : vector<8x1xf32>
    %106 = vector.broadcast %105 : vector<8x1xf32> to vector<8x128xf32>
    %107 = arith.mulf %97, %106 : vector<8x128xf32>
    %c0_50 = arith.constant 0 : index
    %c0_51 = arith.constant 0 : index
    %108 = vector.load %arg16[%c0_50, %c0_51] : memref<1x128xf32, #tpu.memory_space<vmem>>, vector<1x128xf32>
    %109 = vector.broadcast %108 : vector<1x128xf32> to vector<8x128xf32>
    %110 = arith.mulf %107, %109 : vector<8x128xf32>
    %c0_52 = arith.constant 0 : index
    %c0_53 = arith.constant 0 : index
    %111 = vector.load %arg17[%c0_52, %c0_53] : memref<1x128xf32, #tpu.memory_space<vmem>>, vector<1x128xf32>
    %112 = vector.broadcast %111 : vector<1x128xf32> to vector<8x128xf32>
    %113 = arith.addf %110, %112 : vector<8x128xf32>
    %c0_54 = arith.constant 0 : index
    %c0_55 = arith.constant 0 : index
    %c0_56 = arith.constant 0 : index
    %114 = vector.load %arg18[%c0_54, %c0_55, %c0_56] : memref<1x8x128xf32, #tpu.memory_space<vmem>>, vector<1x8x128xf32>
    %115 = vector.shape_cast %114 : vector<1x8x128xf32> to vector<8x128xf32>
    %116 = vector.shape_cast %113 : vector<8x128xf32> to vector<1x8x128xf32>
    tpu.vector_store %arg18[%c0_54, %c0_55, %c0_56], %116 {strides = array<i32>} : memref<1x8x128xf32, #tpu.memory_space<vmem>>, vector<1x8x128xf32>,
    return
  }
  func.func @transform_0(%arg0: i32) -> (i32, i32, i32) {
    %c0_i32 = arith.constant 0 : i32
    %c0_i32_0 = arith.constant 0 : i32
    %c0_i32_1 = arith.constant 0 : i32
    return %arg0, %c0_i32, %c0_i32_0 : i32, i32, i32
  }
  func.func @transform_1(%arg0: i32) -> (i32, i32) {
    %c0_i32 = arith.constant 0 : i32
    %c0_i32_0 = arith.constant 0 : i32
    %c0_i32_1 = arith.constant 0 : i32
    return %c0_i32, %c0_i32_0 : i32, i32
  }
  func.func @transform_2(%arg0: i32) -> (i32, i32) {
    %c0_i32 = arith.constant 0 : i32
    %c0_i32_0 = arith.constant 0 : i32
    %c0_i32_1 = arith.constant 0 : i32
    return %c0_i32, %c0_i32_0 : i32, i32
  }
  func.func @transform_3(%arg0: i32) -> (i32, i32) {
    %c0_i32 = arith.constant 0 : i32
    %c0_i32_0 = arith.constant 0 : i32
    %c0_i32_1 = arith.constant 0 : i32
    return %c0_i32, %c0_i32_0 : i32, i32
  }
  func.func @transform_4(%arg0: i32) -> (i32, i32) {
    %c0_i32 = arith.constant 0 : i32
    %c0_i32_0 = arith.constant 0 : i32
    %c0_i32_1 = arith.constant 0 : i32
    return %c0_i32, %c0_i32_0 : i32, i32
  }
  func.func @transform_5(%arg0: i32) -> (i32, i32) {
    %c0_i32 = arith.constant 0 : i32
    %c0_i32_0 = arith.constant 0 : i32
    %c0_i32_1 = arith.constant 0 : i32
    return %c0_i32, %c0_i32_0 : i32, i32
  }
  func.func @transform_6(%arg0: i32) -> (i32, i32) {
    %c0_i32 = arith.constant 0 : i32
    %c0_i32_0 = arith.constant 0 : i32
    %c0_i32_1 = arith.constant 0 : i32
    return %c0_i32, %c0_i32_0 : i32, i32
  }
  func.func @transform_7(%arg0: i32) -> (i32, i32) {
    %c0_i32 = arith.constant 0 : i32
    %c0_i32_0 = arith.constant 0 : i32
    %c0_i32_1 = arith.constant 0 : i32
    return %c0_i32, %c0_i32_0 : i32, i32
  }
  func.func @transform_8(%arg0: i32) -> (i32, i32) {
    %c0_i32 = arith.constant 0 : i32
    %c0_i32_0 = arith.constant 0 : i32
    %c0_i32_1 = arith.constant 0 : i32
    return %c0_i32, %c0_i32_0 : i32, i32
  }
  func.func @transform_9(%arg0: i32) -> (i32, i32) {
    %c0_i32 = arith.constant 0 : i32
    %c0_i32_0 = arith.constant 0 : i32
    %c0_i32_1 = arith.constant 0 : i32
    return %c0_i32, %c0_i32_0 : i32, i32
  }
  func.func @transform_10(%arg0: i32) -> (i32, i32) {
    %c0_i32 = arith.constant 0 : i32
    %c0_i32_0 = arith.constant 0 : i32
    %c0_i32_1 = arith.constant 0 : i32
    return %c0_i32, %c0_i32_0 : i32, i32
  }
  func.func @transform_11(%arg0: i32) -> (i32, i32) {
    %c0_i32 = arith.constant 0 : i32
    %c0_i32_0 = arith.constant 0 : i32
    %c0_i32_1 = arith.constant 0 : i32
    return %c0_i32, %c0_i32_0 : i32, i32
  }
  func.func @transform_12(%arg0: i32) -> (i32, i32) {
    %c0_i32 = arith.constant 0 : i32
    %c0_i32_0 = arith.constant 0 : i32
    %c0_i32_1 = arith.constant 0 : i32
    return %c0_i32, %c0_i32_0 : i32, i32
  }
  func.func @transform_13(%arg0: i32) -> (i32, i32) {
    %c0_i32 = arith.constant 0 : i32
    %c0_i32_0 = arith.constant 0 : i32
    %c0_i32_1 = arith.constant 0 : i32
    return %c0_i32, %c0_i32_0 : i32, i32
  }
  func.func @transform_14(%arg0: i32) -> (i32, i32) {
    %c0_i32 = arith.constant 0 : i32
    %c0_i32_0 = arith.constant 0 : i32
    %c0_i32_1 = arith.constant 0 : i32
    return %c0_i32, %c0_i32_0 : i32, i32
  }
  func.func @transform_15(%arg0: i32) -> (i32, i32) {
    %c0_i32 = arith.constant 0 : i32
    %c0_i32_0 = arith.constant 0 : i32
    %c0_i32_1 = arith.constant 0 : i32
    return %c0_i32, %c0_i32_0 : i32, i32
  }
  func.func @transform_16(%arg0: i32) -> (i32, i32) {
    %c0_i32 = arith.constant 0 : i32
    %c0_i32_0 = arith.constant 0 : i32
    %c0_i32_1 = arith.constant 0 : i32
    return %c0_i32, %c0_i32_0 : i32, i32
  }
  func.func @transform_17(%arg0: i32) -> (i32, i32, i32) {
    %c0_i32 = arith.constant 0 : i32
    %c0_i32_0 = arith.constant 0 : i32
    %c0_i32_1 = arith.constant 0 : i32
    return %arg0, %c0_i32, %c0_i32_0 : i32, i32, i32
  }
}

</mosaic_0001>

<llo_original>
// kernel: tpu_custom_call.1
$region0: #{tpu_custom_call.1}
  #allocation0 [shape = 'u32[]', space=smem, size = 0x4, offset = 0x4, fixed_abs, tag = 'smem constant byte address 0x4 - core index']
  #allocation1 [shape = 'u32[144,128]{1,0:T(1,128)}', space=vmem, size = 0x12000, scoped, tag = 'internal scratch']
  %s0 = inlined_call_operand.vmem [shape: f32[2,8,128], index: 0, kind: input, shape index: {}]
  %s1 = inlined_call_operand.vmem [shape: bf16[128,32], index: 1, kind: input, shape index: {}]
  %s2 = inlined_call_operand.vmem [shape: f32[1,32], index: 2, kind: input, shape index: {}]
  %s3 = inlined_call_operand.vmem [shape: bf16[128,32], index: 3, kind: input, shape index: {}]
  %s4 = inlined_call_operand.vmem [shape: f32[1,32], index: 4, kind: input, shape index: {}]
  %s5 = inlined_call_operand.vmem [shape: bf16[128,32], index: 5, kind: input, shape index: {}]
  %s6 = inlined_call_operand.vmem [shape: f32[1,32], index: 6, kind: input, shape index: {}]
  %s7 = inlined_call_operand.vmem [shape: bf16[32,128], index: 7, kind: input, shape index: {}]
  %s8 = inlined_call_operand.vmem [shape: f32[1,128], index: 8, kind: input, shape index: {}]
  %s9 = inlined_call_operand.vmem [shape: f32[1,128], index: 9, kind: input, shape index: {}]
  %s10 = inlined_call_operand.vmem [shape: f32[1,128], index: 10, kind: input, shape index: {}]
  %s11 = inlined_call_operand.vmem [shape: bf16[128,128], index: 11, kind: input, shape index: {}]
  %s12 = inlined_call_operand.vmem [shape: f32[1,128], index: 12, kind: input, shape index: {}]
  %s13 = inlined_call_operand.vmem [shape: bf16[128,128], index: 13, kind: input, shape index: {}]
  %s14 = inlined_call_operand.vmem [shape: f32[1,128], index: 14, kind: input, shape index: {}]
  %s15 = inlined_call_operand.vmem [shape: f32[1,128], index: 15, kind: input, shape index: {}]
  %s16 = inlined_call_operand.vmem [shape: f32[1,128], index: 16, kind: input, shape index: {}]
  %s17 = inlined_call_operand.hbm [shape: f32[2,8,128], index: 17, kind: output, shape index: {}]
  %s18 = sld [smem:[#allocation0]]
  $region101: #{tpu_custom_call.1} parent=0
    _
  %s20 = ssub.s32 1, %s18
  %s21 = scalar_select 0, %s20, %s18
  $region1: #{tpu_custom_call.1} parent=0
    #allocation2 [shape = 'u8[8192]{0}', space=vmem, size = 0x2000, scoped, tag = 'output window, operand 0']
    #allocation3 [shape = 's32[2]{0}', space=sflag, size = 0x8, scoped, tag = 'scoped memory for tpu_custom_call.1']
    %22 = vsyncpa [#allocation3], 0
    %s23 = scalar_lea.sflag [#allocation3], 1
    %24 = vsyncpa %s23, 0
    loop: start=0, step=1, limit=4
    $region2: #{tpu_custom_call.1} parent=1 // loop_pre_header
      _
    $region3: #{tpu_custom_call.1} parent=1 // loop_header
      %s26 = sphi 0, %s30
      %p27 = scmp.ge.s32.totalorder %s26, 4
      %s36 = sphi 0, %s38
      %s39 = sphi 0, %s36
      %s40 = sphi 0, %s39
      %s56 = sphi 0, %s40
      %s60 = sphi 0, %s60
      %s62 = sphi 0, %s60
      %s63 = sphi 0, %s62
      %s77 = sphi 0, %s63
      %s81 = sphi 0, %s81
      %s83 = sphi 0, %s81
      %s84 = sphi 0, %s83
      %s98 = sphi 0, %s84
      %s102 = sphi 0, %s102
      %s104 = sphi 0, %s102
      %s105 = sphi 0, %s104
      %s119 = sphi 0, %s105
      %s123 = sphi 0, %s123
      %s125 = sphi 0, %s123
      %s126 = sphi 0, %s125
      %s140 = sphi 0, %s126
      %s144 = sphi 0, %s144
      %s146 = sphi 0, %s144
      %s147 = sphi 0, %s146
      %s161 = sphi 0, %s147
      %s165 = sphi 0, %s165
      %s167 = sphi 0, %s165
      %s168 = sphi 0, %s167
      %s182 = sphi 0, %s168
      %s186 = sphi 0, %s186
      %s188 = sphi 0, %s186
      %s189 = sphi 0, %s188
      %s203 = sphi 0, %s189
      %s207 = sphi 0, %s207
      %s209 = sphi 0, %s207
      %s210 = sphi 0, %s209
      %s224 = sphi 0, %s210
      %s228 = sphi 0, %s228
      %s230 = sphi 0, %s228
      %s231 = sphi 0, %s230
      %s245 = sphi 0, %s231
      %s249 = sphi 0, %s249
      %s251 = sphi 0, %s249
      %s252 = sphi 0, %s251
      %s266 = sphi 0, %s252
      %s270 = sphi 0, %s270
      %s272 = sphi 0, %s270
      %s273 = sphi 0, %s272
      %s287 = sphi 0, %s273
      %s291 = sphi 0, %s291
      %s293 = sphi 0, %s291
      %s294 = sphi 0, %s293
      %s308 = sphi 0, %s294
      %s312 = sphi 0, %s312
      %s314 = sphi 0, %s312
      %s315 = sphi 0, %s314
      %s329 = sphi 0, %s315
      %s333 = sphi 0, %s333
      %s335 = sphi 0, %s333
      %s336 = sphi 0, %s335
      %s350 = sphi 0, %s336
      %s354 = sphi 0, %s354
      %s356 = sphi 0, %s354
      %s357 = sphi 0, %s356
      %s371 = sphi 0, %s357
      %s375 = sphi 0, %s375
      %s377 = sphi 0, %s375
      %s378 = sphi 0, %s377
      %s392 = sphi 0, %s378
      %s398 = sphi 0, %s400
      %s401 = sphi 0, %s398
      %s402 = sphi 0, %s401
      %s418 = sphi 0, %s402
    $region4: #{tpu_custom_call.1} parent=1 // loop_header_branch
      %29 = sbr.rel (%p27) target = $region8
    $region5: #{tpu_custom_call.1} parent=1 // loop_body
      %s31 = ssub.s32 %s26, 1
      %s32 = ssub.s32 %s26, 2
      %s33 = sadd.s32 %s26, 1
      %s34 = ssub.s32 %s26, %s33
      %p35 = scmp.eq.s32.totalorder %s34, 0
      %s37 = sadd.s32 %s36, 1
      %s38 = scalar_select %p35, %s36, %s37
      %p41 = pneg %p35
      %p42 = scmp.eq.s32.totalorder %s26, 1
      %p43 = por %p41, %p42
      %p44 = scmp.ne.s32.totalorder %s36, %s39
      %p45 = scmp.eq.s32.totalorder %s26, 0
      %p46 = por %p44, %p45
      %p47 = scmp.ne.s32.totalorder %s36, %s39
      %p48 = scmp.eq.s32.totalorder %s31, 1
      %p49 = por %p47, %p48
      %p50 = scmp.ne.s32.totalorder %s39, %s40
      %p51 = scmp.eq.s32.totalorder %s31, 0
      %p52 = por %p50, %p51
      %p53 = scmp.ne.s32.totalorder %s39, %s40
      %p54 = scmp.eq.s32.totalorder %s32, 1
      %p55 = por %p53, %p54
      %p57 = scmp.ne.s32.totalorder %s40, %s56
      %p58 = scmp.eq.s32.totalorder %s32, 0
      %p59 = por %p57, %p58
      %s61 = sadd.s32 %s60, 1
      %p64 = scmp.eq.s32.totalorder %s26, 1
      %p65 = scmp.ne.s32.totalorder %s60, %s62
      %p66 = scmp.eq.s32.totalorder %s26, 0
      %p67 = por %p65, %p66
      %p68 = scmp.ne.s32.totalorder %s60, %s62
      %p69 = scmp.eq.s32.totalorder %s31, 1
      %p70 = por %p68, %p69
      %p71 = scmp.ne.s32.totalorder %s62, %s63
      %p72 = scmp.eq.s32.totalorder %s31, 0
      %p73 = por %p71, %p72
      %p74 = scmp.ne.s32.totalorder %s62, %s63
      %p75 = scmp.eq.s32.totalorder %s32, 1
      %p76 = por %p74, %p75
      %p78 = scmp.ne.s32.totalorder %s63, %s77
      %p79 = scmp.eq.s32.totalorder %s32, 0
      %p80 = por %p78, %p79
      %s82 = sadd.s32 %s81, 1
      %p85 = scmp.eq.s32.totalorder %s26, 1
      %p86 = scmp.ne.s32.totalorder %s81, %s83
      %p87 = scmp.eq.s32.totalorder %s26, 0
      %p88 = por %p86, %p87
      %p89 = scmp.ne.s32.totalorder %s81, %s83
      %p90 = scmp.eq.s32.totalorder %s31, 1
      %p91 = por %p89, %p90
      %p92 = scmp.ne.s32.totalorder %s83, %s84
      %p93 = scmp.eq.s32.totalorder %s31, 0
      %p94 = por %p92, %p93
      %p95 = scmp.ne.s32.totalorder %s83, %s84
      %p96 = scmp.eq.s32.totalorder %s32, 1
      %p97 = por %p95, %p96
      %p99 = scmp.ne.s32.totalorder %s84, %s98
      %p100 = scmp.eq.s32.totalorder %s32, 0
      %p101 = por %p99, %p100
      %s103 = sadd.s32 %s102, 1
      %p106 = scmp.eq.s32.totalorder %s26, 1
      %p107 = scmp.ne.s32.totalorder %s102, %s104
      %p108 = scmp.eq.s32.totalorder %s26, 0
      %p109 = por %p107, %p108
      %p110 = scmp.ne.s32.totalorder %s102, %s104
      %p111 = scmp.eq.s32.totalorder %s31, 1
      %p112 = por %p110, %p111
      %p113 = scmp.ne.s32.totalorder %s104, %s105
      %p114 = scmp.eq.s32.totalorder %s31, 0
      %p115 = por %p113, %p114
      %p116 = scmp.ne.s32.totalorder %s104, %s105
      %p117 = scmp.eq.s32.totalorder %s32, 1
      %p118 = por %p116, %p117
      %p120 = scmp.ne.s32.totalorder %s105, %s119
      %p121 = scmp.eq.s32.totalorder %s32, 0
      %p122 = por %p120, %p121
      %s124 = sadd.s32 %s123, 1
      %p127 = scmp.eq.s32.totalorder %s26, 1
      %p128 = scmp.ne.s32.totalorder %s123, %s125
      %p129 = scmp.eq.s32.totalorder %s26, 0
      %p130 = por %p128, %p129
      %p131 = scmp.ne.s32.totalorder %s123, %s125
      %p132 = scmp.eq.s32.totalorder %s31, 1
      %p133 = por %p131, %p132
      %p134 = scmp.ne.s32.totalorder %s125, %s126
      %p135 = scmp.eq.s32.totalorder %s31, 0
      %p136 = por %p134, %p135
      %p137 = scmp.ne.s32.totalorder %s125, %s126
      %p138 = scmp.eq.s32.totalorder %s32, 1
      %p139 = por %p137, %p138
      %p141 = scmp.ne.s32.totalorder %s126, %s140
      %p142 = scmp.eq.s32.totalorder %s32, 0
      %p143 = por %p141, %p142
      %s145 = sadd.s32 %s144, 1
      %p148 = scmp.eq.s32.totalorder %s26, 1
      %p149 = scmp.ne.s32.totalorder %s144, %s146
      %p150 = scmp.eq.s32.totalorder %s26, 0
      %p151 = por %p149, %p150
      %p152 = scmp.ne.s32.totalorder %s144, %s146
      %p153 = scmp.eq.s32.totalorder %s31, 1
      %p154 = por %p152, %p153
      %p155 = scmp.ne.s32.totalorder %s146, %s147
      %p156 = scmp.eq.s32.totalorder %s31, 0
      %p157 = por %p155, %p156
      %p158 = scmp.ne.s32.totalorder %s146, %s147
      %p159 = scmp.eq.s32.totalorder %s32, 1
      %p160 = por %p158, %p159
      %p162 = scmp.ne.s32.totalorder %s147, %s161
      %p163 = scmp.eq.s32.totalorder %s32, 0
      %p164 = por %p162, %p163
      %s166 = sadd.s32 %s165, 1
      %p169 = scmp.eq.s32.totalorder %s26, 1
      %p170 = scmp.ne.s32.totalorder %s165, %s167
      %p171 = scmp.eq.s32.totalorder %s26, 0
      %p172 = por %p170, %p171
      %p173 = scmp.ne.s32.totalorder %s165, %s167
      %p174 = scmp.eq.s32.totalorder %s31, 1
      %p175 = por %p173, %p174
      %p176 = scmp.ne.s32.totalorder %s167, %s168
      %p177 = scmp.eq.s32.totalorder %s31, 0
      %p178 = por %p176, %p177
      %p179 = scmp.ne.s32.totalorder %s167, %s168
      %p180 = scmp.eq.s32.totalorder %s32, 1
      %p181 = por %p179, %p180
      %p183 = scmp.ne.s32.totalorder %s168, %s182
      %p184 = scmp.eq.s32.totalorder %s32, 0
      %p185 = por %p183, %p184
      %s187 = sadd.s32 %s186, 1
      %p190 = scmp.eq.s32.totalorder %s26, 1
      %p191 = scmp.ne.s32.totalorder %s186, %s188
      %p192 = scmp.eq.s32.totalorder %s26, 0
      %p193 = por %p191, %p192
      %p194 = scmp.ne.s32.totalorder %s186, %s188
      %p195 = scmp.eq.s32.totalorder %s31, 1
      %p196 = por %p194, %p195
      %p197 = scmp.ne.s32.totalorder %s188, %s189
      %p198 = scmp.eq.s32.totalorder %s31, 0
      %p199 = por %p197, %p198
      %p200 = scmp.ne.s32.totalorder %s188, %s189
      %p201 = scmp.eq.s32.totalorder %s32, 1
      %p202 = por %p200, %p201
      %p204 = scmp.ne.s32.totalorder %s189, %s203
      %p205 = scmp.eq.s32.totalorder %s32, 0
      %p206 = por %p204, %p205
      %s208 = sadd.s32 %s207, 1
      %p211 = scmp.eq.s32.totalorder %s26, 1
      %p212 = scmp.ne.s32.totalorder %s207, %s209
      %p213 = scmp.eq.s32.totalorder %s26, 0
      %p214 = por %p212, %p213
      %p215 = scmp.ne.s32.totalorder %s207, %s209
      %p216 = scmp.eq.s32.totalorder %s31, 1
      %p217 = por %p215, %p216
      %p218 = scmp.ne.s32.totalorder %s209, %s210
      %p219 = scmp.eq.s32.totalorder %s31, 0
      %p220 = por %p218, %p219
      %p221 = scmp.ne.s32.totalorder %s209, %s210
      %p222 = scmp.eq.s32.totalorder %s32, 1
      %p223 = por %p221, %p222
      %p225 = scmp.ne.s32.totalorder %s210, %s224
      %p226 = scmp.eq.s32.totalorder %s32, 0
      %p227 = por %p225, %p226
      %s229 = sadd.s32 %s228, 1
      %p232 = scmp.eq.s32.totalorder %s26, 1
      %p233 = scmp.ne.s32.totalorder %s228, %s230
      %p234 = scmp.eq.s32.totalorder %s26, 0
      %p235 = por %p233, %p234
      %p236 = scmp.ne.s32.totalorder %s228, %s230
      %p237 = scmp.eq.s32.totalorder %s31, 1
      %p238 = por %p236, %p237
      %p239 = scmp.ne.s32.totalorder %s230, %s231
      %p240 = scmp.eq.s32.totalorder %s31, 0
      %p241 = por %p239, %p240
      %p242 = scmp.ne.s32.totalorder %s230, %s231
      %p243 = scmp.eq.s32.totalorder %s32, 1
      %p244 = por %p242, %p243
      %p246 = scmp.ne.s32.totalorder %s231, %s245
      %p247 = scmp.eq.s32.totalorder %s32, 0
      %p248 = por %p246, %p247
      %s250 = sadd.s32 %s249, 1
      %p253 = scmp.eq.s32.totalorder %s26, 1
      %p254 = scmp.ne.s32.totalorder %s249, %s251
      %p255 = scmp.eq.s32.totalorder %s26, 0
      %p256 = por %p254, %p255
      %p257 = scmp.ne.s32.totalorder %s249, %s251
      %p258 = scmp.eq.s32.totalorder %s31, 1
      %p259 = por %p257, %p258
      %p260 = scmp.ne.s32.totalorder %s251, %s252
      %p261 = scmp.eq.s32.totalorder %s31, 0
      %p262 = por %p260, %p261
      %p263 = scmp.ne.s32.totalorder %s251, %s252
      %p264 = scmp.eq.s32.totalorder %s32, 1
      %p265 = por %p263, %p264
      %p267 = scmp.ne.s32.totalorder %s252, %s266
      %p268 = scmp.eq.s32.totalorder %s32, 0
      %p269 = por %p267, %p268
      %s271 = sadd.s32 %s270, 1
      %p274 = scmp.eq.s32.totalorder %s26, 1
      %p275 = scmp.ne.s32.totalorder %s270, %s272
      %p276 = scmp.eq.s32.totalorder %s26, 0
      %p277 = por %p275, %p276
      %p278 = scmp.ne.s32.totalorder %s270, %s272
      %p279 = scmp.eq.s32.totalorder %s31, 1
      %p280 = por %p278, %p279
      %p281 = scmp.ne.s32.totalorder %s272, %s273
      %p282 = scmp.eq.s32.totalorder %s31, 0
      %p283 = por %p281, %p282
      %p284 = scmp.ne.s32.totalorder %s272, %s273
      %p285 = scmp.eq.s32.totalorder %s32, 1
      %p286 = por %p284, %p285
      %p288 = scmp.ne.s32.totalorder %s273, %s287
      %p289 = scmp.eq.s32.totalorder %s32, 0
      %p290 = por %p288, %p289
      %s292 = sadd.s32 %s291, 1
      %p295 = scmp.eq.s32.totalorder %s26, 1
      %p296 = scmp.ne.s32.totalorder %s291, %s293
      %p297 = scmp.eq.s32.totalorder %s26, 0
      %p298 = por %p296, %p297
      %p299 = scmp.ne.s32.totalorder %s291, %s293
      %p300 = scmp.eq.s32.totalorder %s31, 1
      %p301 = por %p299, %p300
      %p302 = scmp.ne.s32.totalorder %s293, %s294
      %p303 = scmp.eq.s32.totalorder %s31, 0
      %p304 = por %p302, %p303
      %p305 = scmp.ne.s32.totalorder %s293, %s294
      %p306 = scmp.eq.s32.totalorder %s32, 1
      %p307 = por %p305, %p306
      %p309 = scmp.ne.s32.totalorder %s294, %s308
      %p310 = scmp.eq.s32.totalorder %s32, 0
      %p311 = por %p309, %p310
      %s313 = sadd.s32 %s312, 1
      %p316 = scmp.eq.s32.totalorder %s26, 1
      %p317 = scmp.ne.s32.totalorder %s312, %s314
      %p318 = scmp.eq.s32.totalorder %s26, 0
      %p319 = por %p317, %p318
      %p320 = scmp.ne.s32.totalorder %s312, %s314
      %p321 = scmp.eq.s32.totalorder %s31, 1
      %p322 = por %p320, %p321
      %p323 = scmp.ne.s32.totalorder %s314, %s315
      %p324 = scmp.eq.s32.totalorder %s31, 0
      %p325 = por %p323, %p324
      %p326 = scmp.ne.s32.totalorder %s314, %s315
      %p327 = scmp.eq.s32.totalorder %s32, 1
      %p328 = por %p326, %p327
      %p330 = scmp.ne.s32.totalorder %s315, %s329
      %p331 = scmp.eq.s32.totalorder %s32, 0
      %p332 = por %p330, %p331
      %s334 = sadd.s32 %s333, 1
      %p337 = scmp.eq.s32.totalorder %s26, 1
      %p338 = scmp.ne.s32.totalorder %s333, %s335
      %p339 = scmp.eq.s32.totalorder %s26, 0
      %p340 = por %p338, %p339
      %p341 = scmp.ne.s32.totalorder %s333, %s335
      %p342 = scmp.eq.s32.totalorder %s31, 1
      %p343 = por %p341, %p342
      %p344 = scmp.ne.s32.totalorder %s335, %s336
      %p345 = scmp.eq.s32.totalorder %s31, 0
      %p346 = por %p344, %p345
      %p347 = scmp.ne.s32.totalorder %s335, %s336
      %p348 = scmp.eq.s32.totalorder %s32, 1
      %p349 = por %p347, %p348
      %p351 = scmp.ne.s32.totalorder %s336, %s350
      %p352 = scmp.eq.s32.totalorder %s32, 0
      %p353 = por %p351, %p352
      %s355 = sadd.s32 %s354, 1
      %p358 = scmp.eq.s32.totalorder %s26, 1
      %p359 = scmp.ne.s32.totalorder %s354, %s356
      %p360 = scmp.eq.s32.totalorder %s26, 0
      %p361 = por %p359, %p360
      %p362 = scmp.ne.s32.totalorder %s354, %s356
      %p363 = scmp.eq.s32.totalorder %s31, 1
      %p364 = por %p362, %p363
      %p365 = scmp.ne.s32.totalorder %s356, %s357
      %p366 = scmp.eq.s32.totalorder %s31, 0
      %p367 = por %p365, %p366
      %p368 = scmp.ne.s32.totalorder %s356, %s357
      %p369 = scmp.eq.s32.totalorder %s32, 1
      %p370 = por %p368, %p369
      %p372 = scmp.ne.s32.totalorder %s357, %s371
      %p373 = scmp.eq.s32.totalorder %s32, 0
      %p374 = por %p372, %p373
      %s376 = sadd.s32 %s375, 1
      %p379 = scmp.eq.s32.totalorder %s26, 1
      %p380 = scmp.ne.s32.totalorder %s375, %s377
      %p381 = scmp.eq.s32.totalorder %s26, 0
      %p382 = por %p380, %p381
      %p383 = scmp.ne.s32.totalorder %s375, %s377
      %p384 = scmp.eq.s32.totalorder %s31, 1
      %p385 = por %p383, %p384
      %p386 = scmp.ne.s32.totalorder %s377, %s378
      %p387 = scmp.eq.s32.totalorder %s31, 0
      %p388 = por %p386, %p387
      %p389 = scmp.ne.s32.totalorder %s377, %s378
      %p390 = scmp.eq.s32.totalorder %s32, 1
      %p391 = por %p389, %p390
      %p393 = scmp.ne.s32.totalorder %s378, %s392
      %p394 = scmp.eq.s32.totalorder %s32, 0
      %p395 = por %p393, %p394
      %s396 = ssub.s32 %s26, %s33
      %p397 = scmp.eq.s32.totalorder %s396, 0
      %s399 = sadd.s32 %s398, 1
      %s400 = scalar_select %p397, %s398, %s399
      %p403 = pneg %p397
      %p404 = scmp.eq.s32.totalorder %s26, 1
      %p405 = por %p403, %p404
      %p406 = scmp.ne.s32.totalorder %s398, %s401
      %p407 = scmp.eq.s32.totalorder %s26, 0
      %p408 = por %p406, %p407
      %p409 = scmp.ne.s32.totalorder %s398, %s401
      %p410 = scmp.eq.s32.totalorder %s31, 1
      %p411 = por %p409, %p410
      %p412 = scmp.ne.s32.totalorder %s401, %s402
      %p413 = scmp.eq.s32.totalorder %s31, 0
      %p414 = por %p412, %p413
      %p415 = scmp.ne.s32.totalorder %s401, %s402
      %p416 = scmp.eq.s32.totalorder %s32, 1
      %p417 = por %p415, %p416
      %p419 = scmp.ne.s32.totalorder %s402, %s418
      %p420 = scmp.eq.s32.totalorder %s32, 0
      %p421 = por %p419, %p420
      %p422 = scmp.le.s32.totalorder 1, %s26
      %p423 = scmp.lt.s32.totalorder %s26, 3
      %p424 = pnand %p422, %p423
      %p425 = pneg %p424
      // Predicated region
      $region9: #{tpu_custom_call.1} parent=5 // pred_check
        _
      $region10: #{tpu_custom_call.1} parent=5 // pred_check_branch
        %427 = sbr.rel (%p424) target = $region12
      $region11: #{tpu_custom_call.1} parent=5 // pred_region
        %s428 = ssub.s32 %s26, 1
        // Predicated region
        $region13: #{tpu_custom_call.1} parent=11 // pred_check
          %p429 = pneg %p73
        $region14: #{tpu_custom_call.1} parent=11 // pred_check_branch
          %431 = sbr.rel (%p429) target = $region16
        $region15: #{tpu_custom_call.1} parent=11 // pred_region
          _
        $region16: #{tpu_custom_call.1} parent=11 // pred_fallthru
          _
        // Predicated region
        $region17: #{tpu_custom_call.1} parent=11 // pred_check
          %p432 = pneg %p94
        $region18: #{tpu_custom_call.1} parent=11 // pred_check_branch
          %434 = sbr.rel (%p432) target = $region20
        $region19: #{tpu_custom_call.1} parent=11 // pred_region
          _
        $region20: #{tpu_custom_call.1} parent=11 // pred_fallthru
          _
        // Predicated region
        $region21: #{tpu_custom_call.1} parent=11 // pred_check
          %p435 = pneg %p115
        $region22: #{tpu_custom_call.1} parent=11 // pred_check_branch
          %437 = sbr.rel (%p435) target = $region24
        $region23: #{tpu_custom_call.1} parent=11 // pred_region
          _
        $region24: #{tpu_custom_call.1} parent=11 // pred_fallthru
          _
        // Predicated region
        $region25: #{tpu_custom_call.1} parent=11 // pred_check
          %p438 = pneg %p136
        $region26: #{tpu_custom_call.1} parent=11 // pred_check_branch
          %440 = sbr.rel (%p438) target = $region28
        $region27: #{tpu_custom_call.1} parent=11 // pred_region
          _
        $region28: #{tpu_custom_call.1} parent=11 // pred_fallthru
          _
        // Predicated region
        $region29: #{tpu_custom_call.1} parent=11 // pred_check
          %p441 = pneg %p157
        $region30: #{tpu_custom_call.1} parent=11 // pred_check_branch
          %443 = sbr.rel (%p441) target = $region32
        $region31: #{tpu_custom_call.1} parent=11 // pred_region
          _
        $region32: #{tpu_custom_call.1} parent=11 // pred_fallthru
          _
        // Predicated region
        $region33: #{tpu_custom_call.1} parent=11 // pred_check
          %p444 = pneg %p178
        $region34: #{tpu_custom_call.1} parent=11 // pred_check_branch
          %446 = sbr.rel (%p444) target = $region36
        $region35: #{tpu_custom_call.1} parent=11 // pred_region
          _
        $region36: #{tpu_custom_call.1} parent=11 // pred_fallthru
          _
        // Predicated region
        $region37: #{tpu_custom_call.1} parent=11 // pred_check
          %p447 = pneg %p199
        $region38: #{tpu_custom_call.1} parent=11 // pred_check_branch
          %449 = sbr.rel (%p447) target = $region40
        $region39: #{tpu_custom_call.1} parent=11 // pred_region
          _
        $region40: #{tpu_custom_call.1} parent=11 // pred_fallthru
          _
        // Predicated region
        $region41: #{tpu_custom_call.1} parent=11 // pred_check
          %p450 = pneg %p220
        $region42: #{tpu_custom_call.1} parent=11 // pred_check_branch
          %452 = sbr.rel (%p450) target = $region44
        $region43: #{tpu_custom_call.1} parent=11 // pred_region
          _
        $region44: #{tpu_custom_call.1} parent=11 // pred_fallthru
          _
        // Predicated region
        $region45: #{tpu_custom_call.1} parent=11 // pred_check
          %p453 = pneg %p241
        $region46: #{tpu_custom_call.1} parent=11 // pred_check_branch
          %455 = sbr.rel (%p453) target = $region48
        $region47: #{tpu_custom_call.1} parent=11 // pred_region
          _
        $region48: #{tpu_custom_call.1} parent=11 // pred_fallthru
          _
        // Predicated region
        $region49: #{tpu_custom_call.1} parent=11 // pred_check
          %p456 = pneg %p262
        $region50: #{tpu_custom_call.1} parent=11 // pred_check_branch
          %458 = sbr.rel (%p456) target = $region52
        $region51: #{tpu_custom_call.1} parent=11 // pred_region
          _
        $region52: #{tpu_custom_call.1} parent=11 // pred_fallthru
          _
        // Predicated region
        $region53: #{tpu_custom_call.1} parent=11 // pred_check
          %p459 = pneg %p283
        $region54: #{tpu_custom_call.1} parent=11 // pred_check_branch
          %461 = sbr.rel (%p459) target = $region56
        $region55: #{tpu_custom_call.1} parent=11 // pred_region
          _
        $region56: #{tpu_custom_call.1} parent=11 // pred_fallthru
          _
        // Predicated region
        $region57: #{tpu_custom_call.1} parent=11 // pred_check
          %p462 = pneg %p304
        $region58: #{tpu_custom_call.1} parent=11 // pred_check_branch
          %464 = sbr.rel (%p462) target = $region60
        $region59: #{tpu_custom_call.1} parent=11 // pred_region
          _
        $region60: #{tpu_custom_call.1} parent=11 // pred_fallthru
          _
        // Predicated region
        $region61: #{tpu_custom_call.1} parent=11 // pred_check
          %p465 = pneg %p325
        $region62: #{tpu_custom_call.1} parent=11 // pred_check_branch
          %467 = sbr.rel (%p465) target = $region64
        $region63: #{tpu_custom_call.1} parent=11 // pred_region
          _
        $region64: #{tpu_custom_call.1} parent=11 // pred_fallthru
          _
        // Predicated region
        $region65: #{tpu_custom_call.1} parent=11 // pred_check
          %p468 = pneg %p346
        $region66: #{tpu_custom_call.1} parent=11 // pred_check_branch
          %470 = sbr.rel (%p468) target = $region68
        $region67: #{tpu_custom_call.1} parent=11 // pred_region
          _
        $region68: #{tpu_custom_call.1} parent=11 // pred_fallthru
          _
        // Predicated region
        $region69: #{tpu_custom_call.1} parent=11 // pred_check
          %p471 = pneg %p367
        $region70: #{tpu_custom_call.1} parent=11 // pred_check_branch
          %473 = sbr.rel (%p471) target = $region72
        $region71: #{tpu_custom_call.1} parent=11 // pred_region
          _
        $region72: #{tpu_custom_call.1} parent=11 // pred_fallthru
          _
        // Predicated region
        $region73: #{tpu_custom_call.1} parent=11 // pred_check
          %p474 = pneg %p388
        $region74: #{tpu_custom_call.1} parent=11 // pred_check_branch
          %476 = sbr.rel (%p474) target = $region76
        $region75: #{tpu_custom_call.1} parent=11 // pred_region
          _
        $region76: #{tpu_custom_call.1} parent=11 // pred_fallthru
          _
      $region12: #{tpu_custom_call.1} parent=5 // pred_fallthru
        _
      %p477 = scmp.lt.s32.totalorder %s26, 2
      // Predicated region
      $region77: #{tpu_custom_call.1} parent=5 // pred_check
        %p478 = pneg %p477
      $region78: #{tpu_custom_call.1} parent=5 // pred_check_branch
        %480 = sbr.rel (%p478) target = $region80
      $region79: #{tpu_custom_call.1} parent=5 // pred_region
        // Predicated region
        $region81: #{tpu_custom_call.1} parent=79 // pred_check
          %p481 = pneg %p46
        $region82: #{tpu_custom_call.1} parent=79 // pred_check_branch
          %483 = sbr.rel (%p481) target = $region84
        $region83: #{tpu_custom_call.1} parent=79 // pred_region
          %p484 = scmp.lt.s32.totalorder %s26, 1
          %s485 = scalar_select %p484, %s26, 1
          %s486 = smul.addr %s485, 8
          %s487 = scalar_lea.vmem %s0, %s486
        $region84: #{tpu_custom_call.1} parent=79 // pred_fallthru
          _
      $region80: #{tpu_custom_call.1} parent=5 // pred_fallthru
        _
      %p488 = scmp.le.s32.totalorder 1, %s26
      %p489 = scmp.lt.s32.totalorder %s26, 3
      %p490 = pnand %p488, %p489
      %p491 = pneg %p490
      // Predicated region
      $region85: #{tpu_custom_call.1} parent=5 // pred_check
        _
      $region86: #{tpu_custom_call.1} parent=5 // pred_check_branch
        %493 = sbr.rel (%p490) target = $region88
      $region87: #{tpu_custom_call.1} parent=5 // pred_region
        %s494 = ssub.s32 %s26, 1
        %p495 = scmp.lt.s32.totalorder %s31, 1
        %s496 = scalar_select %p495, %s31, 1
        %s497 = smul.addr %s496, 8
        %s498 = scalar_lea.vmem %s0, %s497
        %p499 = pneg %p52
        %p500 = pneg %p49
        %p501 = pneg %p73
        %p502 = pneg %p70
        %p503 = pneg %p94
        %p504 = pneg %p91
        %p505 = pneg %p115
        %p506 = pneg %p112
        %p507 = pneg %p136
        %p508 = pneg %p133
        %p509 = pneg %p157
        %p510 = pneg %p154
        %p511 = pneg %p178
        %p512 = pneg %p175
        %p513 = pneg %p199
        %p514 = pneg %p196
        %p515 = pneg %p220
        %p516 = pneg %p217
        %p517 = pneg %p241
        %p518 = pneg %p238
        %p519 = pneg %p262
        %p520 = pneg %p259
        %p521 = pneg %p283
        %p522 = pneg %p280
        %p523 = pneg %p304
        %p524 = pneg %p301
        %p525 = pneg %p325
        %p526 = pneg %p322
        %p527 = pneg %p346
        %p528 = pneg %p343
        %p529 = pneg %p367
        %p530 = pneg %p364
        %p531 = pneg %p388
        %p532 = pneg %p385
        %p533 = pneg %p414
        %p534 = pneg %p411
        %s535 = sand.u32 %s401, 1
        %s536 = scalar_lea.sflag [#allocation3], %s535
        %s537 = sand.u32 %s401, 1
        %s538 = smul.addr %s537, 8
        %s539 = scalar_lea.vmem [#allocation2], %s538
        %p540 = scmp.lt.s32.totalorder %s31, 1
        %s541 = scalar_select %p540, %s31, 1
        %s542 = smul.addr %s541, 8
        %s543 = scalar_lea.vmem %s0, %s542
        %v545 = vld [vmem:[%s543] sm:$0xff]
        %v546 = vpack.c.bf16 %v545, %v545
        %v547 = vld [vmem:[%s1] sm:$0xf]
        %v548 = vld [vmem:[%s1 + $0x4] sm:$0xf]
        %v549 = vld [vmem:[%s1 + $0x8] sm:$0xf]
        %v550 = vld [vmem:[%s1 + $0xc] sm:$0xf]
        %v551 = vld [vmem:[%s1 + $0x10] sm:$0xf]
        %v552 = vld [vmem:[%s1 + $0x14] sm:$0xf]
        %v553 = vld [vmem:[%s1 + $0x18] sm:$0xf]
        %v554 = vld [vmem:[%s1 + $0x1c] sm:$0xf]
        %v555 = vld [vmem:[%s1 + $0x20] sm:$0xf]
        %v556 = vld [vmem:[%s1 + $0x24] sm:$0xf]
        %v557 = vld [vmem:[%s1 + $0x28] sm:$0xf]
        %v558 = vld [vmem:[%s1 + $0x2c] sm:$0xf]
        %v559 = vld [vmem:[%s1 + $0x30] sm:$0xf]
        %v560 = vld [vmem:[%s1 + $0x34] sm:$0xf]
        %v561 = vld [vmem:[%s1 + $0x38] sm:$0xf]
        %v562 = vld [vmem:[%s1 + $0x3c] sm:$0xf]
        %v563 = vld [vmem:[%s2] sm:$0x1]
        %v565 = vlaneseq
        %v566 = vshrl.u32 %v565, 7
        %v567 = vsub.s32 0, %v566
        %v568 = vrot.slane %v563, %v567
        %v586 = vunpack.c.l.b16 %v547
        %v587 = vunpack.c.l.b16 %v548
        %v588 = vunpack.c.l.b16 %v549
        %v589 = vunpack.c.l.b16 %v550
        %v590 = vunpack.c.l.b16 %v551
        %v591 = vunpack.c.l.b16 %v552
        %v592 = vunpack.c.l.b16 %v553
        %v593 = vunpack.c.l.b16 %v554
        %v594 = vunpack.c.l.b16 %v555
        %v595 = vunpack.c.l.b16 %v556
        %v596 = vunpack.c.l.b16 %v557
        %v597 = vunpack.c.l.b16 %v558
        %v598 = vunpack.c.l.b16 %v559
        %v599 = vunpack.c.l.b16 %v560
        %v600 = vunpack.c.l.b16 %v561
        %v601 = vunpack.c.l.b16 %v562
        %v602 = vpack.c.b16 %v587, %v586
        %v603 = vpack.c.b16 %v589, %v588
        %v604 = vpack.c.b16 %v591, %v590
        %v605 = vpack.c.b16 %v593, %v592
        %v606 = vpack.c.b16 %v595, %v594
        %v607 = vpack.c.b16 %v597, %v596
        %v608 = vpack.c.b16 %v599, %v598
        %v609 = vpack.c.b16 %v601, %v600
        %618 = vmatprep.subr.bf16.mxu0 0
        %619 = vmatpush1.bf16.msra.mxu0 %v602
        %620 = vmatprep.subr.bf16.mxu0 0
        %621 = vmatpush1.bf16.msra.mxu0 %v603
        %622 = vmatprep.subr.bf16.mxu0 0
        %623 = vmatpush1.bf16.msra.mxu0 %v604
        %624 = vmatprep.subr.bf16.mxu0 0
        %625 = vmatpush1.bf16.msra.mxu0 %v605
        %626 = vmatprep.subr.bf16.mxu0 0
        %627 = vmatpush1.bf16.msra.mxu0 %v606
        %628 = vmatprep.subr.bf16.mxu0 0
        %629 = vmatpush1.bf16.msra.mxu0 %v607
        %630 = vmatprep.subr.bf16.mxu0 0
        %631 = vmatpush1.bf16.msra.mxu0 %v608
        %632 = vmatprep.subr.bf16.mxu0 0
        %633 = vmatpush1.bf16.msra.mxu0 %v609
        %634 = vmatprep.subr.bf16.mxu0 0
        %635 = vmatpush1.bf16.msra.mxu0 0
        %636 = vmatprep.subr.bf16.mxu0 0
        %637 = vmatpush1.bf16.msra.mxu0 0
        %638 = vmatprep.subr.bf16.mxu0 0
        %639 = vmatpush1.bf16.msra.mxu0 0
        %640 = vmatprep.subr.bf16.mxu0 0
        %641 = vmatpush1.bf16.msra.mxu0 0
        %642 = vmatprep.subr.bf16.mxu0 0
        %643 = vmatpush1.bf16.msra.mxu0 0
        %644 = vmatprep.subr.bf16.mxu0 0
        %645 = vmatpush1.bf16.msra.mxu0 0
        %646 = vmatprep.subr.bf16.mxu0 0
        %647 = vmatpush1.bf16.msra.mxu0 0
        %648 = vmatprep.subr.bf16.mxu0 0
        %649 = vmatpush1.bf16.msra.mxu0 0
        %650 = vmatprep.mubr.bf16.mxu0 0
        %651 = vmatmul.mubr.bf16.gmra.mrb[0].mxu0 %v546
        %v652 = vpop.f32.mrb[0].mxu0
        %v653 = vadd.f32 %v568, %v652
        %v654 = vpop.f32.mrb[0].mxu0
        %v655 = vpop.f32.mrb[0].mxu0
        %v656 = vpop.f32.mrb[0].mxu0
        %657 = vdwg.mxu0
        %v658 = vld [vmem:[%s3] sm:$0xf]
        %v659 = vld [vmem:[%s3 + $0x4] sm:$0xf]
        %v660 = vld [vmem:[%s3 + $0x8] sm:$0xf]
        %v661 = vld [vmem:[%s3 + $0xc] sm:$0xf]
        %v662 = vld [vmem:[%s3 + $0x10] sm:$0xf]
        %v663 = vld [vmem:[%s3 + $0x14] sm:$0xf]
        %v664 = vld [vmem:[%s3 + $0x18] sm:$0xf]
        %v665 = vld [vmem:[%s3 + $0x1c] sm:$0xf]
        %v666 = vld [vmem:[%s3 + $0x20] sm:$0xf]
        %v667 = vld [vmem:[%s3 + $0x24] sm:$0xf]
        %v668 = vld [vmem:[%s3 + $0x28] sm:$0xf]
        %v669 = vld [vmem:[%s3 + $0x2c] sm:$0xf]
        %v670 = vld [vmem:[%s3 + $0x30] sm:$0xf]
        %v671 = vld [vmem:[%s3 + $0x34] sm:$0xf]
        %v672 = vld [vmem:[%s3 + $0x38] sm:$0xf]
        %v673 = vld [vmem:[%s3 + $0x3c] sm:$0xf]
        %v674 = vld [vmem:[%s4] sm:$0x1]
        %v676 = vlaneseq
        %v677 = vshrl.u32 %v676, 7
        %v678 = vsub.s32 0, %v677
        %v679 = vrot.slane %v674, %v678
        %v697 = vunpack.c.l.b16 %v658
        %v698 = vunpack.c.l.b16 %v659
        %v699 = vunpack.c.l.b16 %v660
        %v700 = vunpack.c.l.b16 %v661
        %v701 = vunpack.c.l.b16 %v662
        %v702 = vunpack.c.l.b16 %v663
        %v703 = vunpack.c.l.b16 %v664
        %v704 = vunpack.c.l.b16 %v665
        %v705 = vunpack.c.l.b16 %v666
        %v706 = vunpack.c.l.b16 %v667
        %v707 = vunpack.c.l.b16 %v668
        %v708 = vunpack.c.l.b16 %v669
        %v709 = vunpack.c.l.b16 %v670
        %v710 = vunpack.c.l.b16 %v671
        %v711 = vunpack.c.l.b16 %v672
        %v712 = vunpack.c.l.b16 %v673
        %v713 = vpack.c.b16 %v698, %v697
        %v714 = vpack.c.b16 %v700, %v699
        %v715 = vpack.c.b16 %v702, %v701
        %v716 = vpack.c.b16 %v704, %v703
        %v717 = vpack.c.b16 %v706, %v705
        %v718 = vpack.c.b16 %v708, %v707
        %v719 = vpack.c.b16 %v710, %v709
        %v720 = vpack.c.b16 %v712, %v711
        %729 = vmatprep.subr.bf16.mxu0 0
        %730 = vmatpush1.bf16.msra.mxu0 %v713
        %731 = vmatprep.subr.bf16.mxu0 0
        %732 = vmatpush1.bf16.msra.mxu0 %v714
        %733 = vmatprep.subr.bf16.mxu0 0
        %734 = vmatpush1.bf16.msra.mxu0 %v715
        %735 = vmatprep.subr.bf16.mxu0 0
        %736 = vmatpush1.bf16.msra.mxu0 %v716
        %737 = vmatprep.subr.bf16.mxu0 0
        %738 = vmatpush1.bf16.msra.mxu0 %v717
        %739 = vmatprep.subr.bf16.mxu0 0
        %740 = vmatpush1.bf16.msra.mxu0 %v718
        %741 = vmatprep.subr.bf16.mxu0 0
        %742 = vmatpush1.bf16.msra.mxu0 %v719
        %743 = vmatprep.subr.bf16.mxu0 0
        %744 = vmatpush1.bf16.msra.mxu0 %v720
        %745 = vmatprep.subr.bf16.mxu0 0
        %746 = vmatpush1.bf16.msra.mxu0 0
        %747 = vmatprep.subr.bf16.mxu0 0
        %748 = vmatpush1.bf16.msra.mxu0 0
        %749 = vmatprep.subr.bf16.mxu0 0
        %750 = vmatpush1.bf16.msra.mxu0 0
        %751 = vmatprep.subr.bf16.mxu0 0
        %752 = vmatpush1.bf16.msra.mxu0 0
        %753 = vmatprep.subr.bf16.mxu0 0
        %754 = vmatpush1.bf16.msra.mxu0 0
        %755 = vmatprep.subr.bf16.mxu0 0
        %756 = vmatpush1.bf16.msra.mxu0 0
        %757 = vmatprep.subr.bf16.mxu0 0
        %758 = vmatpush1.bf16.msra.mxu0 0
        %759 = vmatprep.subr.bf16.mxu0 0
        %760 = vmatpush1.bf16.msra.mxu0 0
        %761 = vmatprep.mubr.bf16.mxu0 0
        %762 = vmatmul.mubr.bf16.gmra.mrb[0].mxu0 %v546
        %v763 = vpop.f32.mrb[0].mxu0
        %v764 = vadd.f32 %v679, %v763
        %v765 = vpop.f32.mrb[0].mxu0
        %v766 = vpop.f32.mrb[0].mxu0
        %v767 = vpop.f32.mrb[0].mxu0
        %768 = vdwg.mxu0
        %v769 = vld [vmem:[%s5] sm:$0xf]
        %v770 = vld [vmem:[%s5 + $0x4] sm:$0xf]
        %v771 = vld [vmem:[%s5 + $0x8] sm:$0xf]
        %v772 = vld [vmem:[%s5 + $0xc] sm:$0xf]
        %v773 = vld [vmem:[%s5 + $0x10] sm:$0xf]
        %v774 = vld [vmem:[%s5 + $0x14] sm:$0xf]
        %v775 = vld [vmem:[%s5 + $0x18] sm:$0xf]
        %v776 = vld [vmem:[%s5 + $0x1c] sm:$0xf]
        %v777 = vld [vmem:[%s5 + $0x20] sm:$0xf]
        %v778 = vld [vmem:[%s5 + $0x24] sm:$0xf]
        %v779 = vld [vmem:[%s5 + $0x28] sm:$0xf]
        %v780 = vld [vmem:[%s5 + $0x2c] sm:$0xf]
        %v781 = vld [vmem:[%s5 + $0x30] sm:$0xf]
        %v782 = vld [vmem:[%s5 + $0x34] sm:$0xf]
        %v783 = vld [vmem:[%s5 + $0x38] sm:$0xf]
        %v784 = vld [vmem:[%s5 + $0x3c] sm:$0xf]
        %v785 = vld [vmem:[%s6] sm:$0x1]
        %v787 = vlaneseq
        %v788 = vshrl.u32 %v787, 7
        %v789 = vsub.s32 0, %v788
        %v790 = vrot.slane %v785, %v789
        %v808 = vunpack.c.l.b16 %v769
        %v809 = vunpack.c.l.b16 %v770
        %v810 = vunpack.c.l.b16 %v771
        %v811 = vunpack.c.l.b16 %v772
        %v812 = vunpack.c.l.b16 %v773
        %v813 = vunpack.c.l.b16 %v774
        %v814 = vunpack.c.l.b16 %v775
        %v815 = vunpack.c.l.b16 %v776
        %v816 = vunpack.c.l.b16 %v777
        %v817 = vunpack.c.l.b16 %v778
        %v818 = vunpack.c.l.b16 %v779
        %v819 = vunpack.c.l.b16 %v780
        %v820 = vunpack.c.l.b16 %v781
        %v821 = vunpack.c.l.b16 %v782
        %v822 = vunpack.c.l.b16 %v783
        %v823 = vunpack.c.l.b16 %v784
        %v824 = vpack.c.b16 %v809, %v808
        %v825 = vpack.c.b16 %v811, %v810
        %v826 = vpack.c.b16 %v813, %v812
        %v827 = vpack.c.b16 %v815, %v814
        %v828 = vpack.c.b16 %v817, %v816
        %v829 = vpack.c.b16 %v819, %v818
        %v830 = vpack.c.b16 %v821, %v820
        %v831 = vpack.c.b16 %v823, %v822
        %840 = vmatprep.subr.bf16.mxu0 0
        %841 = vmatpush1.bf16.msra.mxu0 %v824
        %842 = vmatprep.subr.bf16.mxu0 0
        %843 = vmatpush1.bf16.msra.mxu0 %v825
        %844 = vmatprep.subr.bf16.mxu0 0
        %845 = vmatpush1.bf16.msra.mxu0 %v826
        %846 = vmatprep.subr.bf16.mxu0 0
        %847 = vmatpush1.bf16.msra.mxu0 %v827
        %848 = vmatprep.subr.bf16.mxu0 0
        %849 = vmatpush1.bf16.msra.mxu0 %v828
        %850 = vmatprep.subr.bf16.mxu0 0
        %851 = vmatpush1.bf16.msra.mxu0 %v829
        %852 = vmatprep.subr.bf16.mxu0 0
        %853 = vmatpush1.bf16.msra.mxu0 %v830
        %854 = vmatprep.subr.bf16.mxu0 0
        %855 = vmatpush1.bf16.msra.mxu0 %v831
        %856 = vmatprep.subr.bf16.mxu0 0
        %857 = vmatpush1.bf16.msra.mxu0 0
        %858 = vmatprep.subr.bf16.mxu0 0
        %859 = vmatpush1.bf16.msra.mxu0 0
        %860 = vmatprep.subr.bf16.mxu0 0
        %861 = vmatpush1.bf16.msra.mxu0 0
        %862 = vmatprep.subr.bf16.mxu0 0
        %863 = vmatpush1.bf16.msra.mxu0 0
        %864 = vmatprep.subr.bf16.mxu0 0
        %865 = vmatpush1.bf16.msra.mxu0 0
        %866 = vmatprep.subr.bf16.mxu0 0
        %867 = vmatpush1.bf16.msra.mxu0 0
        %868 = vmatprep.subr.bf16.mxu0 0
        %869 = vmatpush1.bf16.msra.mxu0 0
        %870 = vmatprep.subr.bf16.mxu0 0
        %871 = vmatpush1.bf16.msra.mxu0 0
        %872 = vmatprep.mubr.bf16.mxu0 0
        %873 = vmatmul.mubr.bf16.gmra.mrb[0].mxu0 %v546
        %v874 = vpop.f32.mrb[0].mxu0
        %v875 = vadd.f32 %v790, %v874
        %v876 = vpop.f32.mrb[0].mxu0
        %v877 = vpop.f32.mrb[0].mxu0
        %v878 = vpop.f32.mrb[0].mxu0
        %879 = vdwg.mxu0
        %881 = vrot.lane.b32.xlu0 %v653, 120
        %v882 = vpop.permute.xlu0 %881
        %884 = vrot.lane.b32.xlu0 %v653, 112
        %v885 = vpop.permute.xlu0 %884
        %887 = vrot.lane.b32.xlu0 %v653, 104
        %v888 = vpop.permute.xlu0 %887
        %v890 = vcombine.low %v653, %v885
        %v891 = vcombine.high %v653, %v885
        %v893 = vunpack.c.l.s4 1983009808
        %v894 = vunpack.c.0.s8 %v893
        %v895 = vlaneseq
        %v896 = vshrl.u32 %v895, 7
        %v897 = vsub.s32 %v894, %v896
        %v898 = vrot.slane %v890, %v897
        %v900 = vunpack.c.l.s4 1983009808
        %v901 = vunpack.c.0.s8 %v900
        %v902 = vlaneseq
        %v903 = vshrl.u32 %v902, 7
        %v904 = vsub.s32 %v901, %v903
        %v905 = vrot.slane %v891, %v904
        %v906 = vcombine.low %v882, %v888
        %v907 = vcombine.high %v882, %v888
        %v909 = vunpack.c.l.s4 1983009808
        %v910 = vunpack.c.0.s8 %v909
        %v911 = vlaneseq
        %v912 = vshrl.u32 %v911, 7
        %v913 = vsub.s32 %v910, %v912
        %v914 = vrot.slane %v906, %v913
        %v916 = vunpack.c.l.s4 1983009808
        %v917 = vunpack.c.0.s8 %v916
        %v918 = vlaneseq
        %v919 = vshrl.u32 %v918, 7
        %v920 = vsub.s32 %v917, %v919
        %v921 = vrot.slane %v907, %v920
        %v922 = vcombine.low %v898, %v914
        %v923 = vcombine.high %v898, %v914
        %v925 = vunpack.c.l.s4 1934713408
        %v926 = vunpack.c.0.s8 %v925
        %v927 = vlaneseq
        %v928 = vshrl.u32 %v927, 7
        %v929 = vsub.s32 %v926, %v928
        %v930 = vrot.slane %v922, %v929
        %v932 = vunpack.c.l.s4 1934713408
        %v933 = vunpack.c.0.s8 %v932
        %v934 = vlaneseq
        %v935 = vshrl.u32 %v934, 7
        %v936 = vsub.s32 %v933, %v935
        %v937 = vrot.slane %v923, %v936
        %v938 = vcombine.low %v905, %v921
        %v939 = vcombine.high %v905, %v921
        %v941 = vunpack.c.l.s4 1934713408
        %v942 = vunpack.c.0.s8 %v941
        %v943 = vlaneseq
        %v944 = vshrl.u32 %v943, 7
        %v945 = vsub.s32 %v942, %v944
        %v946 = vrot.slane %v938, %v945
        %v948 = vunpack.c.l.s4 1934713408
        %v949 = vunpack.c.0.s8 %v948
        %v950 = vlaneseq
        %v951 = vshrl.u32 %v950, 7
        %v952 = vsub.s32 %v949, %v951
        %v953 = vrot.slane %v939, %v952
        %v954 = vcombine.high %v930, 0.0
        %v955 = vcombine.high %v937, 0.0
        %v956 = vcombine.high %v946, 0.0
        %v957 = vcombine.high %v953, 0.0
        %v958 = vpack.c.bf16 %v930, %v930
        %v959 = vpack.c.bf16 %v954, %v954
        %v960 = vpack.c.bf16 %v937, %v937
        %v961 = vpack.c.bf16 %v955, %v955
        %v962 = vpack.c.bf16 %v946, %v946
        %v963 = vpack.c.bf16 %v956, %v956
        %v964 = vpack.c.bf16 %v953, %v953
        %v965 = vpack.c.bf16 %v957, %v957
        %967 = vrot.lane.b32.xlu0 %v764, 120
        %v968 = vpop.permute.xlu0 %967
        %970 = vrot.lane.b32.xlu0 %v764, 112
        %v971 = vpop.permute.xlu0 %970
        %973 = vrot.lane.b32.xlu0 %v764, 104
        %v974 = vpop.permute.xlu0 %973
        %v976 = vcombine.low %v764, %v971
        %v977 = vcombine.high %v764, %v971
        %v979 = vunpack.c.l.s4 1983009808
        %v980 = vunpack.c.0.s8 %v979
        %v981 = vlaneseq
        %v982 = vshrl.u32 %v981, 7
        %v983 = vsub.s32 %v980, %v982
        %v984 = vrot.slane %v976, %v983
        %v986 = vunpack.c.l.s4 1983009808
        %v987 = vunpack.c.0.s8 %v986
        %v988 = vlaneseq
        %v989 = vshrl.u32 %v988, 7
        %v990 = vsub.s32 %v987, %v989
        %v991 = vrot.slane %v977, %v990
        %v992 = vcombine.low %v968, %v974
        %v993 = vcombine.high %v968, %v974
        %v995 = vunpack.c.l.s4 1983009808
        %v996 = vunpack.c.0.s8 %v995
        %v997 = vlaneseq
        %v998 = vshrl.u32 %v997, 7
        %v999 = vsub.s32 %v996, %v998
        %v1000 = vrot.slane %v992, %v999
        %v1002 = vunpack.c.l.s4 1983009808
        %v1003 = vunpack.c.0.s8 %v1002
        %v1004 = vlaneseq
        %v1005 = vshrl.u32 %v1004, 7
        %v1006 = vsub.s32 %v1003, %v1005
        %v1007 = vrot.slane %v993, %v1006
        %v1008 = vcombine.low %v984, %v1000
        %v1009 = vcombine.high %v984, %v1000
        %v1011 = vunpack.c.l.s4 1934713408
        %v1012 = vunpack.c.0.s8 %v1011
        %v1013 = vlaneseq
        %v1014 = vshrl.u32 %v1013, 7
        %v1015 = vsub.s32 %v1012, %v1014
        %v1016 = vrot.slane %v1008, %v1015
        %v1018 = vunpack.c.l.s4 1934713408
        %v1019 = vunpack.c.0.s8 %v1018
        %v1020 = vlaneseq
        %v1021 = vshrl.u32 %v1020, 7
        %v1022 = vsub.s32 %v1019, %v1021
        %v1023 = vrot.slane %v1009, %v1022
        %v1024 = vcombine.low %v991, %v1007
        %v1025 = vcombine.high %v991, %v1007
        %v1027 = vunpack.c.l.s4 1934713408
        %v1028 = vunpack.c.0.s8 %v1027
        %v1029 = vlaneseq
        %v1030 = vshrl.u32 %v1029, 7
        %v1031 = vsub.s32 %v1028, %v1030
        %v1032 = vrot.slane %v1024, %v1031
        %v1034 = vunpack.c.l.s4 1934713408
        %v1035 = vunpack.c.0.s8 %v1034
        %v1036 = vlaneseq
        %v1037 = vshrl.u32 %v1036, 7
        %v1038 = vsub.s32 %v1035, %v1037
        %v1039 = vrot.slane %v1025, %v1038
        %v1040 = vcombine.high %v1016, 0.0
        %v1041 = vcombine.high %v1023, 0.0
        %v1042 = vcombine.high %v1032, 0.0
        %v1043 = vcombine.high %v1039, 0.0
        %v1044 = vpack.c.bf16 %v1016, %v1016
        %v1045 = vpack.c.bf16 %v1040, %v1040
        %v1046 = vpack.c.bf16 %v1023, %v1023
        %v1047 = vpack.c.bf16 %v1041, %v1041
        %v1048 = vpack.c.bf16 %v1032, %v1032
        %v1049 = vpack.c.bf16 %v1042, %v1042
        %v1050 = vpack.c.bf16 %v1039, %v1039
        %v1051 = vpack.c.bf16 %v1043, %v1043
        %1053 = vrot.lane.b32.xlu0 %v875, 120
        %v1054 = vpop.permute.xlu0 %1053
        %1056 = vrot.lane.b32.xlu0 %v875, 112
        %v1057 = vpop.permute.xlu0 %1056
        %1059 = vrot.lane.b32.xlu0 %v875, 104
        %v1060 = vpop.permute.xlu0 %1059
        %v1062 = vcombine.low %v875, %v1057
        %v1063 = vcombine.high %v875, %v1057
        %v1065 = vunpack.c.l.s4 1983009808
        %v1066 = vunpack.c.0.s8 %v1065
        %v1067 = vlaneseq
        %v1068 = vshrl.u32 %v1067, 7
        %v1069 = vsub.s32 %v1066, %v1068
        %v1070 = vrot.slane %v1062, %v1069
        %v1072 = vunpack.c.l.s4 1983009808
        %v1073 = vunpack.c.0.s8 %v1072
        %v1074 = vlaneseq
        %v1075 = vshrl.u32 %v1074, 7
        %v1076 = vsub.s32 %v1073, %v1075
        %v1077 = vrot.slane %v1063, %v1076
        %v1078 = vcombine.low %v1054, %v1060
        %v1079 = vcombine.high %v1054, %v1060
        %v1081 = vunpack.c.l.s4 1983009808
        %v1082 = vunpack.c.0.s8 %v1081
        %v1083 = vlaneseq
        %v1084 = vshrl.u32 %v1083, 7
        %v1085 = vsub.s32 %v1082, %v1084
        %v1086 = vrot.slane %v1078, %v1085
        %v1088 = vunpack.c.l.s4 1983009808
        %v1089 = vunpack.c.0.s8 %v1088
        %v1090 = vlaneseq
        %v1091 = vshrl.u32 %v1090, 7
        %v1092 = vsub.s32 %v1089, %v1091
        %v1093 = vrot.slane %v1079, %v1092
        %v1094 = vcombine.low %v1070, %v1086
        %v1095 = vcombine.high %v1070, %v1086
        %v1097 = vunpack.c.l.s4 1934713408
        %v1098 = vunpack.c.0.s8 %v1097
        %v1099 = vlaneseq
        %v1100 = vshrl.u32 %v1099, 7
        %v1101 = vsub.s32 %v1098, %v1100
        %v1102 = vrot.slane %v1094, %v1101
        %v1104 = vunpack.c.l.s4 1934713408
        %v1105 = vunpack.c.0.s8 %v1104
        %v1106 = vlaneseq
        %v1107 = vshrl.u32 %v1106, 7
        %v1108 = vsub.s32 %v1105, %v1107
        %v1109 = vrot.slane %v1095, %v1108
        %v1110 = vcombine.low %v1077, %v1093
        %v1111 = vcombine.high %v1077, %v1093
        %v1113 = vunpack.c.l.s4 1934713408
        %v1114 = vunpack.c.0.s8 %v1113
        %v1115 = vlaneseq
        %v1116 = vshrl.u32 %v1115, 7
        %v1117 = vsub.s32 %v1114, %v1116
        %v1118 = vrot.slane %v1110, %v1117
        %v1120 = vunpack.c.l.s4 1934713408
        %v1121 = vunpack.c.0.s8 %v1120
        %v1122 = vlaneseq
        %v1123 = vshrl.u32 %v1122, 7
        %v1124 = vsub.s32 %v1121, %v1123
        %v1125 = vrot.slane %v1111, %v1124
        %v1126 = vcombine.high %v1102, 0.0
        %v1127 = vcombine.high %v1109, 0.0
        %v1128 = vcombine.high %v1118, 0.0
        %v1129 = vcombine.high %v1125, 0.0
        %v1130 = vpack.c.bf16 %v1102, %v1102
        %v1131 = vpack.c.bf16 %v1126, %v1126
        %v1132 = vpack.c.bf16 %v1109, %v1109
        %v1133 = vpack.c.bf16 %v1127, %v1127
        %v1134 = vpack.c.bf16 %v1118, %v1118
        %v1135 = vpack.c.bf16 %v1128, %v1128
        %v1136 = vpack.c.bf16 %v1125, %v1125
        %v1137 = vpack.c.bf16 %v1129, %v1129
        %v1138 = vcombine.low %v958, %v962
        %v1140 = vunpack.c.l.s4 1983009808
        %v1141 = vunpack.c.0.s8 %v1140
        %v1142 = vlaneseq
        %v1143 = vshrl.u32 %v1142, 7
        %v1144 = vsub.s32 %v1141, %v1143
        %v1145 = vrot.slane %v1138, %v1144
        %v1146 = vcombine.low %v960, %v964
        %v1148 = vunpack.c.l.s4 1983009808
        %v1149 = vunpack.c.0.s8 %v1148
        %v1150 = vlaneseq
        %v1151 = vshrl.u32 %v1150, 7
        %v1152 = vsub.s32 %v1149, %v1151
        %v1153 = vrot.slane %v1146, %v1152
        %v1154 = vcombine.low %v1145, %v1153
        %v1156 = vunpack.c.l.s4 1934713408
        %v1157 = vunpack.c.0.s8 %v1156
        %v1158 = vlaneseq
        %v1159 = vshrl.u32 %v1158, 7
        %v1160 = vsub.s32 %v1157, %v1159
        %v1161 = vrot.slane %v1154, %v1160
        %v1162 = vcombine.high %v1161, 0
        %v1163 = vcombine.low %v959, %v963
        %v1165 = vunpack.c.l.s4 1983009808
        %v1166 = vunpack.c.0.s8 %v1165
        %v1167 = vlaneseq
        %v1168 = vshrl.u32 %v1167, 7
        %v1169 = vsub.s32 %v1166, %v1168
        %v1170 = vrot.slane %v1163, %v1169
        %v1171 = vcombine.low %v961, %v965
        %v1173 = vunpack.c.l.s4 1983009808
        %v1174 = vunpack.c.0.s8 %v1173
        %v1175 = vlaneseq
        %v1176 = vshrl.u32 %v1175, 7
        %v1177 = vsub.s32 %v1174, %v1176
        %v1178 = vrot.slane %v1171, %v1177
        %v1179 = vcombine.low %v1170, %v1178
        %v1181 = vunpack.c.l.s4 1934713408
        %v1182 = vunpack.c.0.s8 %v1181
        %v1183 = vlaneseq
        %v1184 = vshrl.u32 %v1183, 7
        %v1185 = vsub.s32 %v1182, %v1184
        %v1186 = vrot.slane %v1179, %v1185
        %v1187 = vcombine.high %v1186, 0
        %v1190 = vpack.i.b16 %v1186, %v1161
        %v1191 = vshrl.u32 %v1161, 16
        %v1192 = vshrl.u32 %v1186, 16
        %v1193 = vpack.i.b16 %v1192, %v1191
        %v1196 = vpack.i.b16 %v1187, %v1162
        %v1197 = vshrl.u32 %v1162, 16
        %v1198 = vshrl.u32 %v1187, 16
        %v1199 = vpack.i.b16 %v1198, %v1197
        %1200 = vxpose.xlu0.c.b16.start [1/8] %v1044, 128
        %1201 = vxpose.xlu0.c.b16.cont [2/8] 0, 128
        %1202 = vxpose.xlu0.c.b16.cont [3/8] 0, 128
        %1203 = vxpose.xlu0.c.b16.cont [4/8] 0, 128
        %1204 = vxpose.xlu0.c.b16.cont [5/8] 0, 128
        %1205 = vxpose.xlu0.c.b16.cont [6/8] 0, 128
        %1206 = vxpose.xlu0.c.b16.cont [7/8] 0, 128
        %1207 = vxpose.xlu0.c.b16.end [8/8] 0, 128
        %v1208 = vpop.trf.xlu0
        %v1209 = vpop.trf.xlu0
        %v1210 = vpop.trf.xlu0
        %v1211 = vpop.trf.xlu0
        %v1212 = vpop.trf.xlu0
        %v1213 = vpop.trf.xlu0
        %v1214 = vpop.trf.xlu0
        %v1215 = vpop.trf.xlu0
        %1216 = vxpose.xlu0.c.b16.start [1/8] %v1045, 128
        %1217 = vxpose.xlu0.c.b16.cont [2/8] 0, 128
        %1218 = vxpose.xlu0.c.b16.cont [3/8] 0, 128
        %1219 = vxpose.xlu0.c.b16.cont [4/8] 0, 128
        %1220 = vxpose.xlu0.c.b16.cont [5/8] 0, 128
        %1221 = vxpose.xlu0.c.b16.cont [6/8] 0, 128
        %1222 = vxpose.xlu0.c.b16.cont [7/8] 0, 128
        %1223 = vxpose.xlu0.c.b16.end [8/8] 0, 128
        %v1224 = vpop.trf.xlu0
        %v1225 = vpop.trf.xlu0
        %v1226 = vpop.trf.xlu0
        %v1227 = vpop.trf.xlu0
        %v1228 = vpop.trf.xlu0
        %v1229 = vpop.trf.xlu0
        %v1230 = vpop.trf.xlu0
        %v1231 = vpop.trf.xlu0
        %1232 = vxpose.xlu0.c.b16.start [1/8] %v1046, 128
        %1233 = vxpose.xlu0.c.b16.cont [2/8] 0, 128
        %1234 = vxpose.xlu0.c.b16.cont [3/8] 0, 128
        %1235 = vxpose.xlu0.c.b16.cont [4/8] 0, 128
        %1236 = vxpose.xlu0.c.b16.cont [5/8] 0, 128
        %1237 = vxpose.xlu0.c.b16.cont [6/8] 0, 128
        %1238 = vxpose.xlu0.c.b16.cont [7/8] 0, 128
        %1239 = vxpose.xlu0.c.b16.end [8/8] 0, 128
        %v1240 = vpop.trf.xlu0
        %v1241 = vpop.trf.xlu0
        %v1242 = vpop.trf.xlu0
        %v1243 = vpop.trf.xlu0
        %v1244 = vpop.trf.xlu0
        %v1245 = vpop.trf.xlu0
        %v1246 = vpop.trf.xlu0
        %v1247 = vpop.trf.xlu0
        %1248 = vxpose.xlu0.c.b16.start [1/8] %v1047, 128
        %1249 = vxpose.xlu0.c.b16.cont [2/8] 0, 128
        %1250 = vxpose.xlu0.c.b16.cont [3/8] 0, 128
        %1251 = vxpose.xlu0.c.b16.cont [4/8] 0, 128
        %1252 = vxpose.xlu0.c.b16.cont [5/8] 0, 128
        %1253 = vxpose.xlu0.c.b16.cont [6/8] 0, 128
        %1254 = vxpose.xlu0.c.b16.cont [7/8] 0, 128
        %1255 = vxpose.xlu0.c.b16.end [8/8] 0, 128
        %v1256 = vpop.trf.xlu0
        %v1257 = vpop.trf.xlu0
        %v1258 = vpop.trf.xlu0
        %v1259 = vpop.trf.xlu0
        %v1260 = vpop.trf.xlu0
        %v1261 = vpop.trf.xlu0
        %v1262 = vpop.trf.xlu0
        %v1263 = vpop.trf.xlu0
        %1264 = vxpose.xlu0.c.b16.start [1/8] %v1048, 128
        %1265 = vxpose.xlu0.c.b16.cont [2/8] 0, 128
        %1266 = vxpose.xlu0.c.b16.cont [3/8] 0, 128
        %1267 = vxpose.xlu0.c.b16.cont [4/8] 0, 128
        %1268 = vxpose.xlu0.c.b16.cont [5/8] 0, 128
        %1269 = vxpose.xlu0.c.b16.cont [6/8] 0, 128
        %1270 = vxpose.xlu0.c.b16.cont [7/8] 0, 128
        %1271 = vxpose.xlu0.c.b16.end [8/8] 0, 128
        %v1272 = vpop.trf.xlu0
        %v1273 = vpop.trf.xlu0
        %v1274 = vpop.trf.xlu0
        %v1275 = vpop.trf.xlu0
        %v1276 = vpop.trf.xlu0
        %v1277 = vpop.trf.xlu0
        %v1278 = vpop.trf.xlu0
        %v1279 = vpop.trf.xlu0
        %1280 = vxpose.xlu0.c.b16.start [1/8] %v1049, 128
        %1281 = vxpose.xlu0.c.b16.cont [2/8] 0, 128
        %1282 = vxpose.xlu0.c.b16.cont [3/8] 0, 128
        %1283 = vxpose.xlu0.c.b16.cont [4/8] 0, 128
        %1284 = vxpose.xlu0.c.b16.cont [5/8] 0, 128
        %1285 = vxpose.xlu0.c.b16.cont [6/8] 0, 128
        %1286 = vxpose.xlu0.c.b16.cont [7/8] 0, 128
        %1287 = vxpose.xlu0.c.b16.end [8/8] 0, 128
        %v1288 = vpop.trf.xlu0
        %v1289 = vpop.trf.xlu0
        %v1290 = vpop.trf.xlu0
        %v1291 = vpop.trf.xlu0
        %v1292 = vpop.trf.xlu0
        %v1293 = vpop.trf.xlu0
        %v1294 = vpop.trf.xlu0
        %v1295 = vpop.trf.xlu0
        %1296 = vxpose.xlu0.c.b16.start [1/8] %v1050, 128
        %1297 = vxpose.xlu0.c.b16.cont [2/8] 0, 128
        %1298 = vxpose.xlu0.c.b16.cont [3/8] 0, 128
        %1299 = vxpose.xlu0.c.b16.cont [4/8] 0, 128
        %1300 = vxpose.xlu0.c.b16.cont [5/8] 0, 128
        %1301 = vxpose.xlu0.c.b16.cont [6/8] 0, 128
        %1302 = vxpose.xlu0.c.b16.cont [7/8] 0, 128
        %1303 = vxpose.xlu0.c.b16.end [8/8] 0, 128
        %v1304 = vpop.trf.xlu0
        %v1305 = vpop.trf.xlu0
        %v1306 = vpop.trf.xlu0
        %v1307 = vpop.trf.xlu0
        %v1308 = vpop.trf.xlu0
        %v1309 = vpop.trf.xlu0
        %v1310 = vpop.trf.xlu0
        %v1311 = vpop.trf.xlu0
        %1312 = vxpose.xlu0.c.b16.start [1/8] %v1051, 128
        %1313 = vxpose.xlu0.c.b16.cont [2/8] 0, 128
        %1314 = vxpose.xlu0.c.b16.cont [3/8] 0, 128
        %1315 = vxpose.xlu0.c.b16.cont [4/8] 0, 128
        %1316 = vxpose.xlu0.c.b16.cont [5/8] 0, 128
        %1317 = vxpose.xlu0.c.b16.cont [6/8] 0, 128
        %1318 = vxpose.xlu0.c.b16.cont [7/8] 0, 128
        %1319 = vxpose.xlu0.c.b16.end [8/8] 0, 128
        %v1320 = vpop.trf.xlu0
        %v1321 = vpop.trf.xlu0
        %v1322 = vpop.trf.xlu0
        %v1323 = vpop.trf.xlu0
        %v1324 = vpop.trf.xlu0
        %v1325 = vpop.trf.xlu0
        %v1326 = vpop.trf.xlu0
        %v1327 = vpop.trf.xlu0
        %v1328 = vcombine.low %v1208, %v1272
        %v1330 = vunpack.c.l.s4 1983009808
        %v1331 = vunpack.c.0.s8 %v1330
        %v1332 = vlaneseq
        %v1333 = vshrl.u32 %v1332, 7
        %v1334 = vsub.s32 %v1331, %v1333
        %v1335 = vrot.slane %v1328, %v1334
        %v1336 = vcombine.low %v1240, %v1304
        %v1338 = vunpack.c.l.s4 1983009808
        %v1339 = vunpack.c.0.s8 %v1338
        %v1340 = vlaneseq
        %v1341 = vshrl.u32 %v1340, 7
        %v1342 = vsub.s32 %v1339, %v1341
        %v1343 = vrot.slane %v1336, %v1342
        %v1344 = vcombine.low %v1335, %v1343
        %v1345 = vcombine.high %v1335, %v1343
        %v1347 = vunpack.c.l.s4 1934713408
        %v1348 = vunpack.c.0.s8 %v1347
        %v1349 = vlaneseq
        %v1350 = vshrl.u32 %v1349, 7
        %v1351 = vsub.s32 %v1348, %v1350
        %v1352 = vrot.slane %v1344, %v1351
        %v1354 = vunpack.c.l.s4 1934713408
        %v1355 = vunpack.c.0.s8 %v1354
        %v1356 = vlaneseq
        %v1357 = vshrl.u32 %v1356, 7
        %v1358 = vsub.s32 %v1355, %v1357
        %v1359 = vrot.slane %v1345, %v1358
        %v1360 = vcombine.high %v1352, 0
        %v1361 = vcombine.high %v1359, 0
        %v1362 = vcombine.low %v1224, %v1288
        %v1364 = vunpack.c.l.s4 1983009808
        %v1365 = vunpack.c.0.s8 %v1364
        %v1366 = vlaneseq
        %v1367 = vshrl.u32 %v1366, 7
        %v1368 = vsub.s32 %v1365, %v1367
        %v1369 = vrot.slane %v1362, %v1368
        %v1370 = vcombine.low %v1256, %v1320
        %v1372 = vunpack.c.l.s4 1983009808
        %v1373 = vunpack.c.0.s8 %v1372
        %v1374 = vlaneseq
        %v1375 = vshrl.u32 %v1374, 7
        %v1376 = vsub.s32 %v1373, %v1375
        %v1377 = vrot.slane %v1370, %v1376
        %v1378 = vcombine.low %v1369, %v1377
        %v1379 = vcombine.high %v1369, %v1377
        %v1381 = vunpack.c.l.s4 1934713408
        %v1382 = vunpack.c.0.s8 %v1381
        %v1383 = vlaneseq
        %v1384 = vshrl.u32 %v1383, 7
        %v1385 = vsub.s32 %v1382, %v1384
        %v1386 = vrot.slane %v1378, %v1385
        %v1388 = vunpack.c.l.s4 1934713408
        %v1389 = vunpack.c.0.s8 %v1388
        %v1390 = vlaneseq
        %v1391 = vshrl.u32 %v1390, 7
        %v1392 = vsub.s32 %v1389, %v1391
        %v1393 = vrot.slane %v1379, %v1392
        %v1394 = vcombine.high %v1386, 0
        %v1395 = vcombine.high %v1393, 0
        %v1398 = vpack.i.b16 %v1386, %v1352
        %v1400 = vshrl.u32 %v1352, 16
        %v1401 = vshrl.u32 %v1386, 16
        %v1402 = vpack.i.b16 %v1401, %v1400
        %v1406 = vpack.i.b16 %v1394, %v1360
        %v1408 = vshrl.u32 %v1360, 16
        %v1409 = vshrl.u32 %v1394, 16
        %v1410 = vpack.i.b16 %v1409, %v1408
        %v1414 = vpack.i.b16 %v1393, %v1359
        %v1416 = vshrl.u32 %v1359, 16
        %v1417 = vshrl.u32 %v1393, 16
        %v1418 = vpack.i.b16 %v1417, %v1416
        %v1422 = vpack.i.b16 %v1395, %v1361
        %v1424 = vshrl.u32 %v1361, 16
        %v1425 = vshrl.u32 %v1395, 16
        %v1426 = vpack.i.b16 %v1425, %v1424
        %1428 = vxpose.xlu0.c.b16.start [1/8] %v1398, 128
        %1429 = vxpose.xlu0.c.b16.cont [2/8] 0, 128
        %1430 = vxpose.xlu0.c.b16.cont [3/8] 0, 128
        %1431 = vxpose.xlu0.c.b16.cont [4/8] 0, 128
        %1432 = vxpose.xlu0.c.b16.cont [5/8] 0, 128
        %1433 = vxpose.xlu0.c.b16.cont [6/8] 0, 128
        %1434 = vxpose.xlu0.c.b16.cont [7/8] 0, 128
        %1435 = vxpose.xlu0.c.b16.end [8/8] 0, 128
        %v1436 = vpop.trf.xlu0
        %v1437 = vpop.trf.xlu0
        %v1438 = vpop.trf.xlu0
        %v1439 = vpop.trf.xlu0
        %v1440 = vpop.trf.xlu0
        %v1441 = vpop.trf.xlu0
        %v1442 = vpop.trf.xlu0
        %v1443 = vpop.trf.xlu0
        %1444 = vxpose.xlu0.c.b16.start [1/8] %v1402, 128
        %1445 = vxpose.xlu0.c.b16.cont [2/8] 0, 128
        %1446 = vxpose.xlu0.c.b16.cont [3/8] 0, 128
        %1447 = vxpose.xlu0.c.b16.cont [4/8] 0, 128
        %1448 = vxpose.xlu0.c.b16.cont [5/8] 0, 128
        %1449 = vxpose.xlu0.c.b16.cont [6/8] 0, 128
        %1450 = vxpose.xlu0.c.b16.cont [7/8] 0, 128
        %1451 = vxpose.xlu0.c.b16.end [8/8] 0, 128
        %v1452 = vpop.trf.xlu0
        %v1453 = vpop.trf.xlu0
        %v1454 = vpop.trf.xlu0
        %v1455 = vpop.trf.xlu0
        %v1456 = vpop.trf.xlu0
        %v1457 = vpop.trf.xlu0
        %v1458 = vpop.trf.xlu0
        %v1459 = vpop.trf.xlu0
        %1460 = vxpose.xlu0.c.b16.start [1/8] %v1406, 128
        %1461 = vxpose.xlu0.c.b16.cont [2/8] 0, 128
        %1462 = vxpose.xlu0.c.b16.cont [3/8] 0, 128
        %1463 = vxpose.xlu0.c.b16.cont [4/8] 0, 128
        %1464 = vxpose.xlu0.c.b16.cont [5/8] 0, 128
        %1465 = vxpose.xlu0.c.b16.cont [6/8] 0, 128
        %1466 = vxpose.xlu0.c.b16.cont [7/8] 0, 128
        %1467 = vxpose.xlu0.c.b16.end [8/8] 0, 128
        %v1468 = vpop.trf.xlu0
        %v1469 = vpop.trf.xlu0
        %v1470 = vpop.trf.xlu0
        %v1471 = vpop.trf.xlu0
        %v1472 = vpop.trf.xlu0
        %v1473 = vpop.trf.xlu0
        %v1474 = vpop.trf.xlu0
        %v1475 = vpop.trf.xlu0
        %1476 = vxpose.xlu0.c.b16.start [1/8] %v1410, 128
        %1477 = vxpose.xlu0.c.b16.cont [2/8] 0, 128
        %1478 = vxpose.xlu0.c.b16.cont [3/8] 0, 128
        %1479 = vxpose.xlu0.c.b16.cont [4/8] 0, 128
        %1480 = vxpose.xlu0.c.b16.cont [5/8] 0, 128
        %1481 = vxpose.xlu0.c.b16.cont [6/8] 0, 128
        %1482 = vxpose.xlu0.c.b16.cont [7/8] 0, 128
        %1483 = vxpose.xlu0.c.b16.end [8/8] 0, 128
        %v1484 = vpop.trf.xlu0
        %v1485 = vpop.trf.xlu0
        %v1486 = vpop.trf.xlu0
        %v1487 = vpop.trf.xlu0
        %v1488 = vpop.trf.xlu0
        %v1489 = vpop.trf.xlu0
        %v1490 = vpop.trf.xlu0
        %v1491 = vpop.trf.xlu0
        %1492 = vxpose.xlu0.c.b16.start [1/8] %v1414, 128
        %1493 = vxpose.xlu0.c.b16.cont [2/8] 0, 128
        %1494 = vxpose.xlu0.c.b16.cont [3/8] 0, 128
        %1495 = vxpose.xlu0.c.b16.cont [4/8] 0, 128
        %1496 = vxpose.xlu0.c.b16.cont [5/8] 0, 128
        %1497 = vxpose.xlu0.c.b16.cont [6/8] 0, 128
        %1498 = vxpose.xlu0.c.b16.cont [7/8] 0, 128
        %1499 = vxpose.xlu0.c.b16.end [8/8] 0, 128
        %v1500 = vpop.trf.xlu0
        %v1501 = vpop.trf.xlu0
        %v1502 = vpop.trf.xlu0
        %v1503 = vpop.trf.xlu0
        %v1504 = vpop.trf.xlu0
        %v1505 = vpop.trf.xlu0
        %v1506 = vpop.trf.xlu0
        %v1507 = vpop.trf.xlu0
        %1508 = vxpose.xlu0.c.b16.start [1/8] %v1418, 128
        %1509 = vxpose.xlu0.c.b16.cont [2/8] 0, 128
        %1510 = vxpose.xlu0.c.b16.cont [3/8] 0, 128
        %1511 = vxpose.xlu0.c.b16.cont [4/8] 0, 128
        %1512 = vxpose.xlu0.c.b16.cont [5/8] 0, 128
        %1513 = vxpose.xlu0.c.b16.cont [6/8] 0, 128
        %1514 = vxpose.xlu0.c.b16.cont [7/8] 0, 128
        %1515 = vxpose.xlu0.c.b16.end [8/8] 0, 128
        %v1516 = vpop.trf.xlu0
        %v1517 = vpop.trf.xlu0
        %v1518 = vpop.trf.xlu0
        %v1519 = vpop.trf.xlu0
        %v1520 = vpop.trf.xlu0
        %v1521 = vpop.trf.xlu0
        %v1522 = vpop.trf.xlu0
        %v1523 = vpop.trf.xlu0
        %1524 = vxpose.xlu0.c.b16.start [1/8] %v1422, 128
        %1525 = vxpose.xlu0.c.b16.cont [2/8] 0, 128
        %1526 = vxpose.xlu0.c.b16.cont [3/8] 0, 128
        %1527 = vxpose.xlu0.c.b16.cont [4/8] 0, 128
        %1528 = vxpose.xlu0.c.b16.cont [5/8] 0, 128
        %1529 = vxpose.xlu0.c.b16.cont [6/8] 0, 128
        %1530 = vxpose.xlu0.c.b16.cont [7/8] 0, 128
        %1531 = vxpose.xlu0.c.b16.end [8/8] 0, 128
        %v1532 = vpop.trf.xlu0
        %v1533 = vpop.trf.xlu0
        %v1534 = vpop.trf.xlu0
        %v1535 = vpop.trf.xlu0
        %v1536 = vpop.trf.xlu0
        %v1537 = vpop.trf.xlu0
        %v1538 = vpop.trf.xlu0
        %v1539 = vpop.trf.xlu0
        %1540 = vxpose.xlu0.c.b16.start [1/8] %v1426, 128
        %1541 = vxpose.xlu0.c.b16.cont [2/8] 0, 128
        %1542 = vxpose.xlu0.c.b16.cont [3/8] 0, 128
        %1543 = vxpose.xlu0.c.b16.cont [4/8] 0, 128
        %1544 = vxpose.xlu0.c.b16.cont [5/8] 0, 128
        %1545 = vxpose.xlu0.c.b16.cont [6/8] 0, 128
        %1546 = vxpose.xlu0.c.b16.cont [7/8] 0, 128
        %1547 = vxpose.xlu0.c.b16.end [8/8] 0, 128
        %v1548 = vpop.trf.xlu0
        %v1549 = vpop.trf.xlu0
        %v1550 = vpop.trf.xlu0
        %v1551 = vpop.trf.xlu0
        %v1552 = vpop.trf.xlu0
        %v1553 = vpop.trf.xlu0
        %v1554 = vpop.trf.xlu0
        %v1555 = vpop.trf.xlu0
        %v1556 = vcombine.low %v1436, %v1500
        %v1558 = vunpack.c.l.s4 1983009808
        %v1559 = vunpack.c.0.s8 %v1558
        %v1560 = vlaneseq
        %v1561 = vshrl.u32 %v1560, 7
        %v1562 = vsub.s32 %v1559, %v1561
        %v1563 = vrot.slane %v1556, %v1562
        %v1564 = vcombine.low %v1468, %v1532
        %v1566 = vunpack.c.l.s4 1983009808
        %v1567 = vunpack.c.0.s8 %v1566
        %v1568 = vlaneseq
        %v1569 = vshrl.u32 %v1568, 7
        %v1570 = vsub.s32 %v1567, %v1569
        %v1571 = vrot.slane %v1564, %v1570
        %v1572 = vcombine.low %v1563, %v1571
        %v1574 = vunpack.c.l.s4 1934713408
        %v1575 = vunpack.c.0.s8 %v1574
        %v1576 = vlaneseq
        %v1577 = vshrl.u32 %v1576, 7
        %v1578 = vsub.s32 %v1575, %v1577
        %v1579 = vrot.slane %v1572, %v1578
        %v1580 = vcombine.high %v1579, 0
        %v1581 = vcombine.low %v1452, %v1516
        %v1583 = vunpack.c.l.s4 1983009808
        %v1584 = vunpack.c.0.s8 %v1583
        %v1585 = vlaneseq
        %v1586 = vshrl.u32 %v1585, 7
        %v1587 = vsub.s32 %v1584, %v1586
        %v1588 = vrot.slane %v1581, %v1587
        %v1589 = vcombine.low %v1484, %v1548
        %v1591 = vunpack.c.l.s4 1983009808
        %v1592 = vunpack.c.0.s8 %v1591
        %v1593 = vlaneseq
        %v1594 = vshrl.u32 %v1593, 7
        %v1595 = vsub.s32 %v1592, %v1594
        %v1596 = vrot.slane %v1589, %v1595
        %v1597 = vcombine.low %v1588, %v1596
        %v1599 = vunpack.c.l.s4 1934713408
        %v1600 = vunpack.c.0.s8 %v1599
        %v1601 = vlaneseq
        %v1602 = vshrl.u32 %v1601, 7
        %v1603 = vsub.s32 %v1600, %v1602
        %v1604 = vrot.slane %v1597, %v1603
        %v1605 = vcombine.high %v1604, 0
        %v1608 = vpack.i.b16 %v1604, %v1579
        %v1609 = vshrl.u32 %v1579, 16
        %v1610 = vshrl.u32 %v1604, 16
        %v1611 = vpack.i.b16 %v1610, %v1609
        %v1614 = vpack.i.b16 %v1605, %v1580
        %v1615 = vshrl.u32 %v1580, 16
        %v1616 = vshrl.u32 %v1605, 16
        %v1617 = vpack.i.b16 %v1616, %v1615
        %vm1618 = vcmask 64512
        %v1620 = vsel %vm1618, %v1190, 0
        %vm1622 = vcmask 1043456
        %v1624 = vsel %vm1622, %v1608, 0
        %1626 = vmatprep.subr.bf16.mxu0 0
        %1627 = vmatpush1.bf16.msra.mxu0 %v1624
        %1628 = vmatprep.subr.bf16.mxu0 0
        %1629 = vmatpush1.bf16.msra.mxu0 0
        %1630 = vmatprep.subr.bf16.mxu0 0
        %1631 = vmatpush1.bf16.msra.mxu0 0
        %1632 = vmatprep.subr.bf16.mxu0 0
        %1633 = vmatpush1.bf16.msra.mxu0 0
        %1634 = vmatprep.subr.bf16.mxu0 0
        %1635 = vmatpush1.bf16.msra.mxu0 0
        %1636 = vmatprep.subr.bf16.mxu0 0
        %1637 = vmatpush1.bf16.msra.mxu0 0
        %1638 = vmatprep.subr.bf16.mxu0 0
        %1639 = vmatpush1.bf16.msra.mxu0 0
        %1640 = vmatprep.subr.bf16.mxu0 0
        %1641 = vmatpush1.bf16.msra.mxu0 0
        %1642 = vmatprep.subr.bf16.mxu0 0
        %1643 = vmatpush1.bf16.msra.mxu0 0
        %1644 = vmatprep.subr.bf16.mxu0 0
        %1645 = vmatpush1.bf16.msra.mxu0 0
        %1646 = vmatprep.subr.bf16.mxu0 0
        %1647 = vmatpush1.bf16.msra.mxu0 0
        %1648 = vmatprep.subr.bf16.mxu0 0
        %1649 = vmatpush1.bf16.msra.mxu0 0
        %1650 = vmatprep.subr.bf16.mxu0 0
        %1651 = vmatpush1.bf16.msra.mxu0 0
        %1652 = vmatprep.subr.bf16.mxu0 0
        %1653 = vmatpush1.bf16.msra.mxu0 0
        %1654 = vmatprep.subr.bf16.mxu0 0
        %1655 = vmatpush1.bf16.msra.mxu0 0
        %1656 = vmatprep.subr.bf16.mxu0 0
        %1657 = vmatpush1.bf16.msra.mxu0 0
        %1658 = vmatprep.mubr.bf16.mxu0 0
        %1659 = vmatmul.mubr.bf16.gmra.mrb[0].mxu0 %v1620
        %v1660 = vpop.f32.mrb[0].mxu0
        %v1661 = vadd.f32 0.0, %v1660
        %v1662 = vpop.f32.mrb[0].mxu0
        %v1663 = vpop.f32.mrb[0].mxu0
        %v1664 = vpop.f32.mrb[0].mxu0
        %1665 = vdwg.mxu0
        %v1667 = vsel %vm1618, %v1193, 0
        %v1670 = vsel %vm1622, %v1611, 0
        %1672 = vmatprep.subr.bf16.mxu0 0
        %1673 = vmatpush1.bf16.msra.mxu0 %v1670
        %1674 = vmatprep.subr.bf16.mxu0 0
        %1675 = vmatpush1.bf16.msra.mxu0 0
        %1676 = vmatprep.subr.bf16.mxu0 0
        %1677 = vmatpush1.bf16.msra.mxu0 0
        %1678 = vmatprep.subr.bf16.mxu0 0
        %1679 = vmatpush1.bf16.msra.mxu0 0
        %1680 = vmatprep.subr.bf16.mxu0 0
        %1681 = vmatpush1.bf16.msra.mxu0 0
        %1682 = vmatprep.subr.bf16.mxu0 0
        %1683 = vmatpush1.bf16.msra.mxu0 0
        %1684 = vmatprep.subr.bf16.mxu0 0
        %1685 = vmatpush1.bf16.msra.mxu0 0
        %1686 = vmatprep.subr.bf16.mxu0 0
        %1687 = vmatpush1.bf16.msra.mxu0 0
        %1688 = vmatprep.subr.bf16.mxu0 0
        %1689 = vmatpush1.bf16.msra.mxu0 0
        %1690 = vmatprep.subr.bf16.mxu0 0
        %1691 = vmatpush1.bf16.msra.mxu0 0
        %1692 = vmatprep.subr.bf16.mxu0 0
        %1693 = vmatpush1.bf16.msra.mxu0 0
        %1694 = vmatprep.subr.bf16.mxu0 0
        %1695 = vmatpush1.bf16.msra.mxu0 0
        %1696 = vmatprep.subr.bf16.mxu0 0
        %1697 = vmatpush1.bf16.msra.mxu0 0
        %1698 = vmatprep.subr.bf16.mxu0 0
        %1699 = vmatpush1.bf16.msra.mxu0 0
        %1700 = vmatprep.subr.bf16.mxu0 0
        %1701 = vmatpush1.bf16.msra.mxu0 0
        %1702 = vmatprep.subr.bf16.mxu0 0
        %1703 = vmatpush1.bf16.msra.mxu0 0
        %1704 = vmatprep.mubr.bf16.mxu0 0
        %1705 = vmatmul.mubr.bf16.gmra.mrb[0].mxu0 %v1667
        %v1706 = vpop.f32.mrb[0].mxu0
        %v1707 = vadd.f32 0.0, %v1706
        %v1708 = vpop.f32.mrb[0].mxu0
        %v1709 = vpop.f32.mrb[0].mxu0
        %v1710 = vpop.f32.mrb[0].mxu0
        %1711 = vdwg.mxu0
        %v1713 = vsel %vm1618, %v1196, 0
        %v1716 = vsel %vm1622, %v1614, 0
        %1718 = vmatprep.subr.bf16.mxu0 0
        %1719 = vmatpush1.bf16.msra.mxu0 %v1716
        %1720 = vmatprep.subr.bf16.mxu0 0
        %1721 = vmatpush1.bf16.msra.mxu0 0
        %1722 = vmatprep.subr.bf16.mxu0 0
        %1723 = vmatpush1.bf16.msra.mxu0 0
        %1724 = vmatprep.subr.bf16.mxu0 0
        %1725 = vmatpush1.bf16.msra.mxu0 0
        %1726 = vmatprep.subr.bf16.mxu0 0
        %1727 = vmatpush1.bf16.msra.mxu0 0
        %1728 = vmatprep.subr.bf16.mxu0 0
        %1729 = vmatpush1.bf16.msra.mxu0 0
        %1730 = vmatprep.subr.bf16.mxu0 0
        %1731 = vmatpush1.bf16.msra.mxu0 0
        %1732 = vmatprep.subr.bf16.mxu0 0
        %1733 = vmatpush1.bf16.msra.mxu0 0
        %1734 = vmatprep.subr.bf16.mxu0 0
        %1735 = vmatpush1.bf16.msra.mxu0 0
        %1736 = vmatprep.subr.bf16.mxu0 0
        %1737 = vmatpush1.bf16.msra.mxu0 0
        %1738 = vmatprep.subr.bf16.mxu0 0
        %1739 = vmatpush1.bf16.msra.mxu0 0
        %1740 = vmatprep.subr.bf16.mxu0 0
        %1741 = vmatpush1.bf16.msra.mxu0 0
        %1742 = vmatprep.subr.bf16.mxu0 0
        %1743 = vmatpush1.bf16.msra.mxu0 0
        %1744 = vmatprep.subr.bf16.mxu0 0
        %1745 = vmatpush1.bf16.msra.mxu0 0
        %1746 = vmatprep.subr.bf16.mxu0 0
        %1747 = vmatpush1.bf16.msra.mxu0 0
        %1748 = vmatprep.subr.bf16.mxu0 0
        %1749 = vmatpush1.bf16.msra.mxu0 0
        %1750 = vmatprep.mubr.bf16.mxu0 0
        %1751 = vmatmul.mubr.bf16.gmra.mrb[0].mxu0 %v1713
        %v1752 = vpop.f32.mrb[0].mxu0
        %v1753 = vadd.f32 0.0, %v1752
        %v1754 = vpop.f32.mrb[0].mxu0
        %v1755 = vpop.f32.mrb[0].mxu0
        %v1756 = vpop.f32.mrb[0].mxu0
        %1757 = vdwg.mxu0
        %v1759 = vsel %vm1618, %v1199, 0
        %v1762 = vsel %vm1622, %v1617, 0
        %1764 = vmatprep.subr.bf16.mxu0 0
        %1765 = vmatpush1.bf16.msra.mxu0 %v1762
        %1766 = vmatprep.subr.bf16.mxu0 0
        %1767 = vmatpush1.bf16.msra.mxu0 0
        %1768 = vmatprep.subr.bf16.mxu0 0
        %1769 = vmatpush1.bf16.msra.mxu0 0
        %1770 = vmatprep.subr.bf16.mxu0 0
        %1771 = vmatpush1.bf16.msra.mxu0 0
        %1772 = vmatprep.subr.bf16.mxu0 0
        %1773 = vmatpush1.bf16.msra.mxu0 0
        %1774 = vmatprep.subr.bf16.mxu0 0
        %1775 = vmatpush1.bf16.msra.mxu0 0
        %1776 = vmatprep.subr.bf16.mxu0 0
        %1777 = vmatpush1.bf16.msra.mxu0 0
        %1778 = vmatprep.subr.bf16.mxu0 0
        %1779 = vmatpush1.bf16.msra.mxu0 0
        %1780 = vmatprep.subr.bf16.mxu0 0
        %1781 = vmatpush1.bf16.msra.mxu0 0
        %1782 = vmatprep.subr.bf16.mxu0 0
        %1783 = vmatpush1.bf16.msra.mxu0 0
        %1784 = vmatprep.subr.bf16.mxu0 0
        %1785 = vmatpush1.bf16.msra.mxu0 0
        %1786 = vmatprep.subr.bf16.mxu0 0
        %1787 = vmatpush1.bf16.msra.mxu0 0
        %1788 = vmatprep.subr.bf16.mxu0 0
        %1789 = vmatpush1.bf16.msra.mxu0 0
        %1790 = vmatprep.subr.bf16.mxu0 0
        %1791 = vmatpush1.bf16.msra.mxu0 0
        %1792 = vmatprep.subr.bf16.mxu0 0
        %1793 = vmatpush1.bf16.msra.mxu0 0
        %1794 = vmatprep.subr.bf16.mxu0 0
        %1795 = vmatpush1.bf16.msra.mxu0 0
        %1796 = vmatprep.mubr.bf16.mxu0 0
        %1797 = vmatmul.mubr.bf16.gmra.mrb[0].mxu0 %v1759
        %v1798 = vpop.f32.mrb[0].mxu0
        %v1799 = vadd.f32 0.0, %v1798
        %v1800 = vpop.f32.mrb[0].mxu0
        %v1801 = vpop.f32.mrb[0].mxu0
        %v1802 = vpop.f32.mrb[0].mxu0
        %1803 = vdwg.mxu0
        %v1804 = vsel %vm1618, %v1661, -inf
        %1805 = vmax.xlane.f32.xlu0 %v1804
        %v1806 = vpop.xlane.xlu0 %1805
        %v1807 = vsel %vm1618, %v1707, -inf
        %1808 = vmax.xlane.f32.xlu0 %v1807
        %v1809 = vpop.xlane.xlu0 %1808
        %v1810 = vsel %vm1618, %v1753, -inf
        %1811 = vmax.xlane.f32.xlu0 %v1810
        %v1812 = vpop.xlane.xlu0 %1811
        %v1813 = vsel %vm1618, %v1799, -inf
        %1814 = vmax.xlane.f32.xlu0 %v1813
        %v1815 = vpop.xlane.xlu0 %1814
        %v1816 = vsub.f32 %v1661, %v1806
        %v1817 = vsub.f32 %v1707, %v1809
        %v1818 = vsub.f32 %v1753, %v1812
        %v1819 = vsub.f32 %v1799, %v1815
        %v1820 = vmul.f32 %v1816, 1.442695
        %v1821 = vpow.pop %v1820
        %v1822 = vmul.f32 %v1817, 1.442695
        %v1823 = vpow.pop %v1822
        %v1824 = vmul.f32 %v1818, 1.442695
        %v1825 = vpow.pop %v1824
        %v1826 = vmul.f32 %v1819, 1.442695
        %v1827 = vpow.pop %v1826
        %v1828 = vsel %vm1618, %v1821, 0.0
        %1829 = vadd.xlane.f32.xlu0 %v1828
        %v1830 = vpop.xlane.xlu0 %1829
        %v1831 = vsel %vm1618, %v1823, 0.0
        %1832 = vadd.xlane.f32.xlu0 %v1831
        %v1833 = vpop.xlane.xlu0 %1832
        %v1834 = vsel %vm1618, %v1825, 0.0
        %1835 = vadd.xlane.f32.xlu0 %v1834
        %v1836 = vpop.xlane.xlu0 %1835
        %v1837 = vsel %vm1618, %v1827, 0.0
        %1838 = vadd.xlane.f32.xlu0 %v1837
        %v1839 = vpop.xlane.xlu0 %1838
        %v1840 = vrcp.pop %v1830
        %v1841 = vrcp.pop %v1833
        %v1842 = vrcp.pop %v1836
        %v1843 = vrcp.pop %v1839
        %v1844 = vmul.f32 %v1821, %v1840
        %v1845 = vmul.f32 %v1823, %v1841
        %v1846 = vmul.f32 %v1825, %v1842
        %v1847 = vmul.f32 %v1827, %v1843
        %v1848 = vpack.c.bf16 %v1844, %v1844
        %v1849 = vpack.c.bf16 %v1845, %v1845
        %v1850 = vpack.c.bf16 %v1846, %v1846
        %v1851 = vpack.c.bf16 %v1847, %v1847
        %1852 = vxpose.xlu0.c.b16.start [1/8] %v1130, 128
        %1853 = vxpose.xlu0.c.b16.cont [2/8] 0, 128
        %1854 = vxpose.xlu0.c.b16.cont [3/8] 0, 128
        %1855 = vxpose.xlu0.c.b16.cont [4/8] 0, 128
        %1856 = vxpose.xlu0.c.b16.cont [5/8] 0, 128
        %1857 = vxpose.xlu0.c.b16.cont [6/8] 0, 128
        %1858 = vxpose.xlu0.c.b16.cont [7/8] 0, 128
        %1859 = vxpose.xlu0.c.b16.end [8/8] 0, 128
        %v1860 = vpop.trf.xlu0
        %v1861 = vpop.trf.xlu0
        %v1862 = vpop.trf.xlu0
        %v1863 = vpop.trf.xlu0
        %v1864 = vpop.trf.xlu0
        %v1865 = vpop.trf.xlu0
        %v1866 = vpop.trf.xlu0
        %v1867 = vpop.trf.xlu0
        %1868 = vxpose.xlu0.c.b16.start [1/8] %v1131, 128
        %1869 = vxpose.xlu0.c.b16.cont [2/8] 0, 128
        %1870 = vxpose.xlu0.c.b16.cont [3/8] 0, 128
        %1871 = vxpose.xlu0.c.b16.cont [4/8] 0, 128
        %1872 = vxpose.xlu0.c.b16.cont [5/8] 0, 128
        %1873 = vxpose.xlu0.c.b16.cont [6/8] 0, 128
        %1874 = vxpose.xlu0.c.b16.cont [7/8] 0, 128
        %1875 = vxpose.xlu0.c.b16.end [8/8] 0, 128
        %v1876 = vpop.trf.xlu0
        %v1877 = vpop.trf.xlu0
        %v1878 = vpop.trf.xlu0
        %v1879 = vpop.trf.xlu0
        %v1880 = vpop.trf.xlu0
        %v1881 = vpop.trf.xlu0
        %v1882 = vpop.trf.xlu0
        %v1883 = vpop.trf.xlu0
        %1884 = vxpose.xlu0.c.b16.start [1/8] %v1132, 128
        %1885 = vxpose.xlu0.c.b16.cont [2/8] 0, 128
        %1886 = vxpose.xlu0.c.b16.cont [3/8] 0, 128
        %1887 = vxpose.xlu0.c.b16.cont [4/8] 0, 128
        %1888 = vxpose.xlu0.c.b16.cont [5/8] 0, 128
        %1889 = vxpose.xlu0.c.b16.cont [6/8] 0, 128
        %1890 = vxpose.xlu0.c.b16.cont [7/8] 0, 128
        %1891 = vxpose.xlu0.c.b16.end [8/8] 0, 128
        %v1892 = vpop.trf.xlu0
        %v1893 = vpop.trf.xlu0
        %v1894 = vpop.trf.xlu0
        %v1895 = vpop.trf.xlu0
        %v1896 = vpop.trf.xlu0
        %v1897 = vpop.trf.xlu0
        %v1898 = vpop.trf.xlu0
        %v1899 = vpop.trf.xlu0
        %1900 = vxpose.xlu0.c.b16.start [1/8] %v1133, 128
        %1901 = vxpose.xlu0.c.b16.cont [2/8] 0, 128
        %1902 = vxpose.xlu0.c.b16.cont [3/8] 0, 128
        %1903 = vxpose.xlu0.c.b16.cont [4/8] 0, 128
        %1904 = vxpose.xlu0.c.b16.cont [5/8] 0, 128
        %1905 = vxpose.xlu0.c.b16.cont [6/8] 0, 128
        %1906 = vxpose.xlu0.c.b16.cont [7/8] 0, 128
        %1907 = vxpose.xlu0.c.b16.end [8/8] 0, 128
        %v1908 = vpop.trf.xlu0
        %v1909 = vpop.trf.xlu0
        %v1910 = vpop.trf.xlu0
        %v1911 = vpop.trf.xlu0
        %v1912 = vpop.trf.xlu0
        %v1913 = vpop.trf.xlu0
        %v1914 = vpop.trf.xlu0
        %v1915 = vpop.trf.xlu0
        %1916 = vxpose.xlu0.c.b16.start [1/8] %v1134, 128
        %1917 = vxpose.xlu0.c.b16.cont [2/8] 0, 128
        %1918 = vxpose.xlu0.c.b16.cont [3/8] 0, 128
        %1919 = vxpose.xlu0.c.b16.cont [4/8] 0, 128
        %1920 = vxpose.xlu0.c.b16.cont [5/8] 0, 128
        %1921 = vxpose.xlu0.c.b16.cont [6/8] 0, 128
        %1922 = vxpose.xlu0.c.b16.cont [7/8] 0, 128
        %1923 = vxpose.xlu0.c.b16.end [8/8] 0, 128
        %v1924 = vpop.trf.xlu0
        %v1925 = vpop.trf.xlu0
        %v1926 = vpop.trf.xlu0
        %v1927 = vpop.trf.xlu0
        %v1928 = vpop.trf.xlu0
        %v1929 = vpop.trf.xlu0
        %v1930 = vpop.trf.xlu0
        %v1931 = vpop.trf.xlu0
        %1932 = vxpose.xlu0.c.b16.start [1/8] %v1135, 128
        %1933 = vxpose.xlu0.c.b16.cont [2/8] 0, 128
        %1934 = vxpose.xlu0.c.b16.cont [3/8] 0, 128
        %1935 = vxpose.xlu0.c.b16.cont [4/8] 0, 128
        %1936 = vxpose.xlu0.c.b16.cont [5/8] 0, 128
        %1937 = vxpose.xlu0.c.b16.cont [6/8] 0, 128
        %1938 = vxpose.xlu0.c.b16.cont [7/8] 0, 128
        %1939 = vxpose.xlu0.c.b16.end [8/8] 0, 128
        %v1940 = vpop.trf.xlu0
        %v1941 = vpop.trf.xlu0
        %v1942 = vpop.trf.xlu0
        %v1943 = vpop.trf.xlu0
        %v1944 = vpop.trf.xlu0
        %v1945 = vpop.trf.xlu0
        %v1946 = vpop.trf.xlu0
        %v1947 = vpop.trf.xlu0
        %1948 = vxpose.xlu0.c.b16.start [1/8] %v1136, 128
        %1949 = vxpose.xlu0.c.b16.cont [2/8] 0, 128
        %1950 = vxpose.xlu0.c.b16.cont [3/8] 0, 128
        %1951 = vxpose.xlu0.c.b16.cont [4/8] 0, 128
        %1952 = vxpose.xlu0.c.b16.cont [5/8] 0, 128
        %1953 = vxpose.xlu0.c.b16.cont [6/8] 0, 128
        %1954 = vxpose.xlu0.c.b16.cont [7/8] 0, 128
        %1955 = vxpose.xlu0.c.b16.end [8/8] 0, 128
        %v1956 = vpop.trf.xlu0
        %v1957 = vpop.trf.xlu0
        %v1958 = vpop.trf.xlu0
        %v1959 = vpop.trf.xlu0
        %v1960 = vpop.trf.xlu0
        %v1961 = vpop.trf.xlu0
        %v1962 = vpop.trf.xlu0
        %v1963 = vpop.trf.xlu0
        %1964 = vxpose.xlu0.c.b16.start [1/8] %v1137, 128
        %1965 = vxpose.xlu0.c.b16.cont [2/8] 0, 128
        %1966 = vxpose.xlu0.c.b16.cont [3/8] 0, 128
        %1967 = vxpose.xlu0.c.b16.cont [4/8] 0, 128
        %1968 = vxpose.xlu0.c.b16.cont [5/8] 0, 128
        %1969 = vxpose.xlu0.c.b16.cont [6/8] 0, 128
        %1970 = vxpose.xlu0.c.b16.cont [7/8] 0, 128
        %1971 = vxpose.xlu0.c.b16.end [8/8] 0, 128
        %v1972 = vpop.trf.xlu0
        %v1973 = vpop.trf.xlu0
        %v1974 = vpop.trf.xlu0
        %v1975 = vpop.trf.xlu0
        %v1976 = vpop.trf.xlu0
        %v1977 = vpop.trf.xlu0
        %v1978 = vpop.trf.xlu0
        %v1979 = vpop.trf.xlu0
        %v1980 = vcombine.low %v1860, %v1924
        %v1982 = vunpack.c.l.s4 1983009808
        %v1983 = vunpack.c.0.s8 %v1982
        %v1984 = vlaneseq
        %v1985 = vshrl.u32 %v1984, 7
        %v1986 = vsub.s32 %v1983, %v1985
        %v1987 = vrot.slane %v1980, %v1986
        %v1988 = vcombine.low %v1892, %v1956
        %v1990 = vunpack.c.l.s4 1983009808
        %v1991 = vunpack.c.0.s8 %v1990
        %v1992 = vlaneseq
        %v1993 = vshrl.u32 %v1992, 7
        %v1994 = vsub.s32 %v1991, %v1993
        %v1995 = vrot.slane %v1988, %v1994
        %v1996 = vcombine.low %v1987, %v1995
        %v1997 = vcombine.high %v1987, %v1995
        %v1999 = vunpack.c.l.s4 1934713408
        %v2000 = vunpack.c.0.s8 %v1999
        %v2001 = vlaneseq
        %v2002 = vshrl.u32 %v2001, 7
        %v2003 = vsub.s32 %v2000, %v2002
        %v2004 = vrot.slane %v1996, %v2003
        %v2006 = vunpack.c.l.s4 1934713408
        %v2007 = vunpack.c.0.s8 %v2006
        %v2008 = vlaneseq
        %v2009 = vshrl.u32 %v2008, 7
        %v2010 = vsub.s32 %v2007, %v2009
        %v2011 = vrot.slane %v1997, %v2010
        %v2012 = vcombine.high %v2004, 0
        %v2013 = vcombine.high %v2011, 0
        %v2014 = vcombine.low %v1876, %v1940
        %v2016 = vunpack.c.l.s4 1983009808
        %v2017 = vunpack.c.0.s8 %v2016
        %v2018 = vlaneseq
        %v2019 = vshrl.u32 %v2018, 7
        %v2020 = vsub.s32 %v2017, %v2019
        %v2021 = vrot.slane %v2014, %v2020
        %v2022 = vcombine.low %v1908, %v1972
        %v2024 = vunpack.c.l.s4 1983009808
        %v2025 = vunpack.c.0.s8 %v2024
        %v2026 = vlaneseq
        %v2027 = vshrl.u32 %v2026, 7
        %v2028 = vsub.s32 %v2025, %v2027
        %v2029 = vrot.slane %v2022, %v2028
        %v2030 = vcombine.low %v2021, %v2029
        %v2031 = vcombine.high %v2021, %v2029
        %v2033 = vunpack.c.l.s4 1934713408
        %v2034 = vunpack.c.0.s8 %v2033
        %v2035 = vlaneseq
        %v2036 = vshrl.u32 %v2035, 7
        %v2037 = vsub.s32 %v2034, %v2036
        %v2038 = vrot.slane %v2030, %v2037
        %v2040 = vunpack.c.l.s4 1934713408
        %v2041 = vunpack.c.0.s8 %v2040
        %v2042 = vlaneseq
        %v2043 = vshrl.u32 %v2042, 7
        %v2044 = vsub.s32 %v2041, %v2043
        %v2045 = vrot.slane %v2031, %v2044
        %v2046 = vcombine.high %v2038, 0
        %v2047 = vcombine.high %v2045, 0
        %v2050 = vpack.i.b16 %v2038, %v2004
        %v2052 = vshrl.u32 %v2004, 16
        %v2053 = vshrl.u32 %v2038, 16
        %v2054 = vpack.i.b16 %v2053, %v2052
        %v2058 = vpack.i.b16 %v2046, %v2012
        %v2060 = vshrl.u32 %v2012, 16
        %v2061 = vshrl.u32 %v2046, 16
        %v2062 = vpack.i.b16 %v2061, %v2060
        %v2066 = vpack.i.b16 %v2045, %v2011
        %v2068 = vshrl.u32 %v2011, 16
        %v2069 = vshrl.u32 %v2045, 16
        %v2070 = vpack.i.b16 %v2069, %v2068
        %v2074 = vpack.i.b16 %v2047, %v2013
        %v2076 = vshrl.u32 %v2013, 16
        %v2077 = vshrl.u32 %v2047, 16
        %v2078 = vpack.i.b16 %v2077, %v2076
        %2080 = vxpose.xlu0.c.b16.start [1/8] %v2050, 128
        %2081 = vxpose.xlu0.c.b16.cont [2/8] 0, 128
        %2082 = vxpose.xlu0.c.b16.cont [3/8] 0, 128
        %2083 = vxpose.xlu0.c.b16.cont [4/8] 0, 128
        %2084 = vxpose.xlu0.c.b16.cont [5/8] 0, 128
        %2085 = vxpose.xlu0.c.b16.cont [6/8] 0, 128
        %2086 = vxpose.xlu0.c.b16.cont [7/8] 0, 128
        %2087 = vxpose.xlu0.c.b16.end [8/8] 0, 128
        %v2088 = vpop.trf.xlu0
        %v2089 = vpop.trf.xlu0
        %v2090 = vpop.trf.xlu0
        %v2091 = vpop.trf.xlu0
        %v2092 = vpop.trf.xlu0
        %v2093 = vpop.trf.xlu0
        %v2094 = vpop.trf.xlu0
        %v2095 = vpop.trf.xlu0
        %2096 = vxpose.xlu0.c.b16.start [1/8] %v2054, 128
        %2097 = vxpose.xlu0.c.b16.cont [2/8] 0, 128
        %2098 = vxpose.xlu0.c.b16.cont [3/8] 0, 128
        %2099 = vxpose.xlu0.c.b16.cont [4/8] 0, 128
        %2100 = vxpose.xlu0.c.b16.cont [5/8] 0, 128
        %2101 = vxpose.xlu0.c.b16.cont [6/8] 0, 128
        %2102 = vxpose.xlu0.c.b16.cont [7/8] 0, 128
        %2103 = vxpose.xlu0.c.b16.end [8/8] 0, 128
        %v2104 = vpop.trf.xlu0
        %v2105 = vpop.trf.xlu0
        %v2106 = vpop.trf.xlu0
        %v2107 = vpop.trf.xlu0
        %v2108 = vpop.trf.xlu0
        %v2109 = vpop.trf.xlu0
        %v2110 = vpop.trf.xlu0
        %v2111 = vpop.trf.xlu0
        %2112 = vxpose.xlu0.c.b16.start [1/8] %v2058, 128
        %2113 = vxpose.xlu0.c.b16.cont [2/8] 0, 128
        %2114 = vxpose.xlu0.c.b16.cont [3/8] 0, 128
        %2115 = vxpose.xlu0.c.b16.cont [4/8] 0, 128
        %2116 = vxpose.xlu0.c.b16.cont [5/8] 0, 128
        %2117 = vxpose.xlu0.c.b16.cont [6/8] 0, 128
        %2118 = vxpose.xlu0.c.b16.cont [7/8] 0, 128
        %2119 = vxpose.xlu0.c.b16.end [8/8] 0, 128
        %v2120 = vpop.trf.xlu0
        %v2121 = vpop.trf.xlu0
        %v2122 = vpop.trf.xlu0
        %v2123 = vpop.trf.xlu0
        %v2124 = vpop.trf.xlu0
        %v2125 = vpop.trf.xlu0
        %v2126 = vpop.trf.xlu0
        %v2127 = vpop.trf.xlu0
        %2128 = vxpose.xlu0.c.b16.start [1/8] %v2062, 128
        %2129 = vxpose.xlu0.c.b16.cont [2/8] 0, 128
        %2130 = vxpose.xlu0.c.b16.cont [3/8] 0, 128
        %2131 = vxpose.xlu0.c.b16.cont [4/8] 0, 128
        %2132 = vxpose.xlu0.c.b16.cont [5/8] 0, 128
        %2133 = vxpose.xlu0.c.b16.cont [6/8] 0, 128
        %2134 = vxpose.xlu0.c.b16.cont [7/8] 0, 128
        %2135 = vxpose.xlu0.c.b16.end [8/8] 0, 128
        %v2136 = vpop.trf.xlu0
        %v2137 = vpop.trf.xlu0
        %v2138 = vpop.trf.xlu0
        %v2139 = vpop.trf.xlu0
        %v2140 = vpop.trf.xlu0
        %v2141 = vpop.trf.xlu0
        %v2142 = vpop.trf.xlu0
        %v2143 = vpop.trf.xlu0
        %2144 = vxpose.xlu0.c.b16.start [1/8] %v2066, 128
        %2145 = vxpose.xlu0.c.b16.cont [2/8] 0, 128
        %2146 = vxpose.xlu0.c.b16.cont [3/8] 0, 128
        %2147 = vxpose.xlu0.c.b16.cont [4/8] 0, 128
        %2148 = vxpose.xlu0.c.b16.cont [5/8] 0, 128
        %2149 = vxpose.xlu0.c.b16.cont [6/8] 0, 128
        %2150 = vxpose.xlu0.c.b16.cont [7/8] 0, 128
        %2151 = vxpose.xlu0.c.b16.end [8/8] 0, 128
        %v2152 = vpop.trf.xlu0
        %v2153 = vpop.trf.xlu0
        %v2154 = vpop.trf.xlu0
        %v2155 = vpop.trf.xlu0
        %v2156 = vpop.trf.xlu0
        %v2157 = vpop.trf.xlu0
        %v2158 = vpop.trf.xlu0
        %v2159 = vpop.trf.xlu0
        %2160 = vxpose.xlu0.c.b16.start [1/8] %v2070, 128
        %2161 = vxpose.xlu0.c.b16.cont [2/8] 0, 128
        %2162 = vxpose.xlu0.c.b16.cont [3/8] 0, 128
        %2163 = vxpose.xlu0.c.b16.cont [4/8] 0, 128
        %2164 = vxpose.xlu0.c.b16.cont [5/8] 0, 128
        %2165 = vxpose.xlu0.c.b16.cont [6/8] 0, 128
        %2166 = vxpose.xlu0.c.b16.cont [7/8] 0, 128
        %2167 = vxpose.xlu0.c.b16.end [8/8] 0, 128
        %v2168 = vpop.trf.xlu0
        %v2169 = vpop.trf.xlu0
        %v2170 = vpop.trf.xlu0
        %v2171 = vpop.trf.xlu0
        %v2172 = vpop.trf.xlu0
        %v2173 = vpop.trf.xlu0
        %v2174 = vpop.trf.xlu0
        %v2175 = vpop.trf.xlu0
        %2176 = vxpose.xlu0.c.b16.start [1/8] %v2074, 128
        %2177 = vxpose.xlu0.c.b16.cont [2/8] 0, 128
        %2178 = vxpose.xlu0.c.b16.cont [3/8] 0, 128
        %2179 = vxpose.xlu0.c.b16.cont [4/8] 0, 128
        %2180 = vxpose.xlu0.c.b16.cont [5/8] 0, 128
        %2181 = vxpose.xlu0.c.b16.cont [6/8] 0, 128
        %2182 = vxpose.xlu0.c.b16.cont [7/8] 0, 128
        %2183 = vxpose.xlu0.c.b16.end [8/8] 0, 128
        %v2184 = vpop.trf.xlu0
        %v2185 = vpop.trf.xlu0
        %v2186 = vpop.trf.xlu0
        %v2187 = vpop.trf.xlu0
        %v2188 = vpop.trf.xlu0
        %v2189 = vpop.trf.xlu0
        %v2190 = vpop.trf.xlu0
        %v2191 = vpop.trf.xlu0
        %2192 = vxpose.xlu0.c.b16.start [1/8] %v2078, 128
        %2193 = vxpose.xlu0.c.b16.cont [2/8] 0, 128
        %2194 = vxpose.xlu0.c.b16.cont [3/8] 0, 128
        %2195 = vxpose.xlu0.c.b16.cont [4/8] 0, 128
        %2196 = vxpose.xlu0.c.b16.cont [5/8] 0, 128
        %2197 = vxpose.xlu0.c.b16.cont [6/8] 0, 128
        %2198 = vxpose.xlu0.c.b16.cont [7/8] 0, 128
        %2199 = vxpose.xlu0.c.b16.end [8/8] 0, 128
        %v2200 = vpop.trf.xlu0
        %v2201 = vpop.trf.xlu0
        %v2202 = vpop.trf.xlu0
        %v2203 = vpop.trf.xlu0
        %v2204 = vpop.trf.xlu0
        %v2205 = vpop.trf.xlu0
        %v2206 = vpop.trf.xlu0
        %v2207 = vpop.trf.xlu0
        %v2208 = vcombine.low %v2088, %v2152
        %v2210 = vunpack.c.l.s4 1983009808
        %v2211 = vunpack.c.0.s8 %v2210
        %v2212 = vlaneseq
        %v2213 = vshrl.u32 %v2212, 7
        %v2214 = vsub.s32 %v2211, %v2213
        %v2215 = vrot.slane %v2208, %v2214
        %v2216 = vcombine.low %v2120, %v2184
        %v2218 = vunpack.c.l.s4 1983009808
        %v2219 = vunpack.c.0.s8 %v2218
        %v2220 = vlaneseq
        %v2221 = vshrl.u32 %v2220, 7
        %v2222 = vsub.s32 %v2219, %v2221
        %v2223 = vrot.slane %v2216, %v2222
        %v2224 = vcombine.low %v2215, %v2223
        %v2226 = vunpack.c.l.s4 1934713408
        %v2227 = vunpack.c.0.s8 %v2226
        %v2228 = vlaneseq
        %v2229 = vshrl.u32 %v2228, 7
        %v2230 = vsub.s32 %v2227, %v2229
        %v2231 = vrot.slane %v2224, %v2230
        %v2232 = vcombine.high %v2231, 0
        %v2233 = vcombine.low %v2104, %v2168
        %v2235 = vunpack.c.l.s4 1983009808
        %v2236 = vunpack.c.0.s8 %v2235
        %v2237 = vlaneseq
        %v2238 = vshrl.u32 %v2237, 7
        %v2239 = vsub.s32 %v2236, %v2238
        %v2240 = vrot.slane %v2233, %v2239
        %v2241 = vcombine.low %v2136, %v2200
        %v2243 = vunpack.c.l.s4 1983009808
        %v2244 = vunpack.c.0.s8 %v2243
        %v2245 = vlaneseq
        %v2246 = vshrl.u32 %v2245, 7
        %v2247 = vsub.s32 %v2244, %v2246
        %v2248 = vrot.slane %v2241, %v2247
        %v2249 = vcombine.low %v2240, %v2248
        %v2251 = vunpack.c.l.s4 1934713408
        %v2252 = vunpack.c.0.s8 %v2251
        %v2253 = vlaneseq
        %v2254 = vshrl.u32 %v2253, 7
        %v2255 = vsub.s32 %v2252, %v2254
        %v2256 = vrot.slane %v2249, %v2255
        %v2257 = vcombine.high %v2256, 0
        %v2260 = vpack.i.b16 %v2256, %v2231
        %v2261 = vshrl.u32 %v2231, 16
        %v2262 = vshrl.u32 %v2256, 16
        %v2263 = vpack.i.b16 %v2262, %v2261
        %v2266 = vpack.i.b16 %v2257, %v2232
        %v2267 = vshrl.u32 %v2232, 16
        %v2268 = vshrl.u32 %v2257, 16
        %v2269 = vpack.i.b16 %v2268, %v2267
        %v2271 = vsel %vm1618, %v2260, 0
        %v2274 = vsel %vm1618, %v1848, 0
        %2276 = vmatprep.subr.bf16.mxu0 0
        %2277 = vmatpush1.bf16.xpose.msra.mxu0 %v2274
        %2278 = vmatprep.subr.bf16.mxu0 0
        %2279 = vmatpush1.bf16.xpose.msra.mxu0 0
        %2280 = vmatprep.subr.bf16.mxu0 0
        %2281 = vmatpush1.bf16.xpose.msra.mxu0 0
        %2282 = vmatprep.subr.bf16.mxu0 0
        %2283 = vmatpush1.bf16.xpose.msra.mxu0 0
        %2284 = vmatprep.subr.bf16.mxu0 0
        %2285 = vmatpush1.bf16.xpose.msra.mxu0 0
        %2286 = vmatprep.subr.bf16.mxu0 0
        %2287 = vmatpush1.bf16.xpose.msra.mxu0 0
        %2288 = vmatprep.subr.bf16.mxu0 0
        %2289 = vmatpush1.bf16.xpose.msra.mxu0 0
        %2290 = vmatprep.subr.bf16.mxu0 0
        %2291 = vmatpush1.bf16.xpose.msra.mxu0 0
        %2292 = vmatprep.subr.bf16.mxu0 0
        %2293 = vmatpush1.bf16.xpose.msra.mxu0 0
        %2294 = vmatprep.subr.bf16.mxu0 0
        %2295 = vmatpush1.bf16.xpose.msra.mxu0 0
        %2296 = vmatprep.subr.bf16.mxu0 0
        %2297 = vmatpush1.bf16.xpose.msra.mxu0 0
        %2298 = vmatprep.subr.bf16.mxu0 0
        %2299 = vmatpush1.bf16.xpose.msra.mxu0 0
        %2300 = vmatprep.subr.bf16.mxu0 0
        %2301 = vmatpush1.bf16.xpose.msra.mxu0 0
        %2302 = vmatprep.subr.bf16.mxu0 0
        %2303 = vmatpush1.bf16.xpose.msra.mxu0 0
        %2304 = vmatprep.subr.bf16.mxu0 0
        %2305 = vmatpush1.bf16.xpose.msra.mxu0 0
        %2306 = vmatprep.subr.bf16.mxu0 0
        %2307 = vmatpush1.bf16.xpose.msra.mxu0 0
        %2308 = vmatprep.mubr.bf16.mxu0 0
        %2309 = vmatmul.mubr.bf16.gmra.mrb[0].mxu0 %v2271
        %v2310 = vpop.f32.mrb[0].mxu0
        %v2311 = vadd.f32 0.0, %v2310
        %v2312 = vpop.f32.mrb[0].mxu0
        %v2313 = vpop.f32.mrb[0].mxu0
        %v2314 = vpop.f32.mrb[0].mxu0
        %2315 = vdwg.mxu0
        %v2317 = vsel %vm1618, %v2263, 0
        %v2320 = vsel %vm1618, %v1849, 0
        %2322 = vmatprep.subr.bf16.mxu0 0
        %2323 = vmatpush1.bf16.xpose.msra.mxu0 %v2320
        %2324 = vmatprep.subr.bf16.mxu0 0
        %2325 = vmatpush1.bf16.xpose.msra.mxu0 0
        %2326 = vmatprep.subr.bf16.mxu0 0
        %2327 = vmatpush1.bf16.xpose.msra.mxu0 0
        %2328 = vmatprep.subr.bf16.mxu0 0
        %2329 = vmatpush1.bf16.xpose.msra.mxu0 0
        %2330 = vmatprep.subr.bf16.mxu0 0
        %2331 = vmatpush1.bf16.xpose.msra.mxu0 0
        %2332 = vmatprep.subr.bf16.mxu0 0
        %2333 = vmatpush1.bf16.xpose.msra.mxu0 0
        %2334 = vmatprep.subr.bf16.mxu0 0
        %2335 = vmatpush1.bf16.xpose.msra.mxu0 0
        %2336 = vmatprep.subr.bf16.mxu0 0
        %2337 = vmatpush1.bf16.xpose.msra.mxu0 0
        %2338 = vmatprep.subr.bf16.mxu0 0
        %2339 = vmatpush1.bf16.xpose.msra.mxu0 0
        %2340 = vmatprep.subr.bf16.mxu0 0
        %2341 = vmatpush1.bf16.xpose.msra.mxu0 0
        %2342 = vmatprep.subr.bf16.mxu0 0
        %2343 = vmatpush1.bf16.xpose.msra.mxu0 0
        %2344 = vmatprep.subr.bf16.mxu0 0
        %2345 = vmatpush1.bf16.xpose.msra.mxu0 0
        %2346 = vmatprep.subr.bf16.mxu0 0
        %2347 = vmatpush1.bf16.xpose.msra.mxu0 0
        %2348 = vmatprep.subr.bf16.mxu0 0
        %2349 = vmatpush1.bf16.xpose.msra.mxu0 0
        %2350 = vmatprep.subr.bf16.mxu0 0
        %2351 = vmatpush1.bf16.xpose.msra.mxu0 0
        %2352 = vmatprep.subr.bf16.mxu0 0
        %2353 = vmatpush1.bf16.xpose.msra.mxu0 0
        %2354 = vmatprep.mubr.bf16.mxu0 0
        %2355 = vmatmul.mubr.bf16.gmra.mrb[0].mxu0 %v2317
        %v2356 = vpop.f32.mrb[0].mxu0
        %v2357 = vadd.f32 0.0, %v2356
        %v2358 = vpop.f32.mrb[0].mxu0
        %v2359 = vpop.f32.mrb[0].mxu0
        %v2360 = vpop.f32.mrb[0].mxu0
        %2361 = vdwg.mxu0
        %v2363 = vsel %vm1618, %v2266, 0
        %v2366 = vsel %vm1618, %v1850, 0
        %2368 = vmatprep.subr.bf16.mxu0 0
        %2369 = vmatpush1.bf16.xpose.msra.mxu0 %v2366
        %2370 = vmatprep.subr.bf16.mxu0 0
        %2371 = vmatpush1.bf16.xpose.msra.mxu0 0
        %2372 = vmatprep.subr.bf16.mxu0 0
        %2373 = vmatpush1.bf16.xpose.msra.mxu0 0
        %2374 = vmatprep.subr.bf16.mxu0 0
        %2375 = vmatpush1.bf16.xpose.msra.mxu0 0
        %2376 = vmatprep.subr.bf16.mxu0 0
        %2377 = vmatpush1.bf16.xpose.msra.mxu0 0
        %2378 = vmatprep.subr.bf16.mxu0 0
        %2379 = vmatpush1.bf16.xpose.msra.mxu0 0
        %2380 = vmatprep.subr.bf16.mxu0 0
        %2381 = vmatpush1.bf16.xpose.msra.mxu0 0
        %2382 = vmatprep.subr.bf16.mxu0 0
        %2383 = vmatpush1.bf16.xpose.msra.mxu0 0
        %2384 = vmatprep.subr.bf16.mxu0 0
        %2385 = vmatpush1.bf16.xpose.msra.mxu0 0
        %2386 = vmatprep.subr.bf16.mxu0 0
        %2387 = vmatpush1.bf16.xpose.msra.mxu0 0
        %2388 = vmatprep.subr.bf16.mxu0 0
        %2389 = vmatpush1.bf16.xpose.msra.mxu0 0
        %2390 = vmatprep.subr.bf16.mxu0 0
        %2391 = vmatpush1.bf16.xpose.msra.mxu0 0
        %2392 = vmatprep.subr.bf16.mxu0 0
        %2393 = vmatpush1.bf16.xpose.msra.mxu0 0
        %2394 = vmatprep.subr.bf16.mxu0 0
        %2395 = vmatpush1.bf16.xpose.msra.mxu0 0
        %2396 = vmatprep.subr.bf16.mxu0 0
        %2397 = vmatpush1.bf16.xpose.msra.mxu0 0
        %2398 = vmatprep.subr.bf16.mxu0 0
        %2399 = vmatpush1.bf16.xpose.msra.mxu0 0
        %2400 = vmatprep.mubr.bf16.mxu0 0
        %2401 = vmatmul.mubr.bf16.gmra.mrb[0].mxu0 %v2363
        %v2402 = vpop.f32.mrb[0].mxu0
        %v2403 = vadd.f32 0.0, %v2402
        %v2404 = vpop.f32.mrb[0].mxu0
        %v2405 = vpop.f32.mrb[0].mxu0
        %v2406 = vpop.f32.mrb[0].mxu0
        %2407 = vdwg.mxu0
        %v2409 = vsel %vm1618, %v2269, 0
        %v2412 = vsel %vm1618, %v1851, 0
        %2414 = vmatprep.subr.bf16.mxu0 0
        %2415 = vmatpush1.bf16.xpose.msra.mxu0 %v2412
        %2416 = vmatprep.subr.bf16.mxu0 0
        %2417 = vmatpush1.bf16.xpose.msra.mxu0 0
        %2418 = vmatprep.subr.bf16.mxu0 0
        %2419 = vmatpush1.bf16.xpose.msra.mxu0 0
        %2420 = vmatprep.subr.bf16.mxu0 0
        %2421 = vmatpush1.bf16.xpose.msra.mxu0 0
        %2422 = vmatprep.subr.bf16.mxu0 0
        %2423 = vmatpush1.bf16.xpose.msra.mxu0 0
        %2424 = vmatprep.subr.bf16.mxu0 0
        %2425 = vmatpush1.bf16.xpose.msra.mxu0 0
        %2426 = vmatprep.subr.bf16.mxu0 0
        %2427 = vmatpush1.bf16.xpose.msra.mxu0 0
        %2428 = vmatprep.subr.bf16.mxu0 0
        %2429 = vmatpush1.bf16.xpose.msra.mxu0 0
        %2430 = vmatprep.subr.bf16.mxu0 0
        %2431 = vmatpush1.bf16.xpose.msra.mxu0 0
        %2432 = vmatprep.subr.bf16.mxu0 0
        %2433 = vmatpush1.bf16.xpose.msra.mxu0 0
        %2434 = vmatprep.subr.bf16.mxu0 0
        %2435 = vmatpush1.bf16.xpose.msra.mxu0 0
        %2436 = vmatprep.subr.bf16.mxu0 0
        %2437 = vmatpush1.bf16.xpose.msra.mxu0 0
        %2438 = vmatprep.subr.bf16.mxu0 0
        %2439 = vmatpush1.bf16.xpose.msra.mxu0 0
        %2440 = vmatprep.subr.bf16.mxu0 0
        %2441 = vmatpush1.bf16.xpose.msra.mxu0 0
        %2442 = vmatprep.subr.bf16.mxu0 0
        %2443 = vmatpush1.bf16.xpose.msra.mxu0 0
        %2444 = vmatprep.subr.bf16.mxu0 0
        %2445 = vmatpush1.bf16.xpose.msra.mxu0 0
        %2446 = vmatprep.mubr.bf16.mxu0 0
        %2447 = vmatmul.mubr.bf16.gmra.mrb[0].mxu0 %v2409
        %v2448 = vpop.f32.mrb[0].mxu0
        %v2449 = vadd.f32 0.0, %v2448
        %v2450 = vpop.f32.mrb[0].mxu0
        %v2451 = vpop.f32.mrb[0].mxu0
        %v2452 = vpop.f32.mrb[0].mxu0
        %2453 = vdwg.mxu0
        %2454 = vxpose.xlu0.b32.start [1/16] %v2311, 128
        %2455 = vxpose.xlu0.b32.cont [2/16] 0.0, 128
        %2456 = vxpose.xlu0.b32.cont [3/16] 0.0, 128
        %2457 = vxpose.xlu0.b32.cont [4/16] 0.0, 128
        %2458 = vxpose.xlu0.b32.cont [5/16] 0.0, 128
        %2459 = vxpose.xlu0.b32.cont [6/16] 0.0, 128
        %2460 = vxpose.xlu0.b32.cont [7/16] 0.0, 128
        %2461 = vxpose.xlu0.b32.cont [8/16] 0.0, 128
        %2462 = vxpose.xlu0.b32.cont [9/16] 0.0, 128
        %2463 = vxpose.xlu0.b32.cont [10/16] 0.0, 128
        %2464 = vxpose.xlu0.b32.cont [11/16] 0.0, 128
        %2465 = vxpose.xlu0.b32.cont [12/16] 0.0, 128
        %2466 = vxpose.xlu0.b32.cont [13/16] 0.0, 128
        %2467 = vxpose.xlu0.b32.cont [14/16] 0.0, 128
        %2468 = vxpose.xlu0.b32.cont [15/16] 0.0, 128
        %2469 = vxpose.xlu0.b32.end [16/16] 0.0, 128
        %v2470 = vpop.trf.xlu0
        %v2471 = vpop.trf.xlu0
        %v2472 = vpop.trf.xlu0
        %v2473 = vpop.trf.xlu0
        %v2474 = vpop.trf.xlu0
        %v2475 = vpop.trf.xlu0
        %v2476 = vpop.trf.xlu0
        %v2477 = vpop.trf.xlu0
        %v2478 = vpop.trf.xlu0
        %v2479 = vpop.trf.xlu0
        %v2480 = vpop.trf.xlu0
        %v2481 = vpop.trf.xlu0
        %v2482 = vpop.trf.xlu0
        %v2483 = vpop.trf.xlu0
        %v2484 = vpop.trf.xlu0
        %v2485 = vpop.trf.xlu0
        %2486 = vxpose.xlu0.b32.start [1/16] %v2357, 128
        %2487 = vxpose.xlu0.b32.cont [2/16] 0.0, 128
        %2488 = vxpose.xlu0.b32.cont [3/16] 0.0, 128
        %2489 = vxpose.xlu0.b32.cont [4/16] 0.0, 128
        %2490 = vxpose.xlu0.b32.cont [5/16] 0.0, 128
        %2491 = vxpose.xlu0.b32.cont [6/16] 0.0, 128
        %2492 = vxpose.xlu0.b32.cont [7/16] 0.0, 128
        %2493 = vxpose.xlu0.b32.cont [8/16] 0.0, 128
        %2494 = vxpose.xlu0.b32.cont [9/16] 0.0, 128
        %2495 = vxpose.xlu0.b32.cont [10/16] 0.0, 128
        %2496 = vxpose.xlu0.b32.cont [11/16] 0.0, 128
        %2497 = vxpose.xlu0.b32.cont [12/16] 0.0, 128
        %2498 = vxpose.xlu0.b32.cont [13/16] 0.0, 128
        %2499 = vxpose.xlu0.b32.cont [14/16] 0.0, 128
        %2500 = vxpose.xlu0.b32.cont [15/16] 0.0, 128
        %2501 = vxpose.xlu0.b32.end [16/16] 0.0, 128
        %v2502 = vpop.trf.xlu0
        %v2503 = vpop.trf.xlu0
        %v2504 = vpop.trf.xlu0
        %v2505 = vpop.trf.xlu0
        %v2506 = vpop.trf.xlu0
        %v2507 = vpop.trf.xlu0
        %v2508 = vpop.trf.xlu0
        %v2509 = vpop.trf.xlu0
        %v2510 = vpop.trf.xlu0
        %v2511 = vpop.trf.xlu0
        %v2512 = vpop.trf.xlu0
        %v2513 = vpop.trf.xlu0
        %v2514 = vpop.trf.xlu0
        %v2515 = vpop.trf.xlu0
        %v2516 = vpop.trf.xlu0
        %v2517 = vpop.trf.xlu0
        %2518 = vxpose.xlu0.b32.start [1/16] %v2403, 128
        %2519 = vxpose.xlu0.b32.cont [2/16] 0.0, 128
        %2520 = vxpose.xlu0.b32.cont [3/16] 0.0, 128
        %2521 = vxpose.xlu0.b32.cont [4/16] 0.0, 128
        %2522 = vxpose.xlu0.b32.cont [5/16] 0.0, 128
        %2523 = vxpose.xlu0.b32.cont [6/16] 0.0, 128
        %2524 = vxpose.xlu0.b32.cont [7/16] 0.0, 128
        %2525 = vxpose.xlu0.b32.cont [8/16] 0.0, 128
        %2526 = vxpose.xlu0.b32.cont [9/16] 0.0, 128
        %2527 = vxpose.xlu0.b32.cont [10/16] 0.0, 128
        %2528 = vxpose.xlu0.b32.cont [11/16] 0.0, 128
        %2529 = vxpose.xlu0.b32.cont [12/16] 0.0, 128
        %2530 = vxpose.xlu0.b32.cont [13/16] 0.0, 128
        %2531 = vxpose.xlu0.b32.cont [14/16] 0.0, 128
        %2532 = vxpose.xlu0.b32.cont [15/16] 0.0, 128
        %2533 = vxpose.xlu0.b32.end [16/16] 0.0, 128
        %v2534 = vpop.trf.xlu0
        %v2535 = vpop.trf.xlu0
        %v2536 = vpop.trf.xlu0
        %v2537 = vpop.trf.xlu0
        %v2538 = vpop.trf.xlu0
        %v2539 = vpop.trf.xlu0
        %v2540 = vpop.trf.xlu0
        %v2541 = vpop.trf.xlu0
        %v2542 = vpop.trf.xlu0
        %v2543 = vpop.trf.xlu0
        %v2544 = vpop.trf.xlu0
        %v2545 = vpop.trf.xlu0
        %v2546 = vpop.trf.xlu0
        %v2547 = vpop.trf.xlu0
        %v2548 = vpop.trf.xlu0
        %v2549 = vpop.trf.xlu0
        %2550 = vxpose.xlu0.b32.start [1/16] %v2449, 128
        %2551 = vxpose.xlu0.b32.cont [2/16] 0.0, 128
        %2552 = vxpose.xlu0.b32.cont [3/16] 0.0, 128
        %2553 = vxpose.xlu0.b32.cont [4/16] 0.0, 128
        %2554 = vxpose.xlu0.b32.cont [5/16] 0.0, 128
        %2555 = vxpose.xlu0.b32.cont [6/16] 0.0, 128
        %2556 = vxpose.xlu0.b32.cont [7/16] 0.0, 128
        %2557 = vxpose.xlu0.b32.cont [8/16] 0.0, 128
        %2558 = vxpose.xlu0.b32.cont [9/16] 0.0, 128
        %2559 = vxpose.xlu0.b32.cont [10/16] 0.0, 128
        %2560 = vxpose.xlu0.b32.cont [11/16] 0.0, 128
        %2561 = vxpose.xlu0.b32.cont [12/16] 0.0, 128
        %2562 = vxpose.xlu0.b32.cont [13/16] 0.0, 128
        %2563 = vxpose.xlu0.b32.cont [14/16] 0.0, 128
        %2564 = vxpose.xlu0.b32.cont [15/16] 0.0, 128
        %2565 = vxpose.xlu0.b32.end [16/16] 0.0, 128
        %v2566 = vpop.trf.xlu0
        %v2567 = vpop.trf.xlu0
        %v2568 = vpop.trf.xlu0
        %v2569 = vpop.trf.xlu0
        %v2570 = vpop.trf.xlu0
        %v2571 = vpop.trf.xlu0
        %v2572 = vpop.trf.xlu0
        %v2573 = vpop.trf.xlu0
        %v2574 = vpop.trf.xlu0
        %v2575 = vpop.trf.xlu0
        %v2576 = vpop.trf.xlu0
        %v2577 = vpop.trf.xlu0
        %v2578 = vpop.trf.xlu0
        %v2579 = vpop.trf.xlu0
        %v2580 = vpop.trf.xlu0
        %v2581 = vpop.trf.xlu0
        %v2582 = vcombine.low %v2470, %v2534
        %v2583 = vcombine.high %v2470, %v2534
        %v2585 = vunpack.c.l.s4 1983009808
        %v2586 = vunpack.c.0.s8 %v2585
        %v2587 = vlaneseq
        %v2588 = vshrl.u32 %v2587, 7
        %v2589 = vsub.s32 %v2586, %v2588
        %v2590 = vrot.slane %v2582, %v2589
        %v2592 = vunpack.c.l.s4 1983009808
        %v2593 = vunpack.c.0.s8 %v2592
        %v2594 = vlaneseq
        %v2595 = vshrl.u32 %v2594, 7
        %v2596 = vsub.s32 %v2593, %v2595
        %v2597 = vrot.slane %v2583, %v2596
        %v2598 = vcombine.low %v2502, %v2566
        %v2599 = vcombine.high %v2502, %v2566
        %v2601 = vunpack.c.l.s4 1983009808
        %v2602 = vunpack.c.0.s8 %v2601
        %v2603 = vlaneseq
        %v2604 = vshrl.u32 %v2603, 7
        %v2605 = vsub.s32 %v2602, %v2604
        %v2606 = vrot.slane %v2598, %v2605
        %v2608 = vunpack.c.l.s4 1983009808
        %v2609 = vunpack.c.0.s8 %v2608
        %v2610 = vlaneseq
        %v2611 = vshrl.u32 %v2610, 7
        %v2612 = vsub.s32 %v2609, %v2611
        %v2613 = vrot.slane %v2599, %v2612
        %v2614 = vcombine.low %v2590, %v2606
        %v2615 = vcombine.high %v2590, %v2606
        %v2617 = vunpack.c.l.s4 1934713408
        %v2618 = vunpack.c.0.s8 %v2617
        %v2619 = vlaneseq
        %v2620 = vshrl.u32 %v2619, 7
        %v2621 = vsub.s32 %v2618, %v2620
        %v2622 = vrot.slane %v2614, %v2621
        %v2624 = vunpack.c.l.s4 1934713408
        %v2625 = vunpack.c.0.s8 %v2624
        %v2626 = vlaneseq
        %v2627 = vshrl.u32 %v2626, 7
        %v2628 = vsub.s32 %v2625, %v2627
        %v2629 = vrot.slane %v2615, %v2628
        %v2630 = vcombine.low %v2597, %v2613
        %v2631 = vcombine.high %v2597, %v2613
        %v2633 = vunpack.c.l.s4 1934713408
        %v2634 = vunpack.c.0.s8 %v2633
        %v2635 = vlaneseq
        %v2636 = vshrl.u32 %v2635, 7
        %v2637 = vsub.s32 %v2634, %v2636
        %v2638 = vrot.slane %v2630, %v2637
        %v2640 = vunpack.c.l.s4 1934713408
        %v2641 = vunpack.c.0.s8 %v2640
        %v2642 = vlaneseq
        %v2643 = vshrl.u32 %v2642, 7
        %v2644 = vsub.s32 %v2641, %v2643
        %v2645 = vrot.slane %v2631, %v2644
        %v2646 = vcombine.high %v2622, 0.0
        %v2647 = vcombine.high %v2629, 0.0
        %v2648 = vcombine.high %v2638, 0.0
        %v2649 = vcombine.high %v2645, 0.0
        %v2650 = vcombine.low %v2622, %v2629
        %v2652 = vunpack.c.l.s4 1983009808
        %v2653 = vunpack.c.0.s8 %v2652
        %v2654 = vlaneseq
        %v2655 = vshrl.u32 %v2654, 7
        %v2656 = vsub.s32 %v2653, %v2655
        %v2657 = vrot.slane %v2650, %v2656
        %v2658 = vcombine.low %v2646, %v2647
        %v2660 = vunpack.c.l.s4 1983009808
        %v2661 = vunpack.c.0.s8 %v2660
        %v2662 = vlaneseq
        %v2663 = vshrl.u32 %v2662, 7
        %v2664 = vsub.s32 %v2661, %v2663
        %v2665 = vrot.slane %v2658, %v2664
        %v2666 = vcombine.low %v2638, %v2645
        %v2668 = vunpack.c.l.s4 1983009808
        %v2669 = vunpack.c.0.s8 %v2668
        %v2670 = vlaneseq
        %v2671 = vshrl.u32 %v2670, 7
        %v2672 = vsub.s32 %v2669, %v2671
        %v2673 = vrot.slane %v2666, %v2672
        %v2674 = vcombine.low %v2648, %v2649
        %v2676 = vunpack.c.l.s4 1983009808
        %v2677 = vunpack.c.0.s8 %v2676
        %v2678 = vlaneseq
        %v2679 = vshrl.u32 %v2678, 7
        %v2680 = vsub.s32 %v2677, %v2679
        %v2681 = vrot.slane %v2674, %v2680
        %v2682 = vcombine.low %v2657, %v2665
        %v2683 = vcombine.high %v2657, %v2665
        %v2685 = vunpack.c.l.s4 1934713408
        %v2686 = vunpack.c.0.s8 %v2685
        %v2687 = vlaneseq
        %v2688 = vshrl.u32 %v2687, 7
        %v2689 = vsub.s32 %v2686, %v2688
        %v2690 = vrot.slane %v2682, %v2689
        %v2692 = vunpack.c.l.s4 1934713408
        %v2693 = vunpack.c.0.s8 %v2692
        %v2694 = vlaneseq
        %v2695 = vshrl.u32 %v2694, 7
        %v2696 = vsub.s32 %v2693, %v2695
        %v2697 = vrot.slane %v2683, %v2696
        %v2698 = vcombine.low %v2673, %v2681
        %v2699 = vcombine.high %v2673, %v2681
        %v2701 = vunpack.c.l.s4 1934713408
        %v2702 = vunpack.c.0.s8 %v2701
        %v2703 = vlaneseq
        %v2704 = vshrl.u32 %v2703, 7
        %v2705 = vsub.s32 %v2702, %v2704
        %v2706 = vrot.slane %v2698, %v2705
        %v2708 = vunpack.c.l.s4 1934713408
        %v2709 = vunpack.c.0.s8 %v2708
        %v2710 = vlaneseq
        %v2711 = vshrl.u32 %v2710, 7
        %v2712 = vsub.s32 %v2709, %v2711
        %v2713 = vrot.slane %v2699, %v2712
        %v2714 = vcombine.low %v2690, %v2706
        %v2715 = vcombine.high %v2690, %v2706
        %v2716 = vcombine.low %v2697, %v2713
        %v2717 = vcombine.high %v2697, %v2713
        %2719 = vrot.lane.b32.xlu0 %v2715, 8
        %v2720 = vpop.permute.xlu0 %2719
        %2723 = vrot.lane.b32.xlu0 %v2716, 16
        %v2724 = vpop.permute.xlu0 %2723
        %2727 = vrot.lane.b32.xlu0 %v2717, 24
        %v2728 = vpop.permute.xlu0 %2727
        %v2730 = vsel %vm1618, %v2714, %v2720
        %vm2731 = vcmask 130048
        %v2732 = vsel %vm2731, %v2730, %v2724
        %vm2733 = vcmask 195584
        %v2734 = vsel %vm2733, %v2732, %v2728
        %v2735 = vpack.c.bf16 %v2734, %v2734
        %v2736 = vld [vmem:[%s7] sm:$0xf]
        %v2737 = vld [vmem:[%s7 + $0x4] sm:$0xf]
        %v2738 = vld [vmem:[%s7 + $0x8] sm:$0xf]
        %v2739 = vld [vmem:[%s7 + $0xc] sm:$0xf]
        %v2740 = vld [vmem:[%s8] sm:$0x1]
        %v2742 = vlaneseq
        %v2743 = vshrl.u32 %v2742, 7
        %v2744 = vsub.s32 0, %v2743
        %v2745 = vrot.slane %v2740, %v2744
        %v2751 = vunpack.c.l.b16 %v2736
        %v2752 = vunpack.c.l.b16 %v2737
        %v2753 = vunpack.c.l.b16 %v2738
        %v2754 = vunpack.c.l.b16 %v2739
        %v2755 = vpack.c.b16 %v2752, %v2751
        %v2756 = vpack.c.b16 %v2754, %v2753
        %vm2759 = vcmask 261120
        %v2761 = vsel %vm2759, %v2735, 0
        %2763 = vmatprep.subr.bf16.mxu0 0
        %2764 = vmatpush1.bf16.msra.mxu0 %v2755
        %2765 = vmatprep.subr.bf16.mxu0 0
        %2766 = vmatpush1.bf16.msra.mxu0 %v2756
        %2767 = vmatprep.subr.bf16.mxu0 0
        %2768 = vmatpush1.bf16.msra.mxu0 0
        %2769 = vmatprep.subr.bf16.mxu0 0
        %2770 = vmatpush1.bf16.msra.mxu0 0
        %2771 = vmatprep.subr.bf16.mxu0 0
        %2772 = vmatpush1.bf16.msra.mxu0 0
        %2773 = vmatprep.subr.bf16.mxu0 0
        %2774 = vmatpush1.bf16.msra.mxu0 0
        %2775 = vmatprep.subr.bf16.mxu0 0
        %2776 = vmatpush1.bf16.msra.mxu0 0
        %2777 = vmatprep.subr.bf16.mxu0 0
        %2778 = vmatpush1.bf16.msra.mxu0 0
        %2779 = vmatprep.subr.bf16.mxu0 0
        %2780 = vmatpush1.bf16.msra.mxu0 0
        %2781 = vmatprep.subr.bf16.mxu0 0
        %2782 = vmatpush1.bf16.msra.mxu0 0
        %2783 = vmatprep.subr.bf16.mxu0 0
        %2784 = vmatpush1.bf16.msra.mxu0 0
        %2785 = vmatprep.subr.bf16.mxu0 0
        %2786 = vmatpush1.bf16.msra.mxu0 0
        %2787 = vmatprep.subr.bf16.mxu0 0
        %2788 = vmatpush1.bf16.msra.mxu0 0
        %2789 = vmatprep.subr.bf16.mxu0 0
        %2790 = vmatpush1.bf16.msra.mxu0 0
        %2791 = vmatprep.subr.bf16.mxu0 0
        %2792 = vmatpush1.bf16.msra.mxu0 0
        %2793 = vmatprep.subr.bf16.mxu0 0
        %2794 = vmatpush1.bf16.msra.mxu0 0
        %2795 = vmatprep.mubr.bf16.mxu0 0
        %2796 = vmatmul.mubr.bf16.gmra.mrb[0].mxu0 %v2761
        %v2797 = vpop.f32.mrb[0].mxu0
        %v2798 = vadd.f32 %v2745, %v2797
        %v2799 = vpop.f32.mrb[0].mxu0
        %v2800 = vpop.f32.mrb[0].mxu0
        %v2801 = vpop.f32.mrb[0].mxu0
        %2802 = vdwg.mxu0
        %v2803 = vlaneseq
        %v2804 = vand.u32 %v2803, 127
        %vm2805 = vcmp.lt.s32.totalorder %v2804, 32
        %v2806 = vsel %vm2805, 1, 0
        %v2807 = vcvt.s32.f32 %v2806
        %v2808 = vadd.f32 %v545, %v2798
        %2809 = vadd.xlane.f32.xlu0 %v2808
        %v2810 = vpop.xlane.xlu0 %2809
        %v2811 = vmul.f32 %v2810, 0.03125
        %v2812 = vsub.f32 %v2808, %v2811
        %v2813 = vmul.f32 %v2812, %v2807
        %v2814 = vmul.f32 %v2813, %v2813
        %2815 = vadd.xlane.f32.xlu0 %v2814
        %v2816 = vpop.xlane.xlu0 %2815
        %v2817 = vmul.f32 %v2816, 0.03125
        %v2818 = vadd.f32 %v2817, 1e-05
        %v2819 = vrsqrt.pop %v2818
        %v2820 = vmul.f32 %v2813, %v2819
        %v2821 = vld [vmem:[%s9] sm:$0x1]
        %v2823 = vlaneseq
        %v2824 = vshrl.u32 %v2823, 7
        %v2825 = vsub.s32 0, %v2824
        %v2826 = vrot.slane %v2821, %v2825
        %v2828 = vmul.f32 %v2820, %v2826
        %v2829 = vld [vmem:[%s10] sm:$0x1]
        %v2831 = vlaneseq
        %v2832 = vshrl.u32 %v2831, 7
        %v2833 = vsub.s32 0, %v2832
        %v2834 = vrot.slane %v2829, %v2833
        %v2836 = vadd.f32 %v2828, %v2834
        %v2837 = vpack.c.bf16 %v2836, %v2836
        %v2838 = vld [vmem:[%s11] sm:$0xf]
        %v2839 = vld [vmem:[%s11 + $0x4] sm:$0xf]
        %v2840 = vld [vmem:[%s11 + $0x8] sm:$0xf]
        %v2841 = vld [vmem:[%s11 + $0xc] sm:$0xf]
        %v2842 = vld [vmem:[%s11 + $0x10] sm:$0xf]
        %v2843 = vld [vmem:[%s11 + $0x14] sm:$0xf]
        %v2844 = vld [vmem:[%s11 + $0x18] sm:$0xf]
        %v2845 = vld [vmem:[%s11 + $0x1c] sm:$0xf]
        %v2846 = vld [vmem:[%s11 + $0x20] sm:$0xf]
        %v2847 = vld [vmem:[%s11 + $0x24] sm:$0xf]
        %v2848 = vld [vmem:[%s11 + $0x28] sm:$0xf]
        %v2849 = vld [vmem:[%s11 + $0x2c] sm:$0xf]
        %v2850 = vld [vmem:[%s11 + $0x30] sm:$0xf]
        %v2851 = vld [vmem:[%s11 + $0x34] sm:$0xf]
        %v2852 = vld [vmem:[%s11 + $0x38] sm:$0xf]
        %v2853 = vld [vmem:[%s11 + $0x3c] sm:$0xf]
        %v2854 = vld [vmem:[%s12] sm:$0x1]
        %v2856 = vlaneseq
        %v2857 = vshrl.u32 %v2856, 7
        %v2858 = vsub.s32 0, %v2857
        %v2859 = vrot.slane %v2854, %v2858
        %v2877 = vunpack.c.l.b16 %v2838
        %v2878 = vunpack.c.l.b16 %v2839
        %v2879 = vunpack.c.l.b16 %v2840
        %v2880 = vunpack.c.l.b16 %v2841
        %v2881 = vunpack.c.l.b16 %v2842
        %v2882 = vunpack.c.l.b16 %v2843
        %v2883 = vunpack.c.l.b16 %v2844
        %v2884 = vunpack.c.l.b16 %v2845
        %v2885 = vunpack.c.l.b16 %v2846
        %v2886 = vunpack.c.l.b16 %v2847
        %v2887 = vunpack.c.l.b16 %v2848
        %v2888 = vunpack.c.l.b16 %v2849
        %v2889 = vunpack.c.l.b16 %v2850
        %v2890 = vunpack.c.l.b16 %v2851
        %v2891 = vunpack.c.l.b16 %v2852
        %v2892 = vunpack.c.l.b16 %v2853
        %v2893 = vpack.c.b16 %v2878, %v2877
        %v2894 = vpack.c.b16 %v2880, %v2879
        %v2895 = vpack.c.b16 %v2882, %v2881
        %v2896 = vpack.c.b16 %v2884, %v2883
        %v2897 = vpack.c.b16 %v2886, %v2885
        %v2898 = vpack.c.b16 %v2888, %v2887
        %v2899 = vpack.c.b16 %v2890, %v2889
        %v2900 = vpack.c.b16 %v2892, %v2891
        %2909 = vmatprep.subr.bf16.mxu0 0
        %2910 = vmatpush1.bf16.msra.mxu0 %v2893
        %2911 = vmatprep.subr.bf16.mxu0 0
        %2912 = vmatpush1.bf16.msra.mxu0 %v2894
        %2913 = vmatprep.subr.bf16.mxu0 0
        %2914 = vmatpush1.bf16.msra.mxu0 %v2895
        %2915 = vmatprep.subr.bf16.mxu0 0
        %2916 = vmatpush1.bf16.msra.mxu0 %v2896
        %2917 = vmatprep.subr.bf16.mxu0 0
        %2918 = vmatpush1.bf16.msra.mxu0 %v2897
        %2919 = vmatprep.subr.bf16.mxu0 0
        %2920 = vmatpush1.bf16.msra.mxu0 %v2898
        %2921 = vmatprep.subr.bf16.mxu0 0
        %2922 = vmatpush1.bf16.msra.mxu0 %v2899
        %2923 = vmatprep.subr.bf16.mxu0 0
        %2924 = vmatpush1.bf16.msra.mxu0 %v2900
        %2925 = vmatprep.subr.bf16.mxu0 0
        %2926 = vmatpush1.bf16.msra.mxu0 0
        %2927 = vmatprep.subr.bf16.mxu0 0
        %2928 = vmatpush1.bf16.msra.mxu0 0
        %2929 = vmatprep.subr.bf16.mxu0 0
        %2930 = vmatpush1.bf16.msra.mxu0 0
        %2931 = vmatprep.subr.bf16.mxu0 0
        %2932 = vmatpush1.bf16.msra.mxu0 0
        %2933 = vmatprep.subr.bf16.mxu0 0
        %2934 = vmatpush1.bf16.msra.mxu0 0
        %2935 = vmatprep.subr.bf16.mxu0 0
        %2936 = vmatpush1.bf16.msra.mxu0 0
        %2937 = vmatprep.subr.bf16.mxu0 0
        %2938 = vmatpush1.bf16.msra.mxu0 0
        %2939 = vmatprep.subr.bf16.mxu0 0
        %2940 = vmatpush1.bf16.msra.mxu0 0
        %2941 = vmatprep.mubr.bf16.mxu0 0
        %2942 = vmatmul.mubr.bf16.gmra.mrb[0].mxu0 %v2837
        %v2943 = vpop.f32.mrb[0].mxu0
        %v2944 = vadd.f32 %v2859, %v2943
        %v2945 = vpop.f32.mrb[0].mxu0
        %v2946 = vpop.f32.mrb[0].mxu0
        %v2947 = vpop.f32.mrb[0].mxu0
        %2948 = vdwg.mxu0
        %v2949 = vmax.f32 %v2944, 0.0
        %v2950 = vpack.c.bf16 %v2949, %v2949
        %v2951 = vld [vmem:[%s13] sm:$0xf]
        %v2952 = vld [vmem:[%s13 + $0x4] sm:$0xf]
        %v2953 = vld [vmem:[%s13 + $0x8] sm:$0xf]
        %v2954 = vld [vmem:[%s13 + $0xc] sm:$0xf]
        %v2955 = vld [vmem:[%s13 + $0x10] sm:$0xf]
        %v2956 = vld [vmem:[%s13 + $0x14] sm:$0xf]
        %v2957 = vld [vmem:[%s13 + $0x18] sm:$0xf]
        %v2958 = vld [vmem:[%s13 + $0x1c] sm:$0xf]
        %v2959 = vld [vmem:[%s13 + $0x20] sm:$0xf]
        %v2960 = vld [vmem:[%s13 + $0x24] sm:$0xf]
        %v2961 = vld [vmem:[%s13 + $0x28] sm:$0xf]
        %v2962 = vld [vmem:[%s13 + $0x2c] sm:$0xf]
        %v2963 = vld [vmem:[%s13 + $0x30] sm:$0xf]
        %v2964 = vld [vmem:[%s13 + $0x34] sm:$0xf]
        %v2965 = vld [vmem:[%s13 + $0x38] sm:$0xf]
        %v2966 = vld [vmem:[%s13 + $0x3c] sm:$0xf]
        %v2967 = vld [vmem:[%s14] sm:$0x1]
        %v2969 = vlaneseq
        %v2970 = vshrl.u32 %v2969, 7
        %v2971 = vsub.s32 0, %v2970
        %v2972 = vrot.slane %v2967, %v2971
        %v2990 = vunpack.c.l.b16 %v2951
        %v2991 = vunpack.c.l.b16 %v2952
        %v2992 = vunpack.c.l.b16 %v2953
        %v2993 = vunpack.c.l.b16 %v2954
        %v2994 = vunpack.c.l.b16 %v2955
        %v2995 = vunpack.c.l.b16 %v2956
        %v2996 = vunpack.c.l.b16 %v2957
        %v2997 = vunpack.c.l.b16 %v2958
        %v2998 = vunpack.c.l.b16 %v2959
        %v2999 = vunpack.c.l.b16 %v2960
        %v3000 = vunpack.c.l.b16 %v2961
        %v3001 = vunpack.c.l.b16 %v2962
        %v3002 = vunpack.c.l.b16 %v2963
        %v3003 = vunpack.c.l.b16 %v2964
        %v3004 = vunpack.c.l.b16 %v2965
        %v3005 = vunpack.c.l.b16 %v2966
        %v3006 = vpack.c.b16 %v2991, %v2990
        %v3007 = vpack.c.b16 %v2993, %v2992
        %v3008 = vpack.c.b16 %v2995, %v2994
        %v3009 = vpack.c.b16 %v2997, %v2996
        %v3010 = vpack.c.b16 %v2999, %v2998
        %v3011 = vpack.c.b16 %v3001, %v3000
        %v3012 = vpack.c.b16 %v3003, %v3002
        %v3013 = vpack.c.b16 %v3005, %v3004
        %3022 = vmatprep.subr.bf16.mxu0 0
        %3023 = vmatpush1.bf16.msra.mxu0 %v3006
        %3024 = vmatprep.subr.bf16.mxu0 0
        %3025 = vmatpush1.bf16.msra.mxu0 %v3007
        %3026 = vmatprep.subr.bf16.mxu0 0
        %3027 = vmatpush1.bf16.msra.mxu0 %v3008
        %3028 = vmatprep.subr.bf16.mxu0 0
        %3029 = vmatpush1.bf16.msra.mxu0 %v3009
        %3030 = vmatprep.subr.bf16.mxu0 0
        %3031 = vmatpush1.bf16.msra.mxu0 %v3010
        %3032 = vmatprep.subr.bf16.mxu0 0
        %3033 = vmatpush1.bf16.msra.mxu0 %v3011
        %3034 = vmatprep.subr.bf16.mxu0 0
        %3035 = vmatpush1.bf16.msra.mxu0 %v3012
        %3036 = vmatprep.subr.bf16.mxu0 0
        %3037 = vmatpush1.bf16.msra.mxu0 %v3013
        %3038 = vmatprep.subr.bf16.mxu0 0
        %3039 = vmatpush1.bf16.msra.mxu0 0
        %3040 = vmatprep.subr.bf16.mxu0 0
        %3041 = vmatpush1.bf16.msra.mxu0 0
        %3042 = vmatprep.subr.bf16.mxu0 0
        %3043 = vmatpush1.bf16.msra.mxu0 0
        %3044 = vmatprep.subr.bf16.mxu0 0
        %3045 = vmatpush1.bf16.msra.mxu0 0
        %3046 = vmatprep.subr.bf16.mxu0 0
        %3047 = vmatpush1.bf16.msra.mxu0 0
        %3048 = vmatprep.subr.bf16.mxu0 0
        %3049 = vmatpush1.bf16.msra.mxu0 0
        %3050 = vmatprep.subr.bf16.mxu0 0
        %3051 = vmatpush1.bf16.msra.mxu0 0
        %3052 = vmatprep.subr.bf16.mxu0 0
        %3053 = vmatpush1.bf16.msra.mxu0 0
        %3054 = vmatprep.mubr.bf16.mxu0 0
        %3055 = vmatmul.mubr.bf16.gmra.mrb[0].mxu0 %v2950
        %v3056 = vpop.f32.mrb[0].mxu0
        %v3057 = vadd.f32 %v2972, %v3056
        %v3058 = vpop.f32.mrb[0].mxu0
        %v3059 = vpop.f32.mrb[0].mxu0
        %v3060 = vpop.f32.mrb[0].mxu0
        %3061 = vdwg.mxu0
        %v3062 = vadd.f32 %v2836, %v3057
        %3063 = vadd.xlane.f32.xlu0 %v3062
        %v3064 = vpop.xlane.xlu0 %3063
        %v3065 = vmul.f32 %v3064, 0.03125
        %v3066 = vsub.f32 %v3062, %v3065
        %v3067 = vmul.f32 %v3066, %v2807
        %v3068 = vmul.f32 %v3067, %v3067
        %3069 = vadd.xlane.f32.xlu0 %v3068
        %v3070 = vpop.xlane.xlu0 %3069
        %v3071 = vmul.f32 %v3070, 0.03125
        %v3072 = vadd.f32 %v3071, 1e-05
        %v3073 = vrsqrt.pop %v3072
        %v3074 = vmul.f32 %v3067, %v3073
        %v3075 = vld [vmem:[%s15] sm:$0x1]
        %v3077 = vlaneseq
        %v3078 = vshrl.u32 %v3077, 7
        %v3079 = vsub.s32 0, %v3078
        %v3080 = vrot.slane %v3075, %v3079
        %v3082 = vmul.f32 %v3074, %v3080
        %v3083 = vld [vmem:[%s16] sm:$0x1]
        %v3085 = vlaneseq
        %v3086 = vshrl.u32 %v3085, 7
        %v3087 = vsub.s32 0, %v3086
        %v3088 = vrot.slane %v3083, %v3087
        %v3090 = vadd.f32 %v3082, %v3088
        %3091 = vst [vmem:[%s539] sm:$0xff] %v3090
        %s3092 = sand.u32 %s401, 1
        %s3093 = scalar_lea.sflag [#allocation3], %s3092
        %s3094 = sand.u32 %s401, 1
        %s3095 = smul.addr %s3094, 8
        %s3096 = scalar_lea.vmem [#allocation2], %s3095
        // Predicated region
        $region89: #{tpu_custom_call.1} parent=87 // pred_check
          %p3097 = pneg %p411
        $region90: #{tpu_custom_call.1} parent=87 // pred_check_branch
          %3099 = sbr.rel (%p3097) target = $region92
        $region91: #{tpu_custom_call.1} parent=87 // pred_region
          %s3101 = ssub.s32 128, 128
          %3102 = vsyncadd %s3093, %s3101
          %s3103 = smul.addr %s31, 128
          %s3104 = scalar_lea.hbm %s17, %s3103
          %s3106 = sshll.u32 %s3096, 4
          %s3107 = int_to_ptr.vmem [resolvable:$true] %s3106
          %3109 = dma.vmem_to_hbm [thread:$0]  %s3107, 128, %s3104, %s3093
        $region92: #{tpu_custom_call.1} parent=87 // pred_fallthru
          _
      $region88: #{tpu_custom_call.1} parent=5 // pred_fallthru
        _
      %p3110 = scmp.le.s32.totalorder 2, %s26
      // Predicated region
      $region93: #{tpu_custom_call.1} parent=5 // pred_check
        %p3111 = pneg %p3110
      $region94: #{tpu_custom_call.1} parent=5 // pred_check_branch
        %3113 = sbr.rel (%p3111) target = $region96
      $region95: #{tpu_custom_call.1} parent=5 // pred_region
        %s3114 = ssub.s32 %s26, 2
        // Predicated region
        $region97: #{tpu_custom_call.1} parent=95 // pred_check
          %p3115 = pneg %p417
        $region98: #{tpu_custom_call.1} parent=95 // pred_check_branch
          %3117 = sbr.rel (%p3115) target = $region100
        $region99: #{tpu_custom_call.1} parent=95 // pred_region
          %s3118 = sand.u32 %s402, 1
          %s3119 = scalar_lea.sflag [#allocation3], %s3118
          %s3120 = sand.u32 %s402, 1
          %s3121 = smul.addr %s3120, 8
          %s3122 = scalar_lea.vmem [#allocation2], %s3121
          %3123 = dma.done %s3119, 128
        $region100: #{tpu_custom_call.1} parent=95 // pred_fallthru
          _
      $region96: #{tpu_custom_call.1} parent=5 // pred_fallthru
        _
    $region6: #{tpu_custom_call.1} parent=1 // loop_footer
      %s30 = sadd.s32 1, %s26
    $region7: #{tpu_custom_call.1} parent=1 // loop_footer_branch
      %25 = sbr.rel target = $region3
    $region8: #{tpu_custom_call.1} parent=1 // loop_exit
      _
    %3124 = vsyncpa [#allocation3], 1
    %s3125 = scalar_lea.sflag [#allocation3], 1
    %3126 = vsyncpa %s3125, 1

</llo_original>
